<compile_context>
chip_gen: v7x
topology: tpu7x:2x2x1
jax: 0.10.0
libtpu: 0.0.40
codegen_flags: <defaults>
</compile_context>

<pallas_src>
import jax
import jax.numpy as jnp
from jax.experimental import pallas as pl
from jax.experimental.pallas import tpu as pltpu


# ----------------------------------------------------------------------------
# small helpers
# ----------------------------------------------------------------------------
def _round_up(x, m):
    return ((x + m - 1) // m) * m


def _pad3(x, d1, d2):
    """Zero-pad dims 1 and 2 of a (P, M, K) array up to (P, d1, d2)."""
    return jnp.pad(x, ((0, 0), (0, d1 - x.shape[1]), (0, d2 - x.shape[2])))


def _pad_vec(v, cp, fill):
    pad = cp - v.shape[0]
    if pad == 0:
        return v
    return jnp.concatenate([v, jnp.full((pad,), fill, v.dtype)])


# ----------------------------------------------------------------------------
# Pallas kernels
# ----------------------------------------------------------------------------
def _mm_stats_kernel(a_ref, b_ref, y_ref, sum_ref, sq_ref, acc_ref):
    """Tiled bf16 matmul with f32 accumulator; emits y (bf16) + per-tile
    channel sum / sum-of-squares for the BatchNorm statistics."""
    k = pl.program_id(2)

    @pl.when(k == 0)
    def _init():
        acc_ref[...] = jnp.zeros_like(acc_ref)

    acc_ref[...] += jnp.dot(a_ref[...], b_ref[...],
                            preferred_element_type=jnp.float32)

    @pl.when(k == pl.num_programs(2) - 1)
    def _finalize():
        y = acc_ref[...]
        y_ref[...] = y.astype(y_ref.dtype)
        s = jnp.sum(y, axis=0, keepdims=True)        # (1, Cp)
        q = jnp.sum(y * y, axis=0, keepdims=True)    # (1, Cp)
        sum_ref[...] = jnp.broadcast_to(s, sum_ref.shape)
        sq_ref[...] = jnp.broadcast_to(q, sq_ref.shape)


def _pallas_matmul_stats(a, b, tm, tk):
    P, Mp, Kp = a.shape
    _, _, Cp = b.shape
    mt, kt = Mp // tm, Kp // tk
    y, s, q = pl.pallas_call(
        _mm_stats_kernel,
        out_shape=(
            jax.ShapeDtypeStruct((P, Mp, Cp), jnp.bfloat16),
            jax.ShapeDtypeStruct((P, mt, 8, Cp), jnp.float32),
            jax.ShapeDtypeStruct((P, mt, 8, Cp), jnp.float32),
        ),
        grid=(P, mt, kt),
        in_specs=[
            pl.BlockSpec((None, tm, tk), lambda p, i, k: (p, i, k)),
            pl.BlockSpec((None, tk, Cp), lambda p, i, k: (p, k, 0)),
        ],
        out_specs=(
            pl.BlockSpec((None, tm, Cp), lambda p, i, k: (p, i, 0)),
            pl.BlockSpec((None, None, 8, Cp), lambda p, i, k: (p, i, 0, 0)),
            pl.BlockSpec((None, None, 8, Cp), lambda p, i, k: (p, i, 0, 0)),
        ),
        scratch_shapes=[pltpu.VMEM((tm, Cp), jnp.float32)],
        compiler_params=pltpu.CompilerParams(
            dimension_semantics=("parallel", "parallel", "arbitrary"),
            vmem_limit_bytes=48 * 1024 * 1024),
    )(a, b)
    # tiny reduction over (phase, tile) partials -> full-batch channel stats
    tot_sum = jnp.sum(s[:, :, 0, :], axis=(0, 1))
    tot_sq = jnp.sum(q[:, :, 0, :], axis=(0, 1))
    return y, tot_sum, tot_sq


def _bn_relu_kernel(y_ref, sc_ref, sh_ref, o_ref):
    """Elementwise BN-apply + ReLU: max(y*scale + shift, 0)."""
    y = y_ref[...].astype(jnp.float32)
    o_ref[...] = jnp.maximum(y * sc_ref[...] + sh_ref[...], 0.0
                             ).astype(o_ref.dtype)


def _pallas_bn_relu(y, scale, shift, tm):
    P, Mp, Cp = y.shape
    mt = Mp // tm
    return pl.pallas_call(
        _bn_relu_kernel,
        out_shape=jax.ShapeDtypeStruct((P, Mp, Cp), jnp.bfloat16),
        grid=(P, mt),
        in_specs=[
            pl.BlockSpec((None, tm, Cp), lambda p, i: (p, i, 0)),
            pl.BlockSpec((1, Cp), lambda p, i: (0, 0)),
            pl.BlockSpec((1, Cp), lambda p, i: (0, 0)),
        ],
        out_specs=pl.BlockSpec((None, tm, Cp), lambda p, i: (p, i, 0)),
        compiler_params=pltpu.CompilerParams(
            dimension_semantics=("parallel", "parallel"),
            vmem_limit_bytes=48 * 1024 * 1024),
    )(y, scale, shift)


def _mm_tanh_kernel(a_ref, b_ref, o_ref, acc_ref):
    """Tiled bf16 matmul + tanh epilogue (final layer)."""
    k = pl.program_id(2)

    @pl.when(k == 0)
    def _init():
        acc_ref[...] = jnp.zeros_like(acc_ref)

    acc_ref[...] += jnp.dot(a_ref[...], b_ref[...],
                            preferred_element_type=jnp.float32)

    @pl.when(k == pl.num_programs(2) - 1)
    def _finalize():
        o_ref[...] = jnp.tanh(acc_ref[...]).astype(o_ref.dtype)


def _pallas_matmul_tanh(a, b, tm, tk):
    P, Mp, Kp = a.shape
    _, _, Cp = b.shape
    mt, kt = Mp // tm, Kp // tk
    return pl.pallas_call(
        _mm_tanh_kernel,
        out_shape=jax.ShapeDtypeStruct((P, Mp, Cp), jnp.float32),
        grid=(P, mt, kt),
        in_specs=[
            pl.BlockSpec((None, tm, tk), lambda p, i, k: (p, i, k)),
            pl.BlockSpec((None, tk, Cp), lambda p, i, k: (p, k, 0)),
        ],
        out_specs=pl.BlockSpec((None, tm, Cp), lambda p, i, k: (p, i, 0)),
        scratch_shapes=[pltpu.VMEM((tm, Cp), jnp.float32)],
        compiler_params=pltpu.CompilerParams(
            dimension_semantics=("parallel", "parallel", "arbitrary"),
            vmem_limit_bytes=48 * 1024 * 1024),
    )(a, b)


# ----------------------------------------------------------------------------
# im2col glue (plain JAX reshapes / pads / slices only)
# ----------------------------------------------------------------------------
def _im2col_convt_s1(x, w, pad):
    """ConvTranspose2d stride=1 == Conv2d with flipped kernel, pad K-1-pad.
    x: (N,H,W,IC) NHWC, w: (IC,OC,K,K).  Returns A:(1,M,K*K*IC), B:(1,...,OC)."""
    N, H, W, IC = x.shape
    _, OC, K, _ = w.shape
    OH = H + K - 1 - 2 * pad
    OW = W + K - 1 - 2 * pad
    p = K - 1 - pad
    xp = jnp.pad(x, ((0, 0), (p, p), (p, p), (0, 0)))
    pats = jnp.stack([xp[:, kh:kh + OH, kw:kw + OW, :]
                      for kh in range(K) for kw in range(K)], axis=3)
    a = pats.reshape(1, N * OH * OW, K * K * IC)
    wf = w[:, :, ::-1, ::-1]                                    # flip spatial
    b = jnp.transpose(wf, (2, 3, 0, 1)).reshape(1, K * K * IC, OC)
    return a, b, (N, OH, OW, OC)


def _im2col_conv_s1(x, w, pad):
    """Conv2d stride=1. x: (N,H,W,IC), w: (OC,IC,K,K)."""
    N, H, W, IC = x.shape
    OC, _, K, _ = w.shape
    OH = H + 2 * pad - K + 1
    OW = W + 2 * pad - K + 1
    xp = jnp.pad(x, ((0, 0), (pad, pad), (pad, pad), (0, 0)))
    pats = jnp.stack([xp[:, kh:kh + OH, kw:kw + OW, :]
                      for kh in range(K) for kw in range(K)], axis=3)
    a = pats.reshape(1, N * OH * OW, K * K * IC)
    b = jnp.transpose(w, (2, 3, 1, 0)).reshape(1, K * K * IC, OC)
    return a, b, (N, OH, OW, OC)


def _im2col_convt_s2(x, w):
    """ConvTranspose2d(k=4, s=2, p=1) via sub-pixel phase decomposition:
    each of the 4 output phases (py, px) is a stride-1 2x2 conv of x.
    x: (N,H,W,IC), w: (IC,OC,4,4).  Returns A:(4,N*H*W,4*IC), B:(4,4*IC,OC)."""
    N, H, W, IC = x.shape
    _, OC, K, _ = w.shape
    assert K == 4
    xp = jnp.pad(x, ((0, 0), (1, 1), (1, 1), (0, 0)))
    a_list, b_list = [], []
    for py in range(2):
        for px in range(2):
            pats = jnp.stack([xp[:, py + j:py + j + H, px + i:px + i + W, :]
                              for j in range(2) for i in range(2)], axis=3)
            a_list.append(pats.reshape(N * H * W, 4 * IC))
            wk = jnp.stack([w[:, :, 3 - py - 2 * j, 3 - px - 2 * i]
                            for j in range(2) for i in range(2)], axis=0)
            b_list.append(wk.reshape(4 * IC, OC))
    a = jnp.stack(a_list, axis=0)
    b = jnp.stack(b_list, axis=0)
    return a, b, (N, 2 * H, 2 * W, OC)


def _interleave_phases(y4, n, h, w, oc):
    """y4: (4, n*h*w, oc), phase index = py*2+px -> (n, 2h, 2w, oc)."""
    y4 = y4.reshape(2, 2, n, h, w, oc)
    out = jnp.transpose(y4, (2, 3, 0, 4, 1, 5))   # (N, H, 2, W, 2, OC)
    return out.reshape(n, 2 * h, 2 * w, oc)


# ----------------------------------------------------------------------------
# fused layer: pad -> tiled matmul (+stats) -> BN apply / tanh -> strip pad
# ----------------------------------------------------------------------------
def _run_matmul_layer(a, b, oc, kind, prm, eps=1e-5):
    P, M, K = a.shape
    Cp = _round_up(oc, 128)
    tk = min(512, _round_up(K, 128))
    Kp = _round_up(K, tk)
    tm = min(512, _round_up(M, 16))
    Mp = _round_up(M, tm)
    a_p = _pad3(a, Mp, Kp).astype(jnp.bfloat16)
    b_p = _pad3(b, Kp, Cp).astype(jnp.bfloat16)

    if kind.endswith("bn_relu"):
        y, tsum, tsq = _pallas_matmul_stats(a_p, b_p, tm, tk)
        m_total = float(P * M)                      # padded rows are zero
        mean = tsum / m_total
        # clamp against E[y^2]-E[y]^2 cancellation
        var = jnp.maximum(tsq / m_total - mean * mean, 0.0)
        gamma = _pad_vec(prm["gamma"].astype(jnp.float32), Cp, 1.0)
        beta = _pad_vec(prm["beta"].astype(jnp.float32), Cp, 0.0)
        scale = gamma * jax.lax.rsqrt(var + eps)
        shift = beta - mean * scale
        act = _pallas_bn_relu(y, scale.reshape(1, Cp), shift.reshape(1, Cp), tm)
    else:  # "convt_tanh"
        act = _pallas_matmul_tanh(a_p, b_p, tm, tk)
    return act[:, :M, :oc]


# ----------------------------------------------------------------------------
# Architecture construction (mirrors DCGAN_G.__init__)
# ----------------------------------------------------------------------------
def build_arch(isize, nz, nc, ngf, n_extra_layers=0):
    assert isize % 16 == 0, "isize has to be a multiple of 16"
    cngf, tisize = ngf // 2, 4
    while tisize != isize:
        cngf *= 2
        tisize *= 2
    layers = [("convt_bn_relu", nz, cngf, 4, 1, 0)]
    csize = 4
    while csize < isize // 2:
        layers.append(("convt_bn_relu", cngf, cngf // 2, 4, 2, 1))
        cngf //= 2
        csize *= 2
    for _ in range(n_extra_layers):
        layers.append(("conv_bn_relu", cngf, cngf, 3, 1, 1))
    layers.append(("convt_tanh", cngf, nc, 4, 2, 1))
    return layers


def init_params(key, layers):
    params = []
    for (kind, ic, oc, k, _s, _p) in layers:
        key, k1, k2, k3 = jax.random.split(key, 4)
        if kind.startswith("convt"):
            w = 0.05 * jax.random.normal(k1, (ic, oc, k, k), jnp.float32)
        else:
            w = 0.05 * jax.random.normal(k1, (oc, ic, k, k), jnp.float32)
        prm = {"w": w}
        if kind.endswith("bn_relu"):
            prm["gamma"] = 1.0 + 0.1 * jax.random.normal(k2, (oc,), jnp.float32)
            prm["beta"] = 0.1 * jax.random.normal(k3, (oc,), jnp.float32)
        params.append(prm)
    return params, key


# ----------------------------------------------------------------------------
# Forward pass (Pallas) and pure-JAX reference
# ----------------------------------------------------------------------------
def dcgan_g_forward(x_nchw, layers, params):
    # TODO(synk): ngpu>1 nn.parallel.data_parallel branch is a GPU-dispatch
    # detail with no TPU-kernel equivalent; single-device path implemented.
    x = jnp.transpose(x_nchw, (0, 2, 3, 1))            # NCHW -> NHWC
    for (kind, _ic, _oc, _k, s, p), prm in zip(layers, params):
        if kind == "conv_bn_relu":
            a, b, shp = _im2col_conv_s1(x, prm["w"], p)
        elif s == 1:
            a, b, shp = _im2col_convt_s1(x, prm["w"], p)
        else:
            a, b, shp = _im2col_convt_s2(x, prm["w"])
        N, OH, OW, OC = shp
        act = _run_matmul_layer(a, b, OC, kind, prm)
        if a.shape[0] == 4:
            x = _interleave_phases(act, N, OH // 2, OW // 2, OC)
        else:
            x = act.reshape(N, OH, OW, OC)
    return jnp.transpose(x, (0, 3, 1, 2)).astype(jnp.float32)   # NHWC -> NCHW


def _ref_forward(x_nchw, layers, params, eps=1e-5):
    """Independent pure-JAX (f32, lax.conv) reference of the same module."""
    x = jnp.transpose(x_nchw, (0, 2, 3, 1))
    for (kind, _ic, _oc, k, s, p), prm in zip(layers, params):
        w = prm["w"]
        if kind.startswith("convt"):
            rhs = jnp.transpose(w[:, :, ::-1, ::-1], (2, 3, 0, 1))   # HWIO
            y = jax.lax.conv_general_dilated(
                x, rhs, window_strides=(1, 1),
                padding=[(k - 1 - p, k - 1 - p)] * 2,
                lhs_dilation=(s, s),
                dimension_numbers=("NHWC", "HWIO", "NHWC"))
        else:
            rhs = jnp.transpose(w, (2, 3, 1, 0))
            y = jax.lax.conv_general_dilated(
                x, rhs, window_strides=(s, s), padding=[(p, p)] * 2,
                dimension_numbers=("NHWC", "HWIO", "NHWC"))
        if kind.endswith("bn_relu"):
            mean = jnp.mean(y, axis=(0, 1, 2), keepdims=True)
            var = jnp.mean((y - mean) ** 2, axis=(0, 1, 2), keepdims=True)
            y = (y - mean) * jax.lax.rsqrt(var + eps) \
                * prm["gamma"].reshape(1, 1, 1, -1) \
                + prm["beta"].reshape(1, 1, 1, -1)
            y = jnp.maximum(y, 0.0)
        else:
            y = jnp.tanh(y)
        x = y
    return jnp.transpose(x, (0, 3, 1, 2))


# ----------------------------------------------------------------------------
if __name__ == "__main__":
    # Small DCGAN_G: isize=16, nz=8, nc=3, ngf=8, ngpu=1, n_extra_layers=1
    isize, nz, nc, ngf, n_extra = 16, 8, 3, 8, 1
    batch = 2

    layers = build_arch(isize, nz, nc, ngf, n_extra)
    key = jax.random.PRNGKey(0)
    params, key = init_params(key, layers)

    key, xk = jax.random.split(key)
    x = jax.random.normal(xk, (batch, nz, 1, 1), jnp.float32)   # latent noise

    fwd = jax.jit(lambda v: dcgan_g_forward(v, layers, params))
    out = jax.block_until_ready(fwd(x))
    assert out.shape == (batch, nc, isize, isize), out.shape
    assert bool(jnp.all(jnp.isfinite(out)))

    # Sanity check against an independent pure-JAX f32 reference.
    ref = jax.block_until_ready(_ref_forward(x, layers, params))
    max_diff = float(jnp.max(jnp.abs(out - ref)))
    assert bool(jnp.allclose(out, ref, atol=5e-2, rtol=5e-2)), max_diff

    print("KERNEL_OK")
</pallas_src>

<mosaic_0001>
module attributes {stable_mosaic.version = 11 : i64} {
  func.func @_bn_relu_kernel(%arg0: i32, %arg1: i32, %arg2: memref<1x32x128xbf16, #tpu.memory_space<vmem>>, %arg3: memref<1x128xf32, #tpu.memory_space<vmem>>, %arg4: memref<1x128xf32, #tpu.memory_space<vmem>>, %arg5: memref<1x32x128xbf16, #tpu.memory_space<vmem>>) attributes {dimension_semantics = [#tpu.dimension_semantics<parallel>, #tpu.dimension_semantics<parallel>], iteration_bounds = array<i64: 1, 1>, scalar_prefetch = 0 : i64, scratch_operands = 0 : i64, tpu.core_type = #tpu.core_type<tc>, window_params = [{transform_indices = @transform_0, window_bounds = array<i64: 1, 32, 128>}, {pipeline_mode = #tpu.pipeline_mode<synchronous>, transform_indices = @transform_1, window_bounds = array<i64: 1, 128>}, {pipeline_mode = #tpu.pipeline_mode<synchronous>, transform_indices = @transform_2, window_bounds = array<i64: 1, 128>}, {transform_indices = @transform_3, window_bounds = array<i64: 1, 32, 128>}]} {
    %c0 = arith.constant 0 : index
    %c0_0 = arith.constant 0 : index
    %c0_1 = arith.constant 0 : index
    %0 = vector.load %arg2[%c0, %c0_0, %c0_1] : memref<1x32x128xbf16, #tpu.memory_space<vmem>>, vector<1x32x128xbf16>
    %1 = vector.shape_cast %0 : vector<1x32x128xbf16> to vector<32x128xbf16>
    %2 = arith.extf %1 : vector<32x128xbf16> to vector<32x128xf32>
    %c0_2 = arith.constant 0 : index
    %c0_3 = arith.constant 0 : index
    %3 = vector.load %arg3[%c0_2, %c0_3] : memref<1x128xf32, #tpu.memory_space<vmem>>, vector<1x128xf32>
    %4 = vector.broadcast %3 : vector<1x128xf32> to vector<32x128xf32>
    %5 = arith.mulf %2, %4 : vector<32x128xf32>
    %c0_4 = arith.constant 0 : index
    %c0_5 = arith.constant 0 : index
    %6 = vector.load %arg4[%c0_4, %c0_5] : memref<1x128xf32, #tpu.memory_space<vmem>>, vector<1x128xf32>
    %7 = vector.broadcast %6 : vector<1x128xf32> to vector<32x128xf32>
    %8 = arith.addf %5, %7 : vector<32x128xf32>
    %cst = arith.constant 0.000000e+00 : f32
    %9 = vector.broadcast %cst : f32 to vector<32x128xf32>
    %10 = arith.maximumf %8, %9 : vector<32x128xf32>
    %11 = arith.truncf %10 : vector<32x128xf32> to vector<32x128xbf16>
    %c0_6 = arith.constant 0 : index
    %c0_7 = arith.constant 0 : index
    %c0_8 = arith.constant 0 : index
    %12 = vector.load %arg5[%c0_6, %c0_7, %c0_8] : memref<1x32x128xbf16, #tpu.memory_space<vmem>>, vector<1x32x128xbf16>
    %13 = vector.shape_cast %12 : vector<1x32x128xbf16> to vector<32x128xbf16>
    %14 = vector.shape_cast %11 : vector<32x128xbf16> to vector<1x32x128xbf16>
    tpu.vector_store %arg5[%c0_6, %c0_7, %c0_8], %14 {strides = array<i32>} : memref<1x32x128xbf16, #tpu.memory_space<vmem>>, vector<1x32x128xbf16>,
    return
  }
  func.func @transform_0(%arg0: i32, %arg1: i32) -> (i32, i32, i32) {
    %c0_i32 = arith.constant 0 : i32
    %c0_i32_0 = arith.constant 0 : i32
    return %arg0, %arg1, %c0_i32 : i32, i32, i32
  }
  func.func @transform_1(%arg0: i32, %arg1: i32) -> (i32, i32) {
    %c0_i32 = arith.constant 0 : i32
    %c0_i32_0 = arith.constant 0 : i32
    %c0_i32_1 = arith.constant 0 : i32
    return %c0_i32, %c0_i32_0 : i32, i32
  }
  func.func @transform_2(%arg0: i32, %arg1: i32) -> (i32, i32) {
    %c0_i32 = arith.constant 0 : i32
    %c0_i32_0 = arith.constant 0 : i32
    %c0_i32_1 = arith.constant 0 : i32
    return %c0_i32, %c0_i32_0 : i32, i32
  }
  func.func @transform_3(%arg0: i32, %arg1: i32) -> (i32, i32, i32) {
    %c0_i32 = arith.constant 0 : i32
    %c0_i32_0 = arith.constant 0 : i32
    return %arg0, %arg1, %c0_i32 : i32, i32, i32
  }
}

module attributes {stable_mosaic.version = 11 : i64} {
  func.func @_mm_stats_kernel(%arg0: i32, %arg1: i32, %arg2: i32, %arg3: memref<1x32x128xbf16, #tpu.memory_space<vmem>>, %arg4: memref<1x128x128xbf16, #tpu.memory_space<vmem>>, %arg5: memref<1x32x128xbf16, #tpu.memory_space<vmem>>, %arg6: memref<1x1x8x128xf32, #tpu.memory_space<vmem>>, %arg7: memref<1x1x8x128xf32, #tpu.memory_space<vmem>>, %arg8: memref<32x128xf32, #tpu.memory_space<vmem>>) attributes {dimension_semantics = [#tpu.dimension_semantics<parallel>, #tpu.dimension_semantics<parallel>, #tpu.dimension_semantics<arbitrary>], iteration_bounds = array<i64: 1, 1, 1>, scalar_prefetch = 0 : i64, scratch_operands = 1 : i64, tpu.core_type = #tpu.core_type<tc>, window_params = [{transform_indices = @transform_0, window_bounds = array<i64: 1, 32, 128>}, {transform_indices = @transform_1, window_bounds = array<i64: 1, 128, 128>}, {transform_indices = @transform_2, window_bounds = array<i64: 1, 32, 128>}, {transform_indices = @transform_3, window_bounds = array<i64: 1, 1, 8, 128>}, {transform_indices = @transform_4, window_bounds = array<i64: 1, 1, 8, 128>}]} {
    %c0_i32 = arith.constant 0 : i32
    %0 = arith.cmpi eq, %arg2, %c0_i32 : i32
    %1 = arith.extui %0 : i1 to i32
    %c0_i32_0 = arith.constant 0 : i32
    %2 = arith.cmpi ne, %1, %c0_i32_0 : i32
    scf.if %2 {
      %cst_12 = arith.constant 0.000000e+00 : f32
      %14 = vector.broadcast %cst_12 : f32 to vector<32x128xf32>
      %c0_13 = arith.constant 0 : index
      %c0_14 = arith.constant 0 : index
      %15 = vector.load %arg8[%c0_13, %c0_14] : memref<32x128xf32, #tpu.memory_space<vmem>>, vector<32x128xf32>
      tpu.vector_store %arg8[%c0_13, %c0_14], %14 {strides = array<i32>} : memref<32x128xf32, #tpu.memory_space<vmem>>, vector<32x128xf32>,
    } else {
    }
    %c0 = arith.constant 0 : index
    %c0_1 = arith.constant 0 : index
    %3 = vector.load %arg8[%c0, %c0_1] : memref<32x128xf32, #tpu.memory_space<vmem>>, vector<32x128xf32>
    %c0_2 = arith.constant 0 : index
    %c0_3 = arith.constant 0 : index
    %c0_4 = arith.constant 0 : index
    %4 = vector.load %arg3[%c0_2, %c0_3, %c0_4] : memref<1x32x128xbf16, #tpu.memory_space<vmem>>, vector<1x32x128xbf16>
    %5 = vector.shape_cast %4 : vector<1x32x128xbf16> to vector<32x128xbf16>
    %c0_5 = arith.constant 0 : index
    %c0_6 = arith.constant 0 : index
    %c0_7 = arith.constant 0 : index
    %6 = vector.load %arg4[%c0_5, %c0_6, %c0_7] : memref<1x128x128xbf16, #tpu.memory_space<vmem>>, vector<1x128x128xbf16>
    %7 = vector.shape_cast %6 : vector<1x128x128xbf16> to vector<128x128xbf16>
    %cst = arith.constant dense<0.000000e+00> : vector<32x128xf32>
    %8 = tpu.matmul %5, %7, %cst {dimension_numbers = #tpu.dot_dimension_numbers<[1], [0], [0], [1], [0, 0, 1, 1], [], []>} : vector<32x128xbf16>, vector<128x128xbf16>, vector<32x128xf32> -> vector<32x128xf32>
    %9 = arith.addf %3, %8 : vector<32x128xf32>
    %c0_8 = arith.constant 0 : index
    %c0_9 = arith.constant 0 : index
    %10 = vector.load %arg8[%c0_8, %c0_9] : memref<32x128xf32, #tpu.memory_space<vmem>>, vector<32x128xf32>
    tpu.vector_store %arg8[%c0_8, %c0_9], %9 {strides = array<i32>} : memref<32x128xf32, #tpu.memory_space<vmem>>, vector<32x128xf32>,
    %c0_i32_10 = arith.constant 0 : i32
    %11 = arith.cmpi eq, %arg2, %c0_i32_10 : i32
    %12 = arith.extui %11 : i1 to i32
    %c0_i32_11 = arith.constant 0 : i32
    %13 = arith.cmpi ne, %12, %c0_i32_11 : i32
    scf.if %13 {
      %c0_12 = arith.constant 0 : index
      %c0_13 = arith.constant 0 : index
      %14 = vector.load %arg8[%c0_12, %c0_13] : memref<32x128xf32, #tpu.memory_space<vmem>>, vector<32x128xf32>
      %15 = arith.truncf %14 : vector<32x128xf32> to vector<32x128xbf16>
      %c0_14 = arith.constant 0 : index
      %c0_15 = arith.constant 0 : index
      %c0_16 = arith.constant 0 : index
      %16 = vector.load %arg5[%c0_14, %c0_15, %c0_16] : memref<1x32x128xbf16, #tpu.memory_space<vmem>>, vector<1x32x128xbf16>
      %17 = vector.shape_cast %16 : vector<1x32x128xbf16> to vector<32x128xbf16>
      %18 = vector.shape_cast %15 : vector<32x128xbf16> to vector<1x32x128xbf16>
      tpu.vector_store %arg5[%c0_14, %c0_15, %c0_16], %18 {strides = array<i32>} : memref<1x32x128xbf16, #tpu.memory_space<vmem>>, vector<1x32x128xbf16>,
      %cst_17 = arith.constant dense<0.000000e+00> : vector<128xf32>
      %19 = vector.multi_reduction <add>, %14, %cst_17 [0] : vector<32x128xf32> to vector<128xf32>
      %20 = vector.shape_cast %19 : vector<128xf32> to vector<1x128xf32>
      %21 = arith.mulf %14, %14 : vector<32x128xf32>
      %cst_18 = arith.constant dense<0.000000e+00> : vector<128xf32>
      %22 = vector.multi_reduction <add>, %21, %cst_18 [0] : vector<32x128xf32> to vector<128xf32>
      %23 = vector.shape_cast %22 : vector<128xf32> to vector<1x128xf32>
      %24 = vector.shape_cast %20 : vector<1x128xf32> to vector<1x128xf32>
      %25 = vector.broadcast %24 : vector<1x128xf32> to vector<8x128xf32>
      %c0_19 = arith.constant 0 : index
      %c0_20 = arith.constant 0 : index
      %c0_21 = arith.constant 0 : index
      %c0_22 = arith.constant 0 : index
      %26 = vector.load %arg6[%c0_19, %c0_20, %c0_21, %c0_22] : memref<1x1x8x128xf32, #tpu.memory_space<vmem>>, vector<1x1x8x128xf32>
      %27 = vector.shape_cast %26 : vector<1x1x8x128xf32> to vector<8x128xf32>
      %28 = vector.shape_cast %25 : vector<8x128xf32> to vector<1x1x8x128xf32>
      tpu.vector_store %arg6[%c0_19, %c0_20, %c0_21, %c0_22], %28 {strides = array<i32>} : memref<1x1x8x128xf32, #tpu.memory_space<vmem>>, vector<1x1x8x128xf32>,
      %29 = vector.shape_cast %23 : vector<1x128xf32> to vector<1x128xf32>
      %30 = vector.broadcast %29 : vector<1x128xf32> to vector<8x128xf32>
      %c0_23 = arith.constant 0 : index
      %c0_24 = arith.constant 0 : index
      %c0_25 = arith.constant 0 : index
      %c0_26 = arith.constant 0 : index
      %31 = vector.load %arg7[%c0_23, %c0_24, %c0_25, %c0_26] : memref<1x1x8x128xf32, #tpu.memory_space<vmem>>, vector<1x1x8x128xf32>
      %32 = vector.shape_cast %31 : vector<1x1x8x128xf32> to vector<8x128xf32>
      %33 = vector.shape_cast %30 : vector<8x128xf32> to vector<1x1x8x128xf32>
      tpu.vector_store %arg7[%c0_23, %c0_24, %c0_25, %c0_26], %33 {strides = array<i32>} : memref<1x1x8x128xf32, #tpu.memory_space<vmem>>, vector<1x1x8x128xf32>,
    } else {
    }
    return
  }
  func.func @transform_0(%arg0: i32, %arg1: i32, %arg2: i32) -> (i32, i32, i32) {
    %c0_i32 = arith.constant 0 : i32
    return %arg0, %arg1, %arg2 : i32, i32, i32
  }
  func.func @transform_1(%arg0: i32, %arg1: i32, %arg2: i32) -> (i32, i32, i32) {
    %c0_i32 = arith.constant 0 : i32
    %c0_i32_0 = arith.constant 0 : i32
    return %arg0, %arg2, %c0_i32 : i32, i32, i32
  }
  func.func @transform_2(%arg0: i32, %arg1: i32, %arg2: i32) -> (i32, i32, i32) {
    %c0_i32 = arith.constant 0 : i32
    %c0_i32_0 = arith.constant 0 : i32
    return %arg0, %arg1, %c0_i32 : i32, i32, i32
  }
  func.func @transform_3(%arg0: i32, %arg1: i32, %arg2: i32) -> (i32, i32, i32, i32) {
    %c0_i32 = arith.constant 0 : i32
    %c0_i32_0 = arith.constant 0 : i32
    %c0_i32_1 = arith.constant 0 : i32
    return %arg0, %arg1, %c0_i32, %c0_i32_0 : i32, i32, i32, i32
  }
  func.func @transform_4(%arg0: i32, %arg1: i32, %arg2: i32) -> (i32, i32, i32, i32) {
    %c0_i32 = arith.constant 0 : i32
    %c0_i32_0 = arith.constant 0 : i32
    %c0_i32_1 = arith.constant 0 : i32
    return %arg0, %arg1, %c0_i32, %c0_i32_0 : i32, i32, i32, i32
  }
}

module attributes {stable_mosaic.version = 11 : i64} {
  func.func @_bn_relu_kernel(%arg0: i32, %arg1: i32, %arg2: memref<1x32x128xbf16, #tpu.memory_space<vmem>>, %arg3: memref<1x128xf32, #tpu.memory_space<vmem>>, %arg4: memref<1x128xf32, #tpu.memory_space<vmem>>, %arg5: memref<1x32x128xbf16, #tpu.memory_space<vmem>>) attributes {dimension_semantics = [#tpu.dimension_semantics<parallel>, #tpu.dimension_semantics<parallel>], iteration_bounds = array<i64: 4, 1>, scalar_prefetch = 0 : i64, scratch_operands = 0 : i64, tpu.core_type = #tpu.core_type<tc>, window_params = [{transform_indices = @transform_0, window_bounds = array<i64: 1, 32, 128>}, {pipeline_mode = #tpu.pipeline_mode<synchronous>, transform_indices = @transform_1, window_bounds = array<i64: 1, 128>}, {pipeline_mode = #tpu.pipeline_mode<synchronous>, transform_indices = @transform_2, window_bounds = array<i64: 1, 128>}, {transform_indices = @transform_3, window_bounds = array<i64: 1, 32, 128>}]} {
    %c0 = arith.constant 0 : index
    %c0_0 = arith.constant 0 : index
    %c0_1 = arith.constant 0 : index
    %0 = vector.load %arg2[%c0, %c0_0, %c0_1] : memref<1x32x128xbf16, #tpu.memory_space<vmem>>, vector<1x32x128xbf16>
    %1 = vector.shape_cast %0 : vector<1x32x128xbf16> to vector<32x128xbf16>
    %2 = arith.extf %1 : vector<32x128xbf16> to vector<32x128xf32>
    %c0_2 = arith.constant 0 : index
    %c0_3 = arith.constant 0 : index
    %3 = vector.load %arg3[%c0_2, %c0_3] : memref<1x128xf32, #tpu.memory_space<vmem>>, vector<1x128xf32>
    %4 = vector.broadcast %3 : vector<1x128xf32> to vector<32x128xf32>
    %5 = arith.mulf %2, %4 : vector<32x128xf32>
    %c0_4 = arith.constant 0 : index
    %c0_5 = arith.constant 0 : index
    %6 = vector.load %arg4[%c0_4, %c0_5] : memref<1x128xf32, #tpu.memory_space<vmem>>, vector<1x128xf32>
    %7 = vector.broadcast %6 : vector<1x128xf32> to vector<32x128xf32>
    %8 = arith.addf %5, %7 : vector<32x128xf32>
    %cst = arith.constant 0.000000e+00 : f32
    %9 = vector.broadcast %cst : f32 to vector<32x128xf32>
    %10 = arith.maximumf %8, %9 : vector<32x128xf32>
    %11 = arith.truncf %10 : vector<32x128xf32> to vector<32x128xbf16>
    %c0_6 = arith.constant 0 : index
    %c0_7 = arith.constant 0 : index
    %c0_8 = arith.constant 0 : index
    %12 = vector.load %arg5[%c0_6, %c0_7, %c0_8] : memref<1x32x128xbf16, #tpu.memory_space<vmem>>, vector<1x32x128xbf16>
    %13 = vector.shape_cast %12 : vector<1x32x128xbf16> to vector<32x128xbf16>
    %14 = vector.shape_cast %11 : vector<32x128xbf16> to vector<1x32x128xbf16>
    tpu.vector_store %arg5[%c0_6, %c0_7, %c0_8], %14 {strides = array<i32>} : memref<1x32x128xbf16, #tpu.memory_space<vmem>>, vector<1x32x128xbf16>,
    return
  }
  func.func @transform_0(%arg0: i32, %arg1: i32) -> (i32, i32, i32) {
    %c0_i32 = arith.constant 0 : i32
    %c0_i32_0 = arith.constant 0 : i32
    return %arg0, %arg1, %c0_i32 : i32, i32, i32
  }
  func.func @transform_1(%arg0: i32, %arg1: i32) -> (i32, i32) {
    %c0_i32 = arith.constant 0 : i32
    %c0_i32_0 = arith.constant 0 : i32
    %c0_i32_1 = arith.constant 0 : i32
    return %c0_i32, %c0_i32_0 : i32, i32
  }
  func.func @transform_2(%arg0: i32, %arg1: i32) -> (i32, i32) {
    %c0_i32 = arith.constant 0 : i32
    %c0_i32_0 = arith.constant 0 : i32
    %c0_i32_1 = arith.constant 0 : i32
    return %c0_i32, %c0_i32_0 : i32, i32
  }
  func.func @transform_3(%arg0: i32, %arg1: i32) -> (i32, i32, i32) {
    %c0_i32 = arith.constant 0 : i32
    %c0_i32_0 = arith.constant 0 : i32
    return %arg0, %arg1, %c0_i32 : i32, i32, i32
  }
}

module attributes {stable_mosaic.version = 11 : i64} {
  func.func @_mm_stats_kernel(%arg0: i32, %arg1: i32, %arg2: i32, %arg3: memref<1x32x128xbf16, #tpu.memory_space<vmem>>, %arg4: memref<1x128x128xbf16, #tpu.memory_space<vmem>>, %arg5: memref<1x32x128xbf16, #tpu.memory_space<vmem>>, %arg6: memref<1x1x8x128xf32, #tpu.memory_space<vmem>>, %arg7: memref<1x1x8x128xf32, #tpu.memory_space<vmem>>, %arg8: memref<32x128xf32, #tpu.memory_space<vmem>>) attributes {dimension_semantics = [#tpu.dimension_semantics<parallel>, #tpu.dimension_semantics<parallel>, #tpu.dimension_semantics<arbitrary>], iteration_bounds = array<i64: 4, 1, 1>, scalar_prefetch = 0 : i64, scratch_operands = 1 : i64, tpu.core_type = #tpu.core_type<tc>, window_params = [{transform_indices = @transform_0, window_bounds = array<i64: 1, 32, 128>}, {transform_indices = @transform_1, window_bounds = array<i64: 1, 128, 128>}, {transform_indices = @transform_2, window_bounds = array<i64: 1, 32, 128>}, {transform_indices = @transform_3, window_bounds = array<i64: 1, 1, 8, 128>}, {transform_indices = @transform_4, window_bounds = array<i64: 1, 1, 8, 128>}]} {
    %c0_i32 = arith.constant 0 : i32
    %0 = arith.cmpi eq, %arg2, %c0_i32 : i32
    %1 = arith.extui %0 : i1 to i32
    %c0_i32_0 = arith.constant 0 : i32
    %2 = arith.cmpi ne, %1, %c0_i32_0 : i32
    scf.if %2 {
      %cst_12 = arith.constant 0.000000e+00 : f32
      %14 = vector.broadcast %cst_12 : f32 to vector<32x128xf32>
      %c0_13 = arith.constant 0 : index
      %c0_14 = arith.constant 0 : index
      %15 = vector.load %arg8[%c0_13, %c0_14] : memref<32x128xf32, #tpu.memory_space<vmem>>, vector<32x128xf32>
      tpu.vector_store %arg8[%c0_13, %c0_14], %14 {strides = array<i32>} : memref<32x128xf32, #tpu.memory_space<vmem>>, vector<32x128xf32>,
    } else {
    }
    %c0 = arith.constant 0 : index
    %c0_1 = arith.constant 0 : index
    %3 = vector.load %arg8[%c0, %c0_1] : memref<32x128xf32, #tpu.memory_space<vmem>>, vector<32x128xf32>
    %c0_2 = arith.constant 0 : index
    %c0_3 = arith.constant 0 : index
    %c0_4 = arith.constant 0 : index
    %4 = vector.load %arg3[%c0_2, %c0_3, %c0_4] : memref<1x32x128xbf16, #tpu.memory_space<vmem>>, vector<1x32x128xbf16>
    %5 = vector.shape_cast %4 : vector<1x32x128xbf16> to vector<32x128xbf16>
    %c0_5 = arith.constant 0 : index
    %c0_6 = arith.constant 0 : index
    %c0_7 = arith.constant 0 : index
    %6 = vector.load %arg4[%c0_5, %c0_6, %c0_7] : memref<1x128x128xbf16, #tpu.memory_space<vmem>>, vector<1x128x128xbf16>
    %7 = vector.shape_cast %6 : vector<1x128x128xbf16> to vector<128x128xbf16>
    %cst = arith.constant dense<0.000000e+00> : vector<32x128xf32>
    %8 = tpu.matmul %5, %7, %cst {dimension_numbers = #tpu.dot_dimension_numbers<[1], [0], [0], [1], [0, 0, 1, 1], [], []>} : vector<32x128xbf16>, vector<128x128xbf16>, vector<32x128xf32> -> vector<32x128xf32>
    %9 = arith.addf %3, %8 : vector<32x128xf32>
    %c0_8 = arith.constant 0 : index
    %c0_9 = arith.constant 0 : index
    %10 = vector.load %arg8[%c0_8, %c0_9] : memref<32x128xf32, #tpu.memory_space<vmem>>, vector<32x128xf32>
    tpu.vector_store %arg8[%c0_8, %c0_9], %9 {strides = array<i32>} : memref<32x128xf32, #tpu.memory_space<vmem>>, vector<32x128xf32>,
    %c0_i32_10 = arith.constant 0 : i32
    %11 = arith.cmpi eq, %arg2, %c0_i32_10 : i32
    %12 = arith.extui %11 : i1 to i32
    %c0_i32_11 = arith.constant 0 : i32
    %13 = arith.cmpi ne, %12, %c0_i32_11 : i32
    scf.if %13 {
      %c0_12 = arith.constant 0 : index
      %c0_13 = arith.constant 0 : index
      %14 = vector.load %arg8[%c0_12, %c0_13] : memref<32x128xf32, #tpu.memory_space<vmem>>, vector<32x128xf32>
      %15 = arith.truncf %14 : vector<32x128xf32> to vector<32x128xbf16>
      %c0_14 = arith.constant 0 : index
      %c0_15 = arith.constant 0 : index
      %c0_16 = arith.constant 0 : index
      %16 = vector.load %arg5[%c0_14, %c0_15, %c0_16] : memref<1x32x128xbf16, #tpu.memory_space<vmem>>, vector<1x32x128xbf16>
      %17 = vector.shape_cast %16 : vector<1x32x128xbf16> to vector<32x128xbf16>
      %18 = vector.shape_cast %15 : vector<32x128xbf16> to vector<1x32x128xbf16>
      tpu.vector_store %arg5[%c0_14, %c0_15, %c0_16], %18 {strides = array<i32>} : memref<1x32x128xbf16, #tpu.memory_space<vmem>>, vector<1x32x128xbf16>,
      %cst_17 = arith.constant dense<0.000000e+00> : vector<128xf32>
      %19 = vector.multi_reduction <add>, %14, %cst_17 [0] : vector<32x128xf32> to vector<128xf32>
      %20 = vector.shape_cast %19 : vector<128xf32> to vector<1x128xf32>
      %21 = arith.mulf %14, %14 : vector<32x128xf32>
      %cst_18 = arith.constant dense<0.000000e+00> : vector<128xf32>
      %22 = vector.multi_reduction <add>, %21, %cst_18 [0] : vector<32x128xf32> to vector<128xf32>
      %23 = vector.shape_cast %22 : vector<128xf32> to vector<1x128xf32>
      %24 = vector.shape_cast %20 : vector<1x128xf32> to vector<1x128xf32>
      %25 = vector.broadcast %24 : vector<1x128xf32> to vector<8x128xf32>
      %c0_19 = arith.constant 0 : index
      %c0_20 = arith.constant 0 : index
      %c0_21 = arith.constant 0 : index
      %c0_22 = arith.constant 0 : index
      %26 = vector.load %arg6[%c0_19, %c0_20, %c0_21, %c0_22] : memref<1x1x8x128xf32, #tpu.memory_space<vmem>>, vector<1x1x8x128xf32>
      %27 = vector.shape_cast %26 : vector<1x1x8x128xf32> to vector<8x128xf32>
      %28 = vector.shape_cast %25 : vector<8x128xf32> to vector<1x1x8x128xf32>
      tpu.vector_store %arg6[%c0_19, %c0_20, %c0_21, %c0_22], %28 {strides = array<i32>} : memref<1x1x8x128xf32, #tpu.memory_space<vmem>>, vector<1x1x8x128xf32>,
      %29 = vector.shape_cast %23 : vector<1x128xf32> to vector<1x128xf32>
      %30 = vector.broadcast %29 : vector<1x128xf32> to vector<8x128xf32>
      %c0_23 = arith.constant 0 : index
      %c0_24 = arith.constant 0 : index
      %c0_25 = arith.constant 0 : index
      %c0_26 = arith.constant 0 : index
      %31 = vector.load %arg7[%c0_23, %c0_24, %c0_25, %c0_26] : memref<1x1x8x128xf32, #tpu.memory_space<vmem>>, vector<1x1x8x128xf32>
      %32 = vector.shape_cast %31 : vector<1x1x8x128xf32> to vector<8x128xf32>
      %33 = vector.shape_cast %30 : vector<8x128xf32> to vector<1x1x8x128xf32>
      tpu.vector_store %arg7[%c0_23, %c0_24, %c0_25, %c0_26], %33 {strides = array<i32>} : memref<1x1x8x128xf32, #tpu.memory_space<vmem>>, vector<1x1x8x128xf32>,
    } else {
    }
    return
  }
  func.func @transform_0(%arg0: i32, %arg1: i32, %arg2: i32) -> (i32, i32, i32) {
    %c0_i32 = arith.constant 0 : i32
    return %arg0, %arg1, %arg2 : i32, i32, i32
  }
  func.func @transform_1(%arg0: i32, %arg1: i32, %arg2: i32) -> (i32, i32, i32) {
    %c0_i32 = arith.constant 0 : i32
    %c0_i32_0 = arith.constant 0 : i32
    return %arg0, %arg2, %c0_i32 : i32, i32, i32
  }
  func.func @transform_2(%arg0: i32, %arg1: i32, %arg2: i32) -> (i32, i32, i32) {
    %c0_i32 = arith.constant 0 : i32
    %c0_i32_0 = arith.constant 0 : i32
    return %arg0, %arg1, %c0_i32 : i32, i32, i32
  }
  func.func @transform_3(%arg0: i32, %arg1: i32, %arg2: i32) -> (i32, i32, i32, i32) {
    %c0_i32 = arith.constant 0 : i32
    %c0_i32_0 = arith.constant 0 : i32
    %c0_i32_1 = arith.constant 0 : i32
    return %arg0, %arg1, %c0_i32, %c0_i32_0 : i32, i32, i32, i32
  }
  func.func @transform_4(%arg0: i32, %arg1: i32, %arg2: i32) -> (i32, i32, i32, i32) {
    %c0_i32 = arith.constant 0 : i32
    %c0_i32_0 = arith.constant 0 : i32
    %c0_i32_1 = arith.constant 0 : i32
    return %arg0, %arg1, %c0_i32, %c0_i32_0 : i32, i32, i32, i32
  }
}

module attributes {stable_mosaic.version = 11 : i64} {
  func.func @_mm_stats_kernel(%arg0: i32, %arg1: i32, %arg2: i32, %arg3: memref<1x128x128xbf16, #tpu.memory_space<vmem>>, %arg4: memref<1x128x128xbf16, #tpu.memory_space<vmem>>, %arg5: memref<1x128x128xbf16, #tpu.memory_space<vmem>>, %arg6: memref<1x1x8x128xf32, #tpu.memory_space<vmem>>, %arg7: memref<1x1x8x128xf32, #tpu.memory_space<vmem>>, %arg8: memref<128x128xf32, #tpu.memory_space<vmem>>) attributes {dimension_semantics = [#tpu.dimension_semantics<parallel>, #tpu.dimension_semantics<parallel>, #tpu.dimension_semantics<arbitrary>], iteration_bounds = array<i64: 1, 1, 1>, scalar_prefetch = 0 : i64, scratch_operands = 1 : i64, tpu.core_type = #tpu.core_type<tc>, window_params = [{transform_indices = @transform_0, window_bounds = array<i64: 1, 128, 128>}, {transform_indices = @transform_1, window_bounds = array<i64: 1, 128, 128>}, {transform_indices = @transform_2, window_bounds = array<i64: 1, 128, 128>}, {transform_indices = @transform_3, window_bounds = array<i64: 1, 1, 8, 128>}, {transform_indices = @transform_4, window_bounds = array<i64: 1, 1, 8, 128>}]} {
    %c0_i32 = arith.constant 0 : i32
    %0 = arith.cmpi eq, %arg2, %c0_i32 : i32
    %1 = arith.extui %0 : i1 to i32
    %c0_i32_0 = arith.constant 0 : i32
    %2 = arith.cmpi ne, %1, %c0_i32_0 : i32
    scf.if %2 {
      %cst_12 = arith.constant 0.000000e+00 : f32
      %14 = vector.broadcast %cst_12 : f32 to vector<128x128xf32>
      %c0_13 = arith.constant 0 : index
      %c0_14 = arith.constant 0 : index
      %15 = vector.load %arg8[%c0_13, %c0_14] : memref<128x128xf32, #tpu.memory_space<vmem>>, vector<128x128xf32>
      tpu.vector_store %arg8[%c0_13, %c0_14], %14 {strides = array<i32>} : memref<128x128xf32, #tpu.memory_space<vmem>>, vector<128x128xf32>,
    } else {
    }
    %c0 = arith.constant 0 : index
    %c0_1 = arith.constant 0 : index
    %3 = vector.load %arg8[%c0, %c0_1] : memref<128x128xf32, #tpu.memory_space<vmem>>, vector<128x128xf32>
    %c0_2 = arith.constant 0 : index
    %c0_3 = arith.constant 0 : index
    %c0_4 = arith.constant 0 : index
    %4 = vector.load %arg3[%c0_2, %c0_3, %c0_4] : memref<1x128x128xbf16, #tpu.memory_space<vmem>>, vector<1x128x128xbf16>
    %5 = vector.shape_cast %4 : vector<1x128x128xbf16> to vector<128x128xbf16>
    %c0_5 = arith.constant 0 : index
    %c0_6 = arith.constant 0 : index
    %c0_7 = arith.constant 0 : index
    %6 = vector.load %arg4[%c0_5, %c0_6, %c0_7] : memref<1x128x128xbf16, #tpu.memory_space<vmem>>, vector<1x128x128xbf16>
    %7 = vector.shape_cast %6 : vector<1x128x128xbf16> to vector<128x128xbf16>
    %cst = arith.constant dense<0.000000e+00> : vector<128x128xf32>
    %8 = tpu.matmul %5, %7, %cst {dimension_numbers = #tpu.dot_dimension_numbers<[1], [0], [0], [1], [0, 0, 1, 1], [], []>} : vector<128x128xbf16>, vector<128x128xbf16>, vector<128x128xf32> -> vector<128x128xf32>
    %9 = arith.addf %3, %8 : vector<128x128xf32>
    %c0_8 = arith.constant 0 : index
    %c0_9 = arith.constant 0 : index
    %10 = vector.load %arg8[%c0_8, %c0_9] : memref<128x128xf32, #tpu.memory_space<vmem>>, vector<128x128xf32>
    tpu.vector_store %arg8[%c0_8, %c0_9], %9 {strides = array<i32>} : memref<128x128xf32, #tpu.memory_space<vmem>>, vector<128x128xf32>,
    %c0_i32_10 = arith.constant 0 : i32
    %11 = arith.cmpi eq, %arg2, %c0_i32_10 : i32
    %12 = arith.extui %11 : i1 to i32
    %c0_i32_11 = arith.constant 0 : i32
    %13 = arith.cmpi ne, %12, %c0_i32_11 : i32
    scf.if %13 {
      %c0_12 = arith.constant 0 : index
      %c0_13 = arith.constant 0 : index
      %14 = vector.load %arg8[%c0_12, %c0_13] : memref<128x128xf32, #tpu.memory_space<vmem>>, vector<128x128xf32>
      %15 = arith.truncf %14 : vector<128x128xf32> to vector<128x128xbf16>
      %c0_14 = arith.constant 0 : index
      %c0_15 = arith.constant 0 : index
      %c0_16 = arith.constant 0 : index
      %16 = vector.load %arg5[%c0_14, %c0_15, %c0_16] : memref<1x128x128xbf16, #tpu.memory_space<vmem>>, vector<1x128x128xbf16>
      %17 = vector.shape_cast %16 : vector<1x128x128xbf16> to vector<128x128xbf16>
      %18 = vector.shape_cast %15 : vector<128x128xbf16> to vector<1x128x128xbf16>
      tpu.vector_store %arg5[%c0_14, %c0_15, %c0_16], %18 {strides = array<i32>} : memref<1x128x128xbf16, #tpu.memory_space<vmem>>, vector<1x128x128xbf16>,
      %cst_17 = arith.constant dense<0.000000e+00> : vector<128xf32>
      %19 = vector.multi_reduction <add>, %14, %cst_17 [0] : vector<128x128xf32> to vector<128xf32>
      %20 = vector.shape_cast %19 : vector<128xf32> to vector<1x128xf32>
      %21 = arith.mulf %14, %14 : vector<128x128xf32>
      %cst_18 = arith.constant dense<0.000000e+00> : vector<128xf32>
      %22 = vector.multi_reduction <add>, %21, %cst_18 [0] : vector<128x128xf32> to vector<128xf32>
      %23 = vector.shape_cast %22 : vector<128xf32> to vector<1x128xf32>
      %24 = vector.shape_cast %20 : vector<1x128xf32> to vector<1x128xf32>
      %25 = vector.broadcast %24 : vector<1x128xf32> to vector<8x128xf32>
      %c0_19 = arith.constant 0 : index
      %c0_20 = arith.constant 0 : index
      %c0_21 = arith.constant 0 : index
      %c0_22 = arith.constant 0 : index
      %26 = vector.load %arg6[%c0_19, %c0_20, %c0_21, %c0_22] : memref<1x1x8x128xf32, #tpu.memory_space<vmem>>, vector<1x1x8x128xf32>
      %27 = vector.shape_cast %26 : vector<1x1x8x128xf32> to vector<8x128xf32>
      %28 = vector.shape_cast %25 : vector<8x128xf32> to vector<1x1x8x128xf32>
      tpu.vector_store %arg6[%c0_19, %c0_20, %c0_21, %c0_22], %28 {strides = array<i32>} : memref<1x1x8x128xf32, #tpu.memory_space<vmem>>, vector<1x1x8x128xf32>,
      %29 = vector.shape_cast %23 : vector<1x128xf32> to vector<1x128xf32>
      %30 = vector.broadcast %29 : vector<1x128xf32> to vector<8x128xf32>
      %c0_23 = arith.constant 0 : index
      %c0_24 = arith.constant 0 : index
      %c0_25 = arith.constant 0 : index
      %c0_26 = arith.constant 0 : index
      %31 = vector.load %arg7[%c0_23, %c0_24, %c0_25, %c0_26] : memref<1x1x8x128xf32, #tpu.memory_space<vmem>>, vector<1x1x8x128xf32>
      %32 = vector.shape_cast %31 : vector<1x1x8x128xf32> to vector<8x128xf32>
      %33 = vector.shape_cast %30 : vector<8x128xf32> to vector<1x1x8x128xf32>
      tpu.vector_store %arg7[%c0_23, %c0_24, %c0_25, %c0_26], %33 {strides = array<i32>} : memref<1x1x8x128xf32, #tpu.memory_space<vmem>>, vector<1x1x8x128xf32>,
    } else {
    }
    return
  }
  func.func @transform_0(%arg0: i32, %arg1: i32, %arg2: i32) -> (i32, i32, i32) {
    %c0_i32 = arith.constant 0 : i32
    return %arg0, %arg1, %arg2 : i32, i32, i32
  }
  func.func @transform_1(%arg0: i32, %arg1: i32, %arg2: i32) -> (i32, i32, i32) {
    %c0_i32 = arith.constant 0 : i32
    %c0_i32_0 = arith.constant 0 : i32
    return %arg0, %arg2, %c0_i32 : i32, i32, i32
  }
  func.func @transform_2(%arg0: i32, %arg1: i32, %arg2: i32) -> (i32, i32, i32) {
    %c0_i32 = arith.constant 0 : i32
    %c0_i32_0 = arith.constant 0 : i32
    return %arg0, %arg1, %c0_i32 : i32, i32, i32
  }
  func.func @transform_3(%arg0: i32, %arg1: i32, %arg2: i32) -> (i32, i32, i32, i32) {
    %c0_i32 = arith.constant 0 : i32
    %c0_i32_0 = arith.constant 0 : i32
    %c0_i32_1 = arith.constant 0 : i32
    return %arg0, %arg1, %c0_i32, %c0_i32_0 : i32, i32, i32, i32
  }
  func.func @transform_4(%arg0: i32, %arg1: i32, %arg2: i32) -> (i32, i32, i32, i32) {
    %c0_i32 = arith.constant 0 : i32
    %c0_i32_0 = arith.constant 0 : i32
    %c0_i32_1 = arith.constant 0 : i32
    return %arg0, %arg1, %c0_i32, %c0_i32_0 : i32, i32, i32, i32
  }
}

module attributes {stable_mosaic.version = 11 : i64} {
  func.func @_bn_relu_kernel(%arg0: i32, %arg1: i32, %arg2: memref<1x128x128xbf16, #tpu.memory_space<vmem>>, %arg3: memref<1x128xf32, #tpu.memory_space<vmem>>, %arg4: memref<1x128xf32, #tpu.memory_space<vmem>>, %arg5: memref<1x128x128xbf16, #tpu.memory_space<vmem>>) attributes {dimension_semantics = [#tpu.dimension_semantics<parallel>, #tpu.dimension_semantics<parallel>], iteration_bounds = array<i64: 1, 1>, scalar_prefetch = 0 : i64, scratch_operands = 0 : i64, tpu.core_type = #tpu.core_type<tc>, window_params = [{transform_indices = @transform_0, window_bounds = array<i64: 1, 128, 128>}, {pipeline_mode = #tpu.pipeline_mode<synchronous>, transform_indices = @transform_1, window_bounds = array<i64: 1, 128>}, {pipeline_mode = #tpu.pipeline_mode<synchronous>, transform_indices = @transform_2, window_bounds = array<i64: 1, 128>}, {transform_indices = @transform_3, window_bounds = array<i64: 1, 128, 128>}]} {
    %c0 = arith.constant 0 : index
    %c0_0 = arith.constant 0 : index
    %c0_1 = arith.constant 0 : index
    %0 = vector.load %arg2[%c0, %c0_0, %c0_1] : memref<1x128x128xbf16, #tpu.memory_space<vmem>>, vector<1x128x128xbf16>
    %1 = vector.shape_cast %0 : vector<1x128x128xbf16> to vector<128x128xbf16>
    %2 = arith.extf %1 : vector<128x128xbf16> to vector<128x128xf32>
    %c0_2 = arith.constant 0 : index
    %c0_3 = arith.constant 0 : index
    %3 = vector.load %arg3[%c0_2, %c0_3] : memref<1x128xf32, #tpu.memory_space<vmem>>, vector<1x128xf32>
    %4 = vector.broadcast %3 : vector<1x128xf32> to vector<128x128xf32>
    %5 = arith.mulf %2, %4 : vector<128x128xf32>
    %c0_4 = arith.constant 0 : index
    %c0_5 = arith.constant 0 : index
    %6 = vector.load %arg4[%c0_4, %c0_5] : memref<1x128xf32, #tpu.memory_space<vmem>>, vector<1x128xf32>
    %7 = vector.broadcast %6 : vector<1x128xf32> to vector<128x128xf32>
    %8 = arith.addf %5, %7 : vector<128x128xf32>
    %cst = arith.constant 0.000000e+00 : f32
    %9 = vector.broadcast %cst : f32 to vector<128x128xf32>
    %10 = arith.maximumf %8, %9 : vector<128x128xf32>
    %11 = arith.truncf %10 : vector<128x128xf32> to vector<128x128xbf16>
    %c0_6 = arith.constant 0 : index
    %c0_7 = arith.constant 0 : index
    %c0_8 = arith.constant 0 : index
    %12 = vector.load %arg5[%c0_6, %c0_7, %c0_8] : memref<1x128x128xbf16, #tpu.memory_space<vmem>>, vector<1x128x128xbf16>
    %13 = vector.shape_cast %12 : vector<1x128x128xbf16> to vector<128x128xbf16>
    %14 = vector.shape_cast %11 : vector<128x128xbf16> to vector<1x128x128xbf16>
    tpu.vector_store %arg5[%c0_6, %c0_7, %c0_8], %14 {strides = array<i32>} : memref<1x128x128xbf16, #tpu.memory_space<vmem>>, vector<1x128x128xbf16>,
    return
  }
  func.func @transform_0(%arg0: i32, %arg1: i32) -> (i32, i32, i32) {
    %c0_i32 = arith.constant 0 : i32
    %c0_i32_0 = arith.constant 0 : i32
    return %arg0, %arg1, %c0_i32 : i32, i32, i32
  }
  func.func @transform_1(%arg0: i32, %arg1: i32) -> (i32, i32) {
    %c0_i32 = arith.constant 0 : i32
    %c0_i32_0 = arith.constant 0 : i32
    %c0_i32_1 = arith.constant 0 : i32
    return %c0_i32, %c0_i32_0 : i32, i32
  }
  func.func @transform_2(%arg0: i32, %arg1: i32) -> (i32, i32) {
    %c0_i32 = arith.constant 0 : i32
    %c0_i32_0 = arith.constant 0 : i32
    %c0_i32_1 = arith.constant 0 : i32
    return %c0_i32, %c0_i32_0 : i32, i32
  }
  func.func @transform_3(%arg0: i32, %arg1: i32) -> (i32, i32, i32) {
    %c0_i32 = arith.constant 0 : i32
    %c0_i32_0 = arith.constant 0 : i32
    return %arg0, %arg1, %c0_i32 : i32, i32, i32
  }
}

module attributes {stable_mosaic.version = 11 : i64} {
  func.func @_mm_tanh_kernel(%arg0: i32, %arg1: i32, %arg2: i32, %arg3: memref<1x128x128xbf16, #tpu.memory_space<vmem>>, %arg4: memref<1x128x128xbf16, #tpu.memory_space<vmem>>, %arg5: memref<1x128x128xf32, #tpu.memory_space<vmem>>, %arg6: memref<128x128xf32, #tpu.memory_space<vmem>>) attributes {dimension_semantics = [#tpu.dimension_semantics<parallel>, #tpu.dimension_semantics<parallel>, #tpu.dimension_semantics<arbitrary>], iteration_bounds = array<i64: 4, 1, 1>, scalar_prefetch = 0 : i64, scratch_operands = 1 : i64, tpu.core_type = #tpu.core_type<tc>, window_params = [{transform_indices = @transform_0, window_bounds = array<i64: 1, 128, 128>}, {transform_indices = @transform_1, window_bounds = array<i64: 1, 128, 128>}, {transform_indices = @transform_2, window_bounds = array<i64: 1, 128, 128>}]} {
    %c0_i32 = arith.constant 0 : i32
    %0 = arith.cmpi eq, %arg2, %c0_i32 : i32
    %1 = arith.extui %0 : i1 to i32
    %c0_i32_0 = arith.constant 0 : i32
    %2 = arith.cmpi ne, %1, %c0_i32_0 : i32
    scf.if %2 {
      %cst_12 = arith.constant 0.000000e+00 : f32
      %14 = vector.broadcast %cst_12 : f32 to vector<128x128xf32>
      %c0_13 = arith.constant 0 : index
      %c0_14 = arith.constant 0 : index
      %15 = vector.load %arg6[%c0_13, %c0_14] : memref<128x128xf32, #tpu.memory_space<vmem>>, vector<128x128xf32>
      tpu.vector_store %arg6[%c0_13, %c0_14], %14 {strides = array<i32>} : memref<128x128xf32, #tpu.memory_space<vmem>>, vector<128x128xf32>,
    } else {
    }
    %c0 = arith.constant 0 : index
    %c0_1 = arith.constant 0 : index
    %3 = vector.load %arg6[%c0, %c0_1] : memref<128x128xf32, #tpu.memory_space<vmem>>, vector<128x128xf32>
    %c0_2 = arith.constant 0 : index
    %c0_3 = arith.constant 0 : index
    %c0_4 = arith.constant 0 : index
    %4 = vector.load %arg3[%c0_2, %c0_3, %c0_4] : memref<1x128x128xbf16, #tpu.memory_space<vmem>>, vector<1x128x128xbf16>
    %5 = vector.shape_cast %4 : vector<1x128x128xbf16> to vector<128x128xbf16>
    %c0_5 = arith.constant 0 : index
    %c0_6 = arith.constant 0 : index
    %c0_7 = arith.constant 0 : index
    %6 = vector.load %arg4[%c0_5, %c0_6, %c0_7] : memref<1x128x128xbf16, #tpu.memory_space<vmem>>, vector<1x128x128xbf16>
    %7 = vector.shape_cast %6 : vector<1x128x128xbf16> to vector<128x128xbf16>
    %cst = arith.constant dense<0.000000e+00> : vector<128x128xf32>
    %8 = tpu.matmul %5, %7, %cst {dimension_numbers = #tpu.dot_dimension_numbers<[1], [0], [0], [1], [0, 0, 1, 1], [], []>} : vector<128x128xbf16>, vector<128x128xbf16>, vector<128x128xf32> -> vector<128x128xf32>
    %9 = arith.addf %3, %8 : vector<128x128xf32>
    %c0_8 = arith.constant 0 : index
    %c0_9 = arith.constant 0 : index
    %10 = vector.load %arg6[%c0_8, %c0_9] : memref<128x128xf32, #tpu.memory_space<vmem>>, vector<128x128xf32>
    tpu.vector_store %arg6[%c0_8, %c0_9], %9 {strides = array<i32>} : memref<128x128xf32, #tpu.memory_space<vmem>>, vector<128x128xf32>,
    %c0_i32_10 = arith.constant 0 : i32
    %11 = arith.cmpi eq, %arg2, %c0_i32_10 : i32
    %12 = arith.extui %11 : i1 to i32
    %c0_i32_11 = arith.constant 0 : i32
    %13 = arith.cmpi ne, %12, %c0_i32_11 : i32
    scf.if %13 {
      %c0_12 = arith.constant 0 : index
      %c0_13 = arith.constant 0 : index
      %14 = vector.load %arg6[%c0_12, %c0_13] : memref<128x128xf32, #tpu.memory_space<vmem>>, vector<128x128xf32>
      %15 = math.tanh %14 : vector<128x128xf32>
      %c0_14 = arith.constant 0 : index
      %c0_15 = arith.constant 0 : index
      %c0_16 = arith.constant 0 : index
      %16 = vector.load %arg5[%c0_14, %c0_15, %c0_16] : memref<1x128x128xf32, #tpu.memory_space<vmem>>, vector<1x128x128xf32>
      %17 = vector.shape_cast %16 : vector<1x128x128xf32> to vector<128x128xf32>
      %18 = vector.shape_cast %15 : vector<128x128xf32> to vector<1x128x128xf32>
      tpu.vector_store %arg5[%c0_14, %c0_15, %c0_16], %18 {strides = array<i32>} : memref<1x128x128xf32, #tpu.memory_space<vmem>>, vector<1x128x128xf32>,
    } else {
    }
    return
  }
  func.func @transform_0(%arg0: i32, %arg1: i32, %arg2: i32) -> (i32, i32, i32) {
    %c0_i32 = arith.constant 0 : i32
    return %arg0, %arg1, %arg2 : i32, i32, i32
  }
  func.func @transform_1(%arg0: i32, %arg1: i32, %arg2: i32) -> (i32, i32, i32) {
    %c0_i32 = arith.constant 0 : i32
    %c0_i32_0 = arith.constant 0 : i32
    return %arg0, %arg2, %c0_i32 : i32, i32, i32
  }
  func.func @transform_2(%arg0: i32, %arg1: i32, %arg2: i32) -> (i32, i32, i32) {
    %c0_i32 = arith.constant 0 : i32
    %c0_i32_0 = arith.constant 0 : i32
    return %arg0, %arg1, %c0_i32 : i32, i32, i32
  }
}

</mosaic_0001>

<llo_original>
// kernel: _lambda_.8
$region0: #{_lambda_.8}
  #allocation0 [shape = 'u32[]', space=smem, size = 0x4, offset = 0x4, fixed_abs, tag = 'smem constant byte address 0x4 - core index']
  #allocation1 [shape = 'u32[144,128]{1,0:T(1,128)}', space=vmem, size = 0x12000, scoped, tag = 'internal scratch']
  %s0 = inlined_call_operand.vmem [shape: bf16[1,32,128], index: 0, kind: input, shape index: {}]
  %s1 = inlined_call_operand.vmem [shape: f32[1,128], index: 1, kind: input, shape index: {}]
  %s2 = inlined_call_operand.vmem [shape: f32[1,128], index: 2, kind: input, shape index: {}]
  %s3 = inlined_call_operand.vmem [shape: bf16[1,32,128], index: 3, kind: output, shape index: {}]
  %s4 = sld [smem:[#allocation0]]
  $region22: #{_lambda_.8} parent=0
    _
  %s6 = ssub.s32 1, %s4
  %s7 = scalar_select 0, %s6, %s4
  // Predicated region
  $region2: #{_lambda_.8} parent=0 // pred_check
    _
  $region3: #{_lambda_.8} parent=0 // pred_check_branch
    %9 = sbr.rel (0) target = $region5
  $region4: #{_lambda_.8} parent=0 // pred_region
    _
  $region5: #{_lambda_.8} parent=0 // pred_fallthru
    _
  // Predicated region
  $region6: #{_lambda_.8} parent=0 // pred_check
    _
  $region7: #{_lambda_.8} parent=0 // pred_check_branch
    %11 = sbr.rel (0) target = $region9
  $region8: #{_lambda_.8} parent=0 // pred_region
    _
  $region9: #{_lambda_.8} parent=0 // pred_fallthru
    _
  // Predicated region
  $region10: #{_lambda_.8} parent=0 // pred_check
    _
  $region11: #{_lambda_.8} parent=0 // pred_check_branch
    %13 = sbr.rel (0) target = $region13
  $region12: #{_lambda_.8} parent=0 // pred_region
    _
  $region13: #{_lambda_.8} parent=0 // pred_fallthru
    _
  %v14 = vld [vmem:[%s0] sm:$0xf]
  %v15 = vld [vmem:[%s0 + $0x4] sm:$0xf]
  %v16 = vld [vmem:[%s0 + $0x8] sm:$0xf]
  %v17 = vld [vmem:[%s0 + $0xc] sm:$0xf]
  %v18 = vunpack.c.l.bf16 %v14
  %v19 = vunpack.c.l.bf16 %v15
  %v20 = vunpack.c.l.bf16 %v16
  %v21 = vunpack.c.l.bf16 %v17
  %v22 = vld [vmem:[%s1] sm:$0x1]
  %v24 = vlaneseq
  %v25 = vshrl.u32 %v24, 7
  %v26 = vsub.s32 0, %v25
  %v27 = vrot.slane %v22, %v26
  %v29 = vmul.f32 %v18, %v27
  %v30 = vmul.f32 %v19, %v27
  %v31 = vmul.f32 %v20, %v27
  %v32 = vmul.f32 %v21, %v27
  %v33 = vld [vmem:[%s2] sm:$0x1]
  %v35 = vlaneseq
  %v36 = vshrl.u32 %v35, 7
  %v37 = vsub.s32 0, %v36
  %v38 = vrot.slane %v33, %v37
  %v40 = vadd.f32 %v29, %v38
  %v41 = vadd.f32 %v30, %v38
  %v42 = vadd.f32 %v31, %v38
  %v43 = vadd.f32 %v32, %v38
  %v44 = vmax.f32 %v40, 0.0
  %v45 = vmax.f32 %v41, 0.0
  %v46 = vmax.f32 %v42, 0.0
  %v47 = vmax.f32 %v43, 0.0
  %v48 = vpack.c.bf16 %v45, %v44
  %v49 = vpack.c.bf16 %v47, %v46
  %v52 = vunpack.c.l.b16 %v48
  %v53 = vunpack.c.h.b16 %v48
  %v54 = vunpack.c.l.b16 %v49
  %v55 = vunpack.c.h.b16 %v49
  %v56 = vpack.c.b16 %v52, %v52
  %v57 = vpack.c.b16 %v53, %v53
  %v58 = vpack.c.b16 %v54, %v54
  %v59 = vpack.c.b16 %v55, %v55
  %64 = vst [vmem:[%s3] sm:$0xf] %v56
  %65 = vst [vmem:[%s3 + $0x4] sm:$0xf] %v57
  %66 = vst [vmem:[%s3 + $0x8] sm:$0xf] %v58
  %67 = vst [vmem:[%s3 + $0xc] sm:$0xf] %v59
  // Predicated region
  $region14: #{_lambda_.8} parent=0 // pred_check
    _
  $region15: #{_lambda_.8} parent=0 // pred_check_branch
    %69 = sbr.rel (0) target = $region17
  $region16: #{_lambda_.8} parent=0 // pred_region
    _
  $region17: #{_lambda_.8} parent=0 // pred_fallthru
    _
  // Predicated region
  $region18: #{_lambda_.8} parent=0 // pred_check
    _
  $region19: #{_lambda_.8} parent=0 // pred_check_branch
    %71 = sbr.rel (0) target = $region21
  $region20: #{_lambda_.8} parent=0 // pred_region
    _
  $region21: #{_lambda_.8} parent=0 // pred_fallthru
    _

// kernel: _lambda_.7
$region0: #{_lambda_.7}
  #allocation0 [shape = 'u32[]', space=smem, size = 0x4, offset = 0x4, fixed_abs, tag = 'smem constant byte address 0x4 - core index']
  #allocation1 [shape = 'u32[144,128]{1,0:T(1,128)}', space=vmem, size = 0x12000, scoped, tag = 'internal scratch']
  #allocation2 [shape = 'f32[32,128]{1,0:T(8,128)}', space=vmem, size = 0x4000, scoped, tag = 'scratch operand']
  %s0 = inlined_call_operand.vmem [shape: bf16[1,32,128], index: 0, kind: input, shape index: {}]
  %s1 = inlined_call_operand.vmem [shape: bf16[1,128,128], index: 1, kind: input, shape index: {}]
  %s2 = inlined_call_operand.vmem [shape: bf16[1,32,128], index: 2, kind: output, shape index: {0}]
  %s3 = inlined_call_operand.vmem [shape: f32[1,1,8,128], index: 3, kind: output, shape index: {1}]
  %s4 = inlined_call_operand.vmem [shape: f32[1,1,8,128], index: 4, kind: output, shape index: {2}]
  %5 = xla_tuple %s2, %s3, %s4
  %s6 = sld [smem:[#allocation0]]
  $region42: #{_lambda_.7} parent=0
    _
  %s8 = ssub.s32 1, %s6
  %s9 = scalar_select 0, %s8, %s6
  // Predicated region
  $region2: #{_lambda_.7} parent=0 // pred_check
    _
  $region3: #{_lambda_.7} parent=0 // pred_check_branch
    %11 = sbr.rel (0) target = $region5
  $region4: #{_lambda_.7} parent=0 // pred_region
    _
  $region5: #{_lambda_.7} parent=0 // pred_fallthru
    _
  // Predicated region
  $region6: #{_lambda_.7} parent=0 // pred_check
    _
  $region7: #{_lambda_.7} parent=0 // pred_check_branch
    %13 = sbr.rel (0) target = $region9
  $region8: #{_lambda_.7} parent=0 // pred_region
    _
  $region9: #{_lambda_.7} parent=0 // pred_fallthru
    _
  %p15 = scmp.eq.s32.totalorder 0, 0
  // Predicated region
  $region10: #{_lambda_.7} parent=0 // pred_check
    %p16 = pneg %p15
  $region11: #{_lambda_.7} parent=0 // pred_check_branch
    %18 = sbr.rel (%p16) target = $region13
  $region12: #{_lambda_.7} parent=0 // pred_region
    %19 = vst [vmem:[#allocation2] sm:$0xff] 0.0
    %20 = vst [vmem:[#allocation2 + $0x8] sm:$0xff] 0.0
    %21 = vst [vmem:[#allocation2 + $0x10] sm:$0xff] 0.0
    %22 = vst [vmem:[#allocation2 + $0x18] sm:$0xff] 0.0
  $region13: #{_lambda_.7} parent=0 // pred_fallthru
    _
  %v23 = vld [vmem:[#allocation2] sm:$0xff]
  %v24 = vld [vmem:[#allocation2 + $0x8] sm:$0xff]
  %v25 = vld [vmem:[#allocation2 + $0x10] sm:$0xff]
  %v26 = vld [vmem:[#allocation2 + $0x18] sm:$0xff]
  %v27 = vld [vmem:[%s0] sm:$0xf]
  %v28 = vld [vmem:[%s0 + $0x4] sm:$0xf]
  %v29 = vld [vmem:[%s0 + $0x8] sm:$0xf]
  %v30 = vld [vmem:[%s0 + $0xc] sm:$0xf]
  %v31 = vld [vmem:[%s1] sm:$0xf]
  %v32 = vld [vmem:[%s1 + $0x4] sm:$0xf]
  %v33 = vld [vmem:[%s1 + $0x8] sm:$0xf]
  %v34 = vld [vmem:[%s1 + $0xc] sm:$0xf]
  %v35 = vld [vmem:[%s1 + $0x10] sm:$0xf]
  %v36 = vld [vmem:[%s1 + $0x14] sm:$0xf]
  %v37 = vld [vmem:[%s1 + $0x18] sm:$0xf]
  %v38 = vld [vmem:[%s1 + $0x1c] sm:$0xf]
  %v39 = vld [vmem:[%s1 + $0x20] sm:$0xf]
  %v40 = vld [vmem:[%s1 + $0x24] sm:$0xf]
  %v41 = vld [vmem:[%s1 + $0x28] sm:$0xf]
  %v42 = vld [vmem:[%s1 + $0x2c] sm:$0xf]
  %v43 = vld [vmem:[%s1 + $0x30] sm:$0xf]
  %v44 = vld [vmem:[%s1 + $0x34] sm:$0xf]
  %v45 = vld [vmem:[%s1 + $0x38] sm:$0xf]
  %v46 = vld [vmem:[%s1 + $0x3c] sm:$0xf]
  %v51 = vunpack.c.l.b16 %v27
  %v52 = vunpack.c.l.b16 %v28
  %v53 = vunpack.c.l.b16 %v29
  %v54 = vunpack.c.l.b16 %v30
  %v55 = vpack.c.b16 %v52, %v51
  %v56 = vpack.c.b16 %v54, %v53
  %v75 = vunpack.c.l.b16 %v31
  %v76 = vunpack.c.l.b16 %v32
  %v77 = vunpack.c.l.b16 %v33
  %v78 = vunpack.c.l.b16 %v34
  %v79 = vunpack.c.l.b16 %v35
  %v80 = vunpack.c.l.b16 %v36
  %v81 = vunpack.c.l.b16 %v37
  %v82 = vunpack.c.l.b16 %v38
  %v83 = vunpack.c.l.b16 %v39
  %v84 = vunpack.c.l.b16 %v40
  %v85 = vunpack.c.l.b16 %v41
  %v86 = vunpack.c.l.b16 %v42
  %v87 = vunpack.c.l.b16 %v43
  %v88 = vunpack.c.l.b16 %v44
  %v89 = vunpack.c.l.b16 %v45
  %v90 = vunpack.c.l.b16 %v46
  %v91 = vpack.c.b16 %v76, %v75
  %v92 = vpack.c.b16 %v78, %v77
  %v93 = vpack.c.b16 %v80, %v79
  %v94 = vpack.c.b16 %v82, %v81
  %v95 = vpack.c.b16 %v84, %v83
  %v96 = vpack.c.b16 %v86, %v85
  %v97 = vpack.c.b16 %v88, %v87
  %v98 = vpack.c.b16 %v90, %v89
  %107 = vmatprep.subr.bf16.mxu0 0
  %108 = vmatpush1.bf16.msra.mxu0 %v91
  %109 = vmatprep.subr.bf16.mxu0 0
  %110 = vmatpush1.bf16.msra.mxu0 %v92
  %111 = vmatprep.subr.bf16.mxu0 0
  %112 = vmatpush1.bf16.msra.mxu0 %v93
  %113 = vmatprep.subr.bf16.mxu0 0
  %114 = vmatpush1.bf16.msra.mxu0 %v94
  %115 = vmatprep.subr.bf16.mxu0 0
  %116 = vmatpush1.bf16.msra.mxu0 %v95
  %117 = vmatprep.subr.bf16.mxu0 0
  %118 = vmatpush1.bf16.msra.mxu0 %v96
  %119 = vmatprep.subr.bf16.mxu0 0
  %120 = vmatpush1.bf16.msra.mxu0 %v97
  %121 = vmatprep.subr.bf16.mxu0 0
  %122 = vmatpush1.bf16.msra.mxu0 %v98
  %123 = vmatprep.subr.bf16.mxu0 0
  %124 = vmatpush1.bf16.msra.mxu0 0
  %125 = vmatprep.subr.bf16.mxu0 0
  %126 = vmatpush1.bf16.msra.mxu0 0
  %127 = vmatprep.subr.bf16.mxu0 0
  %128 = vmatpush1.bf16.msra.mxu0 0
  %129 = vmatprep.subr.bf16.mxu0 0
  %130 = vmatpush1.bf16.msra.mxu0 0
  %131 = vmatprep.subr.bf16.mxu0 0
  %132 = vmatpush1.bf16.msra.mxu0 0
  %133 = vmatprep.subr.bf16.mxu0 0
  %134 = vmatpush1.bf16.msra.mxu0 0
  %135 = vmatprep.subr.bf16.mxu0 0
  %136 = vmatpush1.bf16.msra.mxu0 0
  %137 = vmatprep.subr.bf16.mxu0 0
  %138 = vmatpush1.bf16.msra.mxu0 0
  %139 = vmatprep.mubr.bf16.mxu0 0
  %140 = vmatmul.mubr.bf16.gmra.mrb[0].mxu0 %v55
  %v141 = vpop.f32.mrb[0].mxu0
  %v142 = vadd.f32 0.0, %v141
  %v143 = vpop.f32.mrb[0].mxu0
  %v144 = vpop.f32.mrb[0].mxu0
  %v145 = vadd.f32 0.0, %v144
  %v146 = vpop.f32.mrb[0].mxu0
  %147 = vmatprep.mubr.bf16.mxu0 0
  %148 = vmatmul.mubr.bf16.gmra.mrb[0].mxu0 %v56
  %v149 = vpop.f32.mrb[0].mxu0
  %v150 = vadd.f32 0.0, %v149
  %v151 = vpop.f32.mrb[0].mxu0
  %v152 = vpop.f32.mrb[0].mxu0
  %v153 = vadd.f32 0.0, %v152
  %v154 = vpop.f32.mrb[0].mxu0
  %155 = vdwg.mxu0
  %v156 = vadd.f32 %v23, %v142
  %v157 = vadd.f32 %v24, %v145
  %v158 = vadd.f32 %v25, %v150
  %v159 = vadd.f32 %v26, %v153
  %160 = vst [vmem:[#allocation2] sm:$0xff] %v156
  %161 = vst [vmem:[#allocation2 + $0x8] sm:$0xff] %v157
  %162 = vst [vmem:[#allocation2 + $0x10] sm:$0xff] %v158
  %163 = vst [vmem:[#allocation2 + $0x18] sm:$0xff] %v159
  // Predicated region
  $region14: #{_lambda_.7} parent=0 // pred_check
    %p164 = pneg %p15
  $region15: #{_lambda_.7} parent=0 // pred_check_branch
    %166 = sbr.rel (%p164) target = $region17
  $region16: #{_lambda_.7} parent=0 // pred_region
    %v167 = vld [vmem:[#allocation2] sm:$0xff]
    %v168 = vld [vmem:[#allocation2 + $0x8] sm:$0xff]
    %v169 = vld [vmem:[#allocation2 + $0x10] sm:$0xff]
    %v170 = vld [vmem:[#allocation2 + $0x18] sm:$0xff]
    %v171 = vpack.c.bf16 %v168, %v167
    %v172 = vpack.c.bf16 %v170, %v169
    %v175 = vunpack.c.l.b16 %v171
    %v176 = vunpack.c.h.b16 %v171
    %v177 = vunpack.c.l.b16 %v172
    %v178 = vunpack.c.h.b16 %v172
    %v179 = vpack.c.b16 %v175, %v175
    %v180 = vpack.c.b16 %v176, %v176
    %v181 = vpack.c.b16 %v177, %v177
    %v182 = vpack.c.b16 %v178, %v178
    %187 = vst [vmem:[%s2] sm:$0xf] %v179
    %188 = vst [vmem:[%s2 + $0x4] sm:$0xf] %v180
    %189 = vst [vmem:[%s2 + $0x8] sm:$0xf] %v181
    %190 = vst [vmem:[%s2 + $0xc] sm:$0xf] %v182
    %v191 = vadd.f32 %v167, %v168
    %v192 = vadd.f32 %v191, %v169
    %v193 = vadd.f32 %v192, %v170
    %v194 = vrot.slane %v193, 4
    %v195 = vadd.f32 %v193, %v194
    %v196 = vrot.slane %v195, 2
    %v197 = vadd.f32 %v195, %v196
    %v198 = vrot.slane %v197, 1
    %v199 = vadd.f32 %v197, %v198
    %v200 = vmul.f32 %v167, %v167
    %v201 = vmul.f32 %v168, %v168
    %v202 = vmul.f32 %v169, %v169
    %v203 = vmul.f32 %v170, %v170
    %v204 = vadd.f32 %v200, %v201
    %v205 = vadd.f32 %v204, %v202
    %v206 = vadd.f32 %v205, %v203
    %v207 = vrot.slane %v206, 4
    %v208 = vadd.f32 %v206, %v207
    %v209 = vrot.slane %v208, 2
    %v210 = vadd.f32 %v208, %v209
    %v211 = vrot.slane %v210, 1
    %v212 = vadd.f32 %v210, %v211
    %213 = vst [vmem:[%s3] sm:$0xff] %v199
    %214 = vst [vmem:[%s4] sm:$0xff] %v212
  $region17: #{_lambda_.7} parent=0 // pred_fallthru
    _
  // Predicated region
  $region18: #{_lambda_.7} parent=0 // pred_check
    _
  $region19: #{_lambda_.7} parent=0 // pred_check_branch
    %216 = sbr.rel (0) target = $region21
  $region20: #{_lambda_.7} parent=0 // pred_region
    _
  $region21: #{_lambda_.7} parent=0 // pred_fallthru
    _
  // Predicated region
  $region22: #{_lambda_.7} parent=0 // pred_check
    _
  $region23: #{_lambda_.7} parent=0 // pred_check_branch
    %218 = sbr.rel (0) target = $region25
  $region24: #{_lambda_.7} parent=0 // pred_region
    _
  $region25: #{_lambda_.7} parent=0 // pred_fallthru
    _
  // Predicated region
  $region26: #{_lambda_.7} parent=0 // pred_check
    _
  $region27: #{_lambda_.7} parent=0 // pred_check_branch
    %220 = sbr.rel (0) target = $region29
  $region28: #{_lambda_.7} parent=0 // pred_region
    _
  $region29: #{_lambda_.7} parent=0 // pred_fallthru
    _
  // Predicated region
  $region30: #{_lambda_.7} parent=0 // pred_check
    _
  $region31: #{_lambda_.7} parent=0 // pred_check_branch
    %222 = sbr.rel (0) target = $region33
  $region32: #{_lambda_.7} parent=0 // pred_region
    _
  $region33: #{_lambda_.7} parent=0 // pred_fallthru
    _
  // Predicated region
  $region34: #{_lambda_.7} parent=0 // pred_check
    _
  $region35: #{_lambda_.7} parent=0 // pred_check_branch
    %224 = sbr.rel (0) target = $region37
  $region36: #{_lambda_.7} parent=0 // pred_region
    _
  $region37: #{_lambda_.7} parent=0 // pred_fallthru
    _
  // Predicated region
  $region38: #{_lambda_.7} parent=0 // pred_check
    _
  $region39: #{_lambda_.7} parent=0 // pred_check_branch
    %226 = sbr.rel (0) target = $region41
  $region40: #{_lambda_.7} parent=0 // pred_region
    _
  $region41: #{_lambda_.7} parent=0 // pred_fallthru
    _

// kernel: _lambda_.10
$region0: #{_lambda_.10}
  #allocation0 [shape = 'u32[]', space=smem, size = 0x4, offset = 0x4, fixed_abs, tag = 'smem constant byte address 0x4 - core index']
  #allocation1 [shape = 'u32[144,128]{1,0:T(1,128)}', space=vmem, size = 0x12000, scoped, tag = 'internal scratch']
  %s0 = inlined_call_operand.vmem [shape: bf16[4,32,128], index: 0, kind: input, shape index: {}]
  %s1 = inlined_call_operand.vmem [shape: f32[1,128], index: 1, kind: input, shape index: {}]
  %s2 = inlined_call_operand.vmem [shape: f32[1,128], index: 2, kind: input, shape index: {}]
  %s3 = inlined_call_operand.vmem [shape: bf16[4,32,128], index: 3, kind: output, shape index: {}]
  %s4 = sld [smem:[#allocation0]]
  $region45: #{_lambda_.10} parent=0
    _
  %s6 = ssub.s32 1, %s4
  %s7 = scalar_select 0, %s6, %s4
  loop: start=0, step=1, limit=6
  $region2: #{_lambda_.10} parent=0 // loop_pre_header
    _
  $region3: #{_lambda_.10} parent=0 // loop_header
    %s9 = sphi 0, %s13
    %p10 = scmp.ge.s32.totalorder %s9, 6
    %s16 = sphi 0, %s28
    %s17 = sphi 0, %s24
    %s18 = sphi 0, %s16
    %s19 = sphi 0, %s17
    %s20 = sphi 0, %s18
    %s21 = sphi 0, %s19
    %s33 = sphi 0, %s35
    %s36 = sphi 0, %s33
    %s37 = sphi 0, %s36
    %s53 = sphi 0, %s37
    %s57 = sphi 0, %s57
    %s59 = sphi 0, %s57
    %s60 = sphi 0, %s59
    %s74 = sphi 0, %s60
    %s78 = sphi 0, %s78
    %s80 = sphi 0, %s78
    %s81 = sphi 0, %s80
    %s95 = sphi 0, %s81
    %s103 = sphi 0, %s105
    %s106 = sphi 0, %s103
    %s107 = sphi 0, %s106
    %s123 = sphi 0, %s107
  $region4: #{_lambda_.10} parent=0 // loop_header_branch
    %12 = sbr.rel (%p10) target = $region8
  $region5: #{_lambda_.10} parent=0 // loop_body
    %s14 = ssub.s32 %s9, 1
    %s15 = ssub.s32 %s9, 2
    %s22 = sadd.s32 1, %s17
    %p23 = scmp.ge.s32.totalorder %s22, 1
    %s24 = scalar_select %p23, 0, %s22
    %s25 = sadd.s32 1, %s16
    %s26 = scalar_select %p23, %s25, %s16
    %p27 = scmp.ge.s32.totalorder %s26, 4
    %s28 = scalar_select %p27, 0, %s26
    %s29 = ssub.s32 %s16, %s28
    %s30 = ssub.s32 %s17, %s24
    %s31 = sor.u32 %s29, %s30
    %p32 = scmp.eq.s32.totalorder %s31, 0
    %s34 = sadd.s32 %s33, 1
    %s35 = scalar_select %p32, %s33, %s34
    %p38 = pneg %p32
    %p39 = scmp.eq.s32.totalorder %s9, 3
    %p40 = por %p38, %p39
    %p41 = scmp.ne.s32.totalorder %s33, %s36
    %p42 = scmp.eq.s32.totalorder %s9, 0
    %p43 = por %p41, %p42
    %p44 = scmp.ne.s32.totalorder %s33, %s36
    %p45 = scmp.eq.s32.totalorder %s14, 3
    %p46 = por %p44, %p45
    %p47 = scmp.ne.s32.totalorder %s36, %s37
    %p48 = scmp.eq.s32.totalorder %s14, 0
    %p49 = por %p47, %p48
    %p50 = scmp.ne.s32.totalorder %s36, %s37
    %p51 = scmp.eq.s32.totalorder %s15, 3
    %p52 = por %p50, %p51
    %p54 = scmp.ne.s32.totalorder %s37, %s53
    %p55 = scmp.eq.s32.totalorder %s15, 0
    %p56 = por %p54, %p55
    %s58 = sadd.s32 %s57, 1
    %p61 = scmp.eq.s32.totalorder %s9, 3
    %p62 = scmp.ne.s32.totalorder %s57, %s59
    %p63 = scmp.eq.s32.totalorder %s9, 0
    %p64 = por %p62, %p63
    %p65 = scmp.ne.s32.totalorder %s57, %s59
    %p66 = scmp.eq.s32.totalorder %s14, 3
    %p67 = por %p65, %p66
    %p68 = scmp.ne.s32.totalorder %s59, %s60
    %p69 = scmp.eq.s32.totalorder %s14, 0
    %p70 = por %p68, %p69
    %p71 = scmp.ne.s32.totalorder %s59, %s60
    %p72 = scmp.eq.s32.totalorder %s15, 3
    %p73 = por %p71, %p72
    %p75 = scmp.ne.s32.totalorder %s60, %s74
    %p76 = scmp.eq.s32.totalorder %s15, 0
    %p77 = por %p75, %p76
    %s79 = sadd.s32 %s78, 1
    %p82 = scmp.eq.s32.totalorder %s9, 3
    %p83 = scmp.ne.s32.totalorder %s78, %s80
    %p84 = scmp.eq.s32.totalorder %s9, 0
    %p85 = por %p83, %p84
    %p86 = scmp.ne.s32.totalorder %s78, %s80
    %p87 = scmp.eq.s32.totalorder %s14, 3
    %p88 = por %p86, %p87
    %p89 = scmp.ne.s32.totalorder %s80, %s81
    %p90 = scmp.eq.s32.totalorder %s14, 0
    %p91 = por %p89, %p90
    %p92 = scmp.ne.s32.totalorder %s80, %s81
    %p93 = scmp.eq.s32.totalorder %s15, 3
    %p94 = por %p92, %p93
    %p96 = scmp.ne.s32.totalorder %s81, %s95
    %p97 = scmp.eq.s32.totalorder %s15, 0
    %p98 = por %p96, %p97
    %s99 = ssub.s32 %s16, %s28
    %s100 = ssub.s32 %s17, %s24
    %s101 = sor.u32 %s99, %s100
    %p102 = scmp.eq.s32.totalorder %s101, 0
    %s104 = sadd.s32 %s103, 1
    %s105 = scalar_select %p102, %s103, %s104
    %p108 = pneg %p102
    %p109 = scmp.eq.s32.totalorder %s9, 3
    %p110 = por %p108, %p109
    %p111 = scmp.ne.s32.totalorder %s103, %s106
    %p112 = scmp.eq.s32.totalorder %s9, 0
    %p113 = por %p111, %p112
    %p114 = scmp.ne.s32.totalorder %s103, %s106
    %p115 = scmp.eq.s32.totalorder %s14, 3
    %p116 = por %p114, %p115
    %p117 = scmp.ne.s32.totalorder %s106, %s107
    %p118 = scmp.eq.s32.totalorder %s14, 0
    %p119 = por %p117, %p118
    %p120 = scmp.ne.s32.totalorder %s106, %s107
    %p121 = scmp.eq.s32.totalorder %s15, 3
    %p122 = por %p120, %p121
    %p124 = scmp.ne.s32.totalorder %s107, %s123
    %p125 = scmp.eq.s32.totalorder %s15, 0
    %p126 = por %p124, %p125
    %p127 = scmp.le.s32.totalorder 1, %s9
    %p128 = scmp.lt.s32.totalorder %s9, 5
    %p129 = pnand %p127, %p128
    %p130 = pneg %p129
    // Predicated region
    $region9: #{_lambda_.10} parent=5 // pred_check
      _
    $region10: #{_lambda_.10} parent=5 // pred_check_branch
      %132 = sbr.rel (%p129) target = $region12
    $region11: #{_lambda_.10} parent=5 // pred_region
      %s133 = ssub.s32 %s9, 1
      // Predicated region
      $region13: #{_lambda_.10} parent=11 // pred_check
        %p134 = pneg %p70
      $region14: #{_lambda_.10} parent=11 // pred_check_branch
        %136 = sbr.rel (%p134) target = $region16
      $region15: #{_lambda_.10} parent=11 // pred_region
        _
      $region16: #{_lambda_.10} parent=11 // pred_fallthru
        _
      // Predicated region
      $region17: #{_lambda_.10} parent=11 // pred_check
        %p137 = pneg %p91
      $region18: #{_lambda_.10} parent=11 // pred_check_branch
        %139 = sbr.rel (%p137) target = $region20
      $region19: #{_lambda_.10} parent=11 // pred_region
        _
      $region20: #{_lambda_.10} parent=11 // pred_fallthru
        _
    $region12: #{_lambda_.10} parent=5 // pred_fallthru
      _
    %p140 = scmp.lt.s32.totalorder %s9, 4
    // Predicated region
    $region21: #{_lambda_.10} parent=5 // pred_check
      %p141 = pneg %p140
    $region22: #{_lambda_.10} parent=5 // pred_check_branch
      %143 = sbr.rel (%p141) target = $region24
    $region23: #{_lambda_.10} parent=5 // pred_region
      // Predicated region
      $region25: #{_lambda_.10} parent=23 // pred_check
        %p144 = pneg %p43
      $region26: #{_lambda_.10} parent=23 // pred_check_branch
        %146 = sbr.rel (%p144) target = $region28
      $region27: #{_lambda_.10} parent=23 // pred_region
        %s147 = smul.u32 4, %s17
        %p148 = scmp.lt.s32.totalorder %s16, 3
        %s149 = scalar_select %p148, %s16, 3
        %p150 = scmp.lt.s32.totalorder %s147, 3
        %s151 = scalar_select %p150, %s147, 3
        %s152 = smul.addr %s149, 4
        %s153 = sadd.s32 %s151, %s152
        %s154 = smul.addr %s153, 4
        %s155 = scalar_lea.vmem %s0, %s154
        %s156 = smul.u32 4, %s17
      $region28: #{_lambda_.10} parent=23 // pred_fallthru
        _
    $region24: #{_lambda_.10} parent=5 // pred_fallthru
      _
    %p157 = scmp.le.s32.totalorder 1, %s9
    %p158 = scmp.lt.s32.totalorder %s9, 5
    %p159 = pnand %p157, %p158
    %p160 = pneg %p159
    // Predicated region
    $region29: #{_lambda_.10} parent=5 // pred_check
      _
    $region30: #{_lambda_.10} parent=5 // pred_check_branch
      %162 = sbr.rel (%p159) target = $region32
    $region31: #{_lambda_.10} parent=5 // pred_region
      %s163 = ssub.s32 %s9, 1
      %s164 = smul.u32 4, %s19
      %p165 = scmp.lt.s32.totalorder %s18, 3
      %s166 = scalar_select %p165, %s18, 3
      %p167 = scmp.lt.s32.totalorder %s164, 3
      %s168 = scalar_select %p167, %s164, 3
      %s169 = smul.addr %s166, 4
      %s170 = sadd.s32 %s168, %s169
      %s171 = smul.addr %s170, 4
      %s172 = scalar_lea.vmem %s0, %s171
      %p173 = pneg %p49
      %p174 = pneg %p46
      %p175 = pneg %p70
      %p176 = pneg %p67
      %p177 = pneg %p91
      %p178 = pneg %p88
      %p179 = pneg %p119
      %p180 = pneg %p116
      %s181 = smul.u32 4, %s19
      %p182 = scmp.lt.s32.totalorder %s18, 3
      %s183 = scalar_select %p182, %s18, 3
      %p184 = scmp.lt.s32.totalorder %s181, 3
      %s185 = scalar_select %p184, %s181, 3
      %s186 = smul.addr %s183, 4
      %s187 = sadd.s32 %s185, %s186
      %s188 = smul.addr %s187, 4
      %s189 = scalar_lea.vmem %s3, %s188
      %s190 = smul.u32 4, %s19
      %p191 = scmp.lt.s32.totalorder %s18, 3
      %s192 = scalar_select %p191, %s18, 3
      %p193 = scmp.lt.s32.totalorder %s190, 3
      %s194 = scalar_select %p193, %s190, 3
      %s195 = smul.addr %s192, 4
      %s196 = sadd.s32 %s194, %s195
      %s197 = smul.addr %s196, 4
      %s198 = scalar_lea.vmem %s0, %s197
      %s199 = smul.u32 4, %s19
      %s200 = smul.u32 4, %s19
      %p201 = scmp.lt.s32.totalorder %s18, 3
      %s202 = scalar_select %p201, %s18, 3
      %p203 = scmp.lt.s32.totalorder %s200, 3
      %s204 = scalar_select %p203, %s200, 3
      %s205 = smul.addr %s202, 4
      %s206 = sadd.s32 %s204, %s205
      %s207 = smul.addr %s206, 4
      %s208 = scalar_lea.vmem %s3, %s207
      %s209 = smul.u32 4, %s19
      %v210 = vld [vmem:[%s198] sm:$0xf]
      %v211 = vld [vmem:[%s198 + $0x4] sm:$0xf]
      %v212 = vld [vmem:[%s198 + $0x8] sm:$0xf]
      %v213 = vld [vmem:[%s198 + $0xc] sm:$0xf]
      %v214 = vunpack.c.l.bf16 %v210
      %v215 = vunpack.c.l.bf16 %v211
      %v216 = vunpack.c.l.bf16 %v212
      %v217 = vunpack.c.l.bf16 %v213
      %v218 = vld [vmem:[%s1] sm:$0x1]
      %v220 = vlaneseq
      %v221 = vshrl.u32 %v220, 7
      %v222 = vsub.s32 0, %v221
      %v223 = vrot.slane %v218, %v222
      %v225 = vmul.f32 %v214, %v223
      %v226 = vmul.f32 %v215, %v223
      %v227 = vmul.f32 %v216, %v223
      %v228 = vmul.f32 %v217, %v223
      %v229 = vld [vmem:[%s2] sm:$0x1]
      %v231 = vlaneseq
      %v232 = vshrl.u32 %v231, 7
      %v233 = vsub.s32 0, %v232
      %v234 = vrot.slane %v229, %v233
      %v236 = vadd.f32 %v225, %v234
      %v237 = vadd.f32 %v226, %v234
      %v238 = vadd.f32 %v227, %v234
      %v239 = vadd.f32 %v228, %v234
      %v240 = vmax.f32 %v236, 0.0
      %v241 = vmax.f32 %v237, 0.0
      %v242 = vmax.f32 %v238, 0.0
      %v243 = vmax.f32 %v239, 0.0
      %v244 = vpack.c.bf16 %v241, %v240
      %v245 = vpack.c.bf16 %v243, %v242
      %v248 = vunpack.c.l.b16 %v244
      %v249 = vunpack.c.h.b16 %v244
      %v250 = vunpack.c.l.b16 %v245
      %v251 = vunpack.c.h.b16 %v245
      %v252 = vpack.c.b16 %v248, %v248
      %v253 = vpack.c.b16 %v249, %v249
      %v254 = vpack.c.b16 %v250, %v250
      %v255 = vpack.c.b16 %v251, %v251
      %260 = vst [vmem:[%s208] sm:$0xf] %v252
      %261 = vst [vmem:[%s208 + $0x4] sm:$0xf] %v253
      %262 = vst [vmem:[%s208 + $0x8] sm:$0xf] %v254
      %263 = vst [vmem:[%s208 + $0xc] sm:$0xf] %v255
      %s264 = smul.u32 4, %s19
      %p265 = scmp.lt.s32.totalorder %s18, 3
      %s266 = scalar_select %p265, %s18, 3
      %p267 = scmp.lt.s32.totalorder %s264, 3
      %s268 = scalar_select %p267, %s264, 3
      %s269 = smul.addr %s266, 4
      %s270 = sadd.s32 %s268, %s269
      %s271 = smul.addr %s270, 4
      %s272 = scalar_lea.vmem %s3, %s271
      // Predicated region
      $region33: #{_lambda_.10} parent=31 // pred_check
        %p273 = pneg %p116
      $region34: #{_lambda_.10} parent=31 // pred_check_branch
        %275 = sbr.rel (%p273) target = $region36
      $region35: #{_lambda_.10} parent=31 // pred_region
        %s276 = smul.u32 4, %s19
      $region36: #{_lambda_.10} parent=31 // pred_fallthru
        _
    $region32: #{_lambda_.10} parent=5 // pred_fallthru
      _
    %p277 = scmp.le.s32.totalorder 2, %s9
    // Predicated region
    $region37: #{_lambda_.10} parent=5 // pred_check
      %p278 = pneg %p277
    $region38: #{_lambda_.10} parent=5 // pred_check_branch
      %280 = sbr.rel (%p278) target = $region40
    $region39: #{_lambda_.10} parent=5 // pred_region
      %s281 = ssub.s32 %s9, 2
      // Predicated region
      $region41: #{_lambda_.10} parent=39 // pred_check
        %p282 = pneg %p122
      $region42: #{_lambda_.10} parent=39 // pred_check_branch
        %284 = sbr.rel (%p282) target = $region44
      $region43: #{_lambda_.10} parent=39 // pred_region
        %s285 = smul.u32 4, %s21
        %p286 = scmp.lt.s32.totalorder %s20, 3
        %s287 = scalar_select %p286, %s20, 3
        %p288 = scmp.lt.s32.totalorder %s285, 3
        %s289 = scalar_select %p288, %s285, 3
        %s290 = smul.addr %s287, 4
        %s291 = sadd.s32 %s289, %s290
        %s292 = smul.addr %s291, 4
        %s293 = scalar_lea.vmem %s3, %s292
      $region44: #{_lambda_.10} parent=39 // pred_fallthru
        _
    $region40: #{_lambda_.10} parent=5 // pred_fallthru
      _
  $region6: #{_lambda_.10} parent=0 // loop_footer
    %s13 = sadd.s32 1, %s9
  $region7: #{_lambda_.10} parent=0 // loop_footer_branch
    %8 = sbr.rel target = $region3
  $region8: #{_lambda_.10} parent=0 // loop_exit
    _

// kernel: _lambda_.9
$region0: #{_lambda_.9}
  #allocation0 [shape = 'u32[]', space=smem, size = 0x4, offset = 0x4, fixed_abs, tag = 'smem constant byte address 0x4 - core index']
  #allocation1 [shape = 'u32[144,128]{1,0:T(1,128)}', space=vmem, size = 0x12000, scoped, tag = 'internal scratch']
  #allocation2 [shape = 'f32[32,128]{1,0:T(8,128)}', space=vmem, size = 0x4000, scoped, tag = 'scratch operand']
  %s0 = inlined_call_operand.vmem [shape: bf16[4,32,128], index: 0, kind: input, shape index: {}]
  %s1 = inlined_call_operand.vmem [shape: bf16[4,128,128], index: 1, kind: input, shape index: {}]
  %s2 = inlined_call_operand.vmem [shape: bf16[4,32,128], index: 2, kind: output, shape index: {0}]
  %s3 = inlined_call_operand.vmem [shape: f32[4,1,8,128], index: 3, kind: output, shape index: {1}]
  %s4 = inlined_call_operand.vmem [shape: f32[4,1,8,128], index: 4, kind: output, shape index: {2}]
  %5 = xla_tuple %s2, %s3, %s4
  %s6 = sld [smem:[#allocation0]]
  $region65: #{_lambda_.9} parent=0
    _
  %s8 = ssub.s32 1, %s6
  %s9 = scalar_select 0, %s8, %s6
  loop: start=0, step=1, limit=6
  $region2: #{_lambda_.9} parent=0 // loop_pre_header
    _
  $region3: #{_lambda_.9} parent=0 // loop_header
    %s11 = sphi 0, %s15
    %p12 = scmp.ge.s32.totalorder %s11, 6
    %s18 = sphi 0, %s37
    %s19 = sphi 0, %s33
    %s20 = sphi 0, %s29
    %s21 = sphi 0, %s18
    %s22 = sphi 0, %s19
    %s23 = sphi 0, %s20
    %s24 = sphi 0, %s21
    %s25 = sphi 0, %s22
    %s26 = sphi 0, %s23
    %s44 = sphi 0, %s46
    %s47 = sphi 0, %s44
    %s48 = sphi 0, %s47
    %s64 = sphi 0, %s48
    %s72 = sphi 0, %s74
    %s75 = sphi 0, %s72
    %s76 = sphi 0, %s75
    %s92 = sphi 0, %s76
    %s100 = sphi 0, %s102
    %s103 = sphi 0, %s100
    %s104 = sphi 0, %s103
    %s120 = sphi 0, %s104
    %s128 = sphi 0, %s130
    %s131 = sphi 0, %s128
    %s132 = sphi 0, %s131
    %s148 = sphi 0, %s132
    %s156 = sphi 0, %s158
    %s159 = sphi 0, %s156
    %s160 = sphi 0, %s159
    %s176 = sphi 0, %s160
  $region4: #{_lambda_.9} parent=0 // loop_header_branch
    %14 = sbr.rel (%p12) target = $region8
  $region5: #{_lambda_.9} parent=0 // loop_body
    %s16 = ssub.s32 %s11, 1
    %s17 = ssub.s32 %s11, 2
    %s27 = sadd.s32 1, %s20
    %p28 = scmp.ge.s32.totalorder %s27, 1
    %s29 = scalar_select %p28, 0, %s27
    %s30 = sadd.s32 1, %s19
    %s31 = scalar_select %p28, %s30, %s19
    %p32 = scmp.ge.s32.totalorder %s31, 1
    %s33 = scalar_select %p32, 0, %s31
    %s34 = sadd.s32 1, %s18
    %s35 = scalar_select %p32, %s34, %s18
    %p36 = scmp.ge.s32.totalorder %s35, 4
    %s37 = scalar_select %p36, 0, %s35
    %s38 = ssub.s32 %s18, %s37
    %s39 = ssub.s32 %s19, %s33
    %s40 = sor.u32 %s38, %s39
    %s41 = ssub.s32 %s20, %s29
    %s42 = sor.u32 %s40, %s41
    %p43 = scmp.eq.s32.totalorder %s42, 0
    %s45 = sadd.s32 %s44, 1
    %s46 = scalar_select %p43, %s44, %s45
    %p49 = pneg %p43
    %p50 = scmp.eq.s32.totalorder %s11, 3
    %p51 = por %p49, %p50
    %p52 = scmp.ne.s32.totalorder %s44, %s47
    %p53 = scmp.eq.s32.totalorder %s11, 0
    %p54 = por %p52, %p53
    %p55 = scmp.ne.s32.totalorder %s44, %s47
    %p56 = scmp.eq.s32.totalorder %s16, 3
    %p57 = por %p55, %p56
    %p58 = scmp.ne.s32.totalorder %s47, %s48
    %p59 = scmp.eq.s32.totalorder %s16, 0
    %p60 = por %p58, %p59
    %p61 = scmp.ne.s32.totalorder %s47, %s48
    %p62 = scmp.eq.s32.totalorder %s17, 3
    %p63 = por %p61, %p62
    %p65 = scmp.ne.s32.totalorder %s48, %s64
    %p66 = scmp.eq.s32.totalorder %s17, 0
    %p67 = por %p65, %p66
    %s68 = ssub.s32 %s18, %s37
    %s69 = ssub.s32 %s20, %s29
    %s70 = sor.u32 %s68, %s69
    %p71 = scmp.eq.s32.totalorder %s70, 0
    %s73 = sadd.s32 %s72, 1
    %s74 = scalar_select %p71, %s72, %s73
    %p77 = pneg %p71
    %p78 = scmp.eq.s32.totalorder %s11, 3
    %p79 = por %p77, %p78
    %p80 = scmp.ne.s32.totalorder %s72, %s75
    %p81 = scmp.eq.s32.totalorder %s11, 0
    %p82 = por %p80, %p81
    %p83 = scmp.ne.s32.totalorder %s72, %s75
    %p84 = scmp.eq.s32.totalorder %s16, 3
    %p85 = por %p83, %p84
    %p86 = scmp.ne.s32.totalorder %s75, %s76
    %p87 = scmp.eq.s32.totalorder %s16, 0
    %p88 = por %p86, %p87
    %p89 = scmp.ne.s32.totalorder %s75, %s76
    %p90 = scmp.eq.s32.totalorder %s17, 3
    %p91 = por %p89, %p90
    %p93 = scmp.ne.s32.totalorder %s76, %s92
    %p94 = scmp.eq.s32.totalorder %s17, 0
    %p95 = por %p93, %p94
    %s96 = ssub.s32 %s18, %s37
    %s97 = ssub.s32 %s19, %s33
    %s98 = sor.u32 %s96, %s97
    %p99 = scmp.eq.s32.totalorder %s98, 0
    %s101 = sadd.s32 %s100, 1
    %s102 = scalar_select %p99, %s100, %s101
    %p105 = pneg %p99
    %p106 = scmp.eq.s32.totalorder %s11, 3
    %p107 = por %p105, %p106
    %p108 = scmp.ne.s32.totalorder %s100, %s103
    %p109 = scmp.eq.s32.totalorder %s11, 0
    %p110 = por %p108, %p109
    %p111 = scmp.ne.s32.totalorder %s100, %s103
    %p112 = scmp.eq.s32.totalorder %s16, 3
    %p113 = por %p111, %p112
    %p114 = scmp.ne.s32.totalorder %s103, %s104
    %p115 = scmp.eq.s32.totalorder %s16, 0
    %p116 = por %p114, %p115
    %p117 = scmp.ne.s32.totalorder %s103, %s104
    %p118 = scmp.eq.s32.totalorder %s17, 3
    %p119 = por %p117, %p118
    %p121 = scmp.ne.s32.totalorder %s104, %s120
    %p122 = scmp.eq.s32.totalorder %s17, 0
    %p123 = por %p121, %p122
    %s124 = ssub.s32 %s18, %s37
    %s125 = ssub.s32 %s19, %s33
    %s126 = sor.u32 %s124, %s125
    %p127 = scmp.eq.s32.totalorder %s126, 0
    %s129 = sadd.s32 %s128, 1
    %s130 = scalar_select %p127, %s128, %s129
    %p133 = pneg %p127
    %p134 = scmp.eq.s32.totalorder %s11, 3
    %p135 = por %p133, %p134
    %p136 = scmp.ne.s32.totalorder %s128, %s131
    %p137 = scmp.eq.s32.totalorder %s11, 0
    %p138 = por %p136, %p137
    %p139 = scmp.ne.s32.totalorder %s128, %s131
    %p140 = scmp.eq.s32.totalorder %s16, 3
    %p141 = por %p139, %p140
    %p142 = scmp.ne.s32.totalorder %s131, %s132
    %p143 = scmp.eq.s32.totalorder %s16, 0
    %p144 = por %p142, %p143
    %p145 = scmp.ne.s32.totalorder %s131, %s132
    %p146 = scmp.eq.s32.totalorder %s17, 3
    %p147 = por %p145, %p146
    %p149 = scmp.ne.s32.totalorder %s132, %s148
    %p150 = scmp.eq.s32.totalorder %s17, 0
    %p151 = por %p149, %p150
    %s152 = ssub.s32 %s18, %s37
    %s153 = ssub.s32 %s19, %s33
    %s154 = sor.u32 %s152, %s153
    %p155 = scmp.eq.s32.totalorder %s154, 0
    %s157 = sadd.s32 %s156, 1
    %s158 = scalar_select %p155, %s156, %s157
    %p161 = pneg %p155
    %p162 = scmp.eq.s32.totalorder %s11, 3
    %p163 = por %p161, %p162
    %p164 = scmp.ne.s32.totalorder %s156, %s159
    %p165 = scmp.eq.s32.totalorder %s11, 0
    %p166 = por %p164, %p165
    %p167 = scmp.ne.s32.totalorder %s156, %s159
    %p168 = scmp.eq.s32.totalorder %s16, 3
    %p169 = por %p167, %p168
    %p170 = scmp.ne.s32.totalorder %s159, %s160
    %p171 = scmp.eq.s32.totalorder %s16, 0
    %p172 = por %p170, %p171
    %p173 = scmp.ne.s32.totalorder %s159, %s160
    %p174 = scmp.eq.s32.totalorder %s17, 3
    %p175 = por %p173, %p174
    %p177 = scmp.ne.s32.totalorder %s160, %s176
    %p178 = scmp.eq.s32.totalorder %s17, 0
    %p179 = por %p177, %p178
    %p180 = scmp.le.s32.totalorder 1, %s11
    %p181 = scmp.lt.s32.totalorder %s11, 5
    %p182 = pnand %p180, %p181
    %p183 = pneg %p182
    // Predicated region
    $region9: #{_lambda_.9} parent=5 // pred_check
      _
    $region10: #{_lambda_.9} parent=5 // pred_check_branch
      %185 = sbr.rel (%p182) target = $region12
    $region11: #{_lambda_.9} parent=5 // pred_region
      %s186 = ssub.s32 %s11, 1
    $region12: #{_lambda_.9} parent=5 // pred_fallthru
      _
    %p187 = scmp.lt.s32.totalorder %s11, 4
    // Predicated region
    $region13: #{_lambda_.9} parent=5 // pred_check
      %p188 = pneg %p187
    $region14: #{_lambda_.9} parent=5 // pred_check_branch
      %190 = sbr.rel (%p188) target = $region16
    $region15: #{_lambda_.9} parent=5 // pred_region
      // Predicated region
      $region17: #{_lambda_.9} parent=15 // pred_check
        %p191 = pneg %p54
      $region18: #{_lambda_.9} parent=15 // pred_check_branch
        %193 = sbr.rel (%p191) target = $region20
      $region19: #{_lambda_.9} parent=15 // pred_region
        %s194 = smul.u32 4, %s19
        %p195 = scmp.lt.s32.totalorder %s18, 3
        %s196 = scalar_select %p195, %s18, 3
        %p197 = scmp.lt.s32.totalorder %s194, 3
        %s198 = scalar_select %p197, %s194, 3
        %p199 = scmp.lt.s32.totalorder %s20, 0
        %s200 = scalar_select %p199, %s20, 0
        %s201 = sadd.s32 %s200, %s198
        %s202 = smul.addr %s196, 4
        %s203 = sadd.s32 %s201, %s202
        %s204 = smul.addr %s203, 4
        %s205 = scalar_lea.vmem %s0, %s204
        %s206 = smul.u32 4, %s19
      $region20: #{_lambda_.9} parent=15 // pred_fallthru
        _
      // Predicated region
      $region21: #{_lambda_.9} parent=15 // pred_check
        %p207 = pneg %p82
      $region22: #{_lambda_.9} parent=15 // pred_check_branch
        %209 = sbr.rel (%p207) target = $region24
      $region23: #{_lambda_.9} parent=15 // pred_region
        %s210 = smul.u32 16, %s20
        %p211 = scmp.lt.s32.totalorder %s18, 3
        %s212 = scalar_select %p211, %s18, 3
        %p213 = scmp.lt.s32.totalorder %s210, 15
        %s214 = scalar_select %p213, %s210, 15
        %s215 = smul.addr %s212, 16
        %s216 = sadd.s32 %s214, %s215
        %s217 = smul.addr %s216, 4
        %s218 = scalar_lea.vmem %s1, %s217
        %s219 = smul.u32 16, %s20
      $region24: #{_lambda_.9} parent=15 // pred_fallthru
        _
    $region16: #{_lambda_.9} parent=5 // pred_fallthru
      _
    %p220 = scmp.le.s32.totalorder 1, %s11
    %p221 = scmp.lt.s32.totalorder %s11, 5
    %p222 = pnand %p220, %p221
    %p223 = pneg %p222
    // Predicated region
    $region25: #{_lambda_.9} parent=5 // pred_check
      _
    $region26: #{_lambda_.9} parent=5 // pred_check_branch
      %225 = sbr.rel (%p222) target = $region28
    $region27: #{_lambda_.9} parent=5 // pred_region
      %s226 = ssub.s32 %s11, 1
      %s227 = smul.u32 4, %s22
      %p228 = scmp.lt.s32.totalorder %s21, 3
      %s229 = scalar_select %p228, %s21, 3
      %p230 = scmp.lt.s32.totalorder %s227, 3
      %s231 = scalar_select %p230, %s227, 3
      %p232 = scmp.lt.s32.totalorder %s23, 0
      %s233 = scalar_select %p232, %s23, 0
      %s234 = sadd.s32 %s233, %s231
      %s235 = smul.addr %s229, 4
      %s236 = sadd.s32 %s234, %s235
      %s237 = smul.addr %s236, 4
      %s238 = scalar_lea.vmem %s0, %s237
      %p239 = pneg %p60
      %p240 = pneg %p57
      %s241 = smul.u32 16, %s23
      %p242 = scmp.lt.s32.totalorder %s21, 3
      %s243 = scalar_select %p242, %s21, 3
      %p244 = scmp.lt.s32.totalorder %s241, 15
      %s245 = scalar_select %p244, %s241, 15
      %s246 = smul.addr %s243, 16
      %s247 = sadd.s32 %s245, %s246
      %s248 = smul.addr %s247, 4
      %s249 = scalar_lea.vmem %s1, %s248
      %p250 = pneg %p88
      %p251 = pneg %p85
      %p252 = pneg %p116
      %p253 = pneg %p113
      %s254 = smul.u32 4, %s22
      %p255 = scmp.lt.s32.totalorder %s21, 3
      %s256 = scalar_select %p255, %s21, 3
      %p257 = scmp.lt.s32.totalorder %s254, 3
      %s258 = scalar_select %p257, %s254, 3
      %s259 = smul.addr %s256, 4
      %s260 = sadd.s32 %s258, %s259
      %s261 = smul.addr %s260, 4
      %s262 = scalar_lea.vmem %s2, %s261
      %p263 = pneg %p144
      %p264 = pneg %p141
      %p265 = scmp.lt.s32.totalorder %s21, 3
      %s266 = scalar_select %p265, %s21, 3
      %p267 = scmp.lt.s32.totalorder %s22, 0
      %s268 = scalar_select %p267, %s22, 0
      %s269 = sadd.s32 %s268, %s266
      %s270 = smul.addr %s269, 8
      %s271 = scalar_lea.vmem %s3, %s270
      %p272 = pneg %p172
      %p273 = pneg %p169
      %p274 = scmp.lt.s32.totalorder %s21, 3
      %s275 = scalar_select %p274, %s21, 3
      %p276 = scmp.lt.s32.totalorder %s22, 0
      %s277 = scalar_select %p276, %s22, 0
      %s278 = sadd.s32 %s277, %s275
      %s279 = smul.addr %s278, 8
      %s280 = scalar_lea.vmem %s4, %s279
      %s281 = smul.u32 4, %s22
      %p282 = scmp.lt.s32.totalorder %s21, 3
      %s283 = scalar_select %p282, %s21, 3
      %p284 = scmp.lt.s32.totalorder %s281, 3
      %s285 = scalar_select %p284, %s281, 3
      %p286 = scmp.lt.s32.totalorder %s23, 0
      %s287 = scalar_select %p286, %s23, 0
      %s288 = sadd.s32 %s287, %s285
      %s289 = smul.addr %s283, 4
      %s290 = sadd.s32 %s288, %s289
      %s291 = smul.addr %s290, 4
      %s292 = scalar_lea.vmem %s0, %s291
      %s293 = smul.u32 4, %s22
      %s294 = smul.u32 16, %s23
      %p295 = scmp.lt.s32.totalorder %s21, 3
      %s296 = scalar_select %p295, %s21, 3
      %p297 = scmp.lt.s32.totalorder %s294, 15
      %s298 = scalar_select %p297, %s294, 15
      %s299 = smul.addr %s296, 16
      %s300 = sadd.s32 %s298, %s299
      %s301 = smul.addr %s300, 4
      %s302 = scalar_lea.vmem %s1, %s301
      %s303 = smul.u32 16, %s23
      %s304 = smul.u32 4, %s22
      %p305 = scmp.lt.s32.totalorder %s21, 3
      %s306 = scalar_select %p305, %s21, 3
      %p307 = scmp.lt.s32.totalorder %s304, 3
      %s308 = scalar_select %p307, %s304, 3
      %s309 = smul.addr %s306, 4
      %s310 = sadd.s32 %s308, %s309
      %s311 = smul.addr %s310, 4
      %s312 = scalar_lea.vmem %s2, %s311
      %s313 = smul.u32 4, %s22
      %p314 = scmp.lt.s32.totalorder %s21, 3
      %s315 = scalar_select %p314, %s21, 3
      %p316 = scmp.lt.s32.totalorder %s22, 0
      %s317 = scalar_select %p316, %s22, 0
      %s318 = sadd.s32 %s317, %s315
      %s319 = smul.addr %s318, 8
      %s320 = scalar_lea.vmem %s3, %s319
      %p321 = scmp.lt.s32.totalorder %s21, 3
      %s322 = scalar_select %p321, %s21, 3
      %p323 = scmp.lt.s32.totalorder %s22, 0
      %s324 = scalar_select %p323, %s22, 0
      %s325 = sadd.s32 %s324, %s322
      %s326 = smul.addr %s325, 8
      %s327 = scalar_lea.vmem %s4, %s326
      %p329 = scmp.eq.s32.totalorder %s23, 0
      // Predicated region
      $region29: #{_lambda_.9} parent=27 // pred_check
        %p330 = pneg %p329
      $region30: #{_lambda_.9} parent=27 // pred_check_branch
        %332 = sbr.rel (%p330) target = $region32
      $region31: #{_lambda_.9} parent=27 // pred_region
        %333 = vst [vmem:[#allocation2] sm:$0xff] 0.0
        %334 = vst [vmem:[#allocation2 + $0x8] sm:$0xff] 0.0
        %335 = vst [vmem:[#allocation2 + $0x10] sm:$0xff] 0.0
        %336 = vst [vmem:[#allocation2 + $0x18] sm:$0xff] 0.0
      $region32: #{_lambda_.9} parent=27 // pred_fallthru
        _
      %v337 = vld [vmem:[#allocation2] sm:$0xff]
      %v338 = vld [vmem:[#allocation2 + $0x8] sm:$0xff]
      %v339 = vld [vmem:[#allocation2 + $0x10] sm:$0xff]
      %v340 = vld [vmem:[#allocation2 + $0x18] sm:$0xff]
      %v341 = vld [vmem:[%s292] sm:$0xf]
      %v342 = vld [vmem:[%s292 + $0x4] sm:$0xf]
      %v343 = vld [vmem:[%s292 + $0x8] sm:$0xf]
      %v344 = vld [vmem:[%s292 + $0xc] sm:$0xf]
      %v345 = vld [vmem:[%s302] sm:$0xf]
      %v346 = vld [vmem:[%s302 + $0x4] sm:$0xf]
      %v347 = vld [vmem:[%s302 + $0x8] sm:$0xf]
      %v348 = vld [vmem:[%s302 + $0xc] sm:$0xf]
      %v349 = vld [vmem:[%s302 + $0x10] sm:$0xf]
      %v350 = vld [vmem:[%s302 + $0x14] sm:$0xf]
      %v351 = vld [vmem:[%s302 + $0x18] sm:$0xf]
      %v352 = vld [vmem:[%s302 + $0x1c] sm:$0xf]
      %v353 = vld [vmem:[%s302 + $0x20] sm:$0xf]
      %v354 = vld [vmem:[%s302 + $0x24] sm:$0xf]
      %v355 = vld [vmem:[%s302 + $0x28] sm:$0xf]
      %v356 = vld [vmem:[%s302 + $0x2c] sm:$0xf]
      %v357 = vld [vmem:[%s302 + $0x30] sm:$0xf]
      %v358 = vld [vmem:[%s302 + $0x34] sm:$0xf]
      %v359 = vld [vmem:[%s302 + $0x38] sm:$0xf]
      %v360 = vld [vmem:[%s302 + $0x3c] sm:$0xf]
      %v365 = vunpack.c.l.b16 %v341
      %v366 = vunpack.c.l.b16 %v342
      %v367 = vunpack.c.l.b16 %v343
      %v368 = vunpack.c.l.b16 %v344
      %v369 = vpack.c.b16 %v366, %v365
      %v370 = vpack.c.b16 %v368, %v367
      %v389 = vunpack.c.l.b16 %v345
      %v390 = vunpack.c.l.b16 %v346
      %v391 = vunpack.c.l.b16 %v347
      %v392 = vunpack.c.l.b16 %v348
      %v393 = vunpack.c.l.b16 %v349
      %v394 = vunpack.c.l.b16 %v350
      %v395 = vunpack.c.l.b16 %v351
      %v396 = vunpack.c.l.b16 %v352
      %v397 = vunpack.c.l.b16 %v353
      %v398 = vunpack.c.l.b16 %v354
      %v399 = vunpack.c.l.b16 %v355
      %v400 = vunpack.c.l.b16 %v356
      %v401 = vunpack.c.l.b16 %v357
      %v402 = vunpack.c.l.b16 %v358
      %v403 = vunpack.c.l.b16 %v359
      %v404 = vunpack.c.l.b16 %v360
      %v405 = vpack.c.b16 %v390, %v389
      %v406 = vpack.c.b16 %v392, %v391
      %v407 = vpack.c.b16 %v394, %v393
      %v408 = vpack.c.b16 %v396, %v395
      %v409 = vpack.c.b16 %v398, %v397
      %v410 = vpack.c.b16 %v400, %v399
      %v411 = vpack.c.b16 %v402, %v401
      %v412 = vpack.c.b16 %v404, %v403
      %421 = vmatprep.subr.bf16.mxu0 0
      %422 = vmatpush1.bf16.msra.mxu0 %v405
      %423 = vmatprep.subr.bf16.mxu0 0
      %424 = vmatpush1.bf16.msra.mxu0 %v406
      %425 = vmatprep.subr.bf16.mxu0 0
      %426 = vmatpush1.bf16.msra.mxu0 %v407
      %427 = vmatprep.subr.bf16.mxu0 0
      %428 = vmatpush1.bf16.msra.mxu0 %v408
      %429 = vmatprep.subr.bf16.mxu0 0
      %430 = vmatpush1.bf16.msra.mxu0 %v409
      %431 = vmatprep.subr.bf16.mxu0 0
      %432 = vmatpush1.bf16.msra.mxu0 %v410
      %433 = vmatprep.subr.bf16.mxu0 0
      %434 = vmatpush1.bf16.msra.mxu0 %v411
      %435 = vmatprep.subr.bf16.mxu0 0
      %436 = vmatpush1.bf16.msra.mxu0 %v412
      %437 = vmatprep.subr.bf16.mxu0 0
      %438 = vmatpush1.bf16.msra.mxu0 0
      %439 = vmatprep.subr.bf16.mxu0 0
      %440 = vmatpush1.bf16.msra.mxu0 0
      %441 = vmatprep.subr.bf16.mxu0 0
      %442 = vmatpush1.bf16.msra.mxu0 0
      %443 = vmatprep.subr.bf16.mxu0 0
      %444 = vmatpush1.bf16.msra.mxu0 0
      %445 = vmatprep.subr.bf16.mxu0 0
      %446 = vmatpush1.bf16.msra.mxu0 0
      %447 = vmatprep.subr.bf16.mxu0 0
      %448 = vmatpush1.bf16.msra.mxu0 0
      %449 = vmatprep.subr.bf16.mxu0 0
      %450 = vmatpush1.bf16.msra.mxu0 0
      %451 = vmatprep.subr.bf16.mxu0 0
      %452 = vmatpush1.bf16.msra.mxu0 0
      %453 = vmatprep.mubr.bf16.mxu0 0
      %454 = vmatmul.mubr.bf16.gmra.mrb[0].mxu0 %v369
      %v455 = vpop.f32.mrb[0].mxu0
      %v456 = vadd.f32 0.0, %v455
      %v457 = vpop.f32.mrb[0].mxu0
      %v458 = vpop.f32.mrb[0].mxu0
      %v459 = vadd.f32 0.0, %v458
      %v460 = vpop.f32.mrb[0].mxu0
      %461 = vmatprep.mubr.bf16.mxu0 0
      %462 = vmatmul.mubr.bf16.gmra.mrb[0].mxu0 %v370
      %v463 = vpop.f32.mrb[0].mxu0
      %v464 = vadd.f32 0.0, %v463
      %v465 = vpop.f32.mrb[0].mxu0
      %v466 = vpop.f32.mrb[0].mxu0
      %v467 = vadd.f32 0.0, %v466
      %v468 = vpop.f32.mrb[0].mxu0
      %469 = vdwg.mxu0
      %v470 = vadd.f32 %v337, %v456
      %v471 = vadd.f32 %v338, %v459
      %v472 = vadd.f32 %v339, %v464
      %v473 = vadd.f32 %v340, %v467
      %474 = vst [vmem:[#allocation2] sm:$0xff] %v470
      %475 = vst [vmem:[#allocation2 + $0x8] sm:$0xff] %v471
      %476 = vst [vmem:[#allocation2 + $0x10] sm:$0xff] %v472
      %477 = vst [vmem:[#allocation2 + $0x18] sm:$0xff] %v473
      // Predicated region
      $region33: #{_lambda_.9} parent=27 // pred_check
        %p478 = pneg %p329
      $region34: #{_lambda_.9} parent=27 // pred_check_branch
        %480 = sbr.rel (%p478) target = $region36
      $region35: #{_lambda_.9} parent=27 // pred_region
        %v481 = vld [vmem:[#allocation2] sm:$0xff]
        %v482 = vld [vmem:[#allocation2 + $0x8] sm:$0xff]
        %v483 = vld [vmem:[#allocation2 + $0x10] sm:$0xff]
        %v484 = vld [vmem:[#allocation2 + $0x18] sm:$0xff]
        %v485 = vpack.c.bf16 %v482, %v481
        %v486 = vpack.c.bf16 %v484, %v483
        %v489 = vunpack.c.l.b16 %v485
        %v490 = vunpack.c.h.b16 %v485
        %v491 = vunpack.c.l.b16 %v486
        %v492 = vunpack.c.h.b16 %v486
        %v493 = vpack.c.b16 %v489, %v489
        %v494 = vpack.c.b16 %v490, %v490
        %v495 = vpack.c.b16 %v491, %v491
        %v496 = vpack.c.b16 %v492, %v492
        %501 = vst [vmem:[%s312] sm:$0xf] %v493
        %502 = vst [vmem:[%s312 + $0x4] sm:$0xf] %v494
        %503 = vst [vmem:[%s312 + $0x8] sm:$0xf] %v495
        %504 = vst [vmem:[%s312 + $0xc] sm:$0xf] %v496
        %v505 = vadd.f32 %v481, %v482
        %v506 = vadd.f32 %v505, %v483
        %v507 = vadd.f32 %v506, %v484
        %v508 = vrot.slane %v507, 4
        %v509 = vadd.f32 %v507, %v508
        %v510 = vrot.slane %v509, 2
        %v511 = vadd.f32 %v509, %v510
        %v512 = vrot.slane %v511, 1
        %v513 = vadd.f32 %v511, %v512
        %v514 = vmul.f32 %v481, %v481
        %v515 = vmul.f32 %v482, %v482
        %v516 = vmul.f32 %v483, %v483
        %v517 = vmul.f32 %v484, %v484
        %v518 = vadd.f32 %v514, %v515
        %v519 = vadd.f32 %v518, %v516
        %v520 = vadd.f32 %v519, %v517
        %v521 = vrot.slane %v520, 4
        %v522 = vadd.f32 %v520, %v521
        %v523 = vrot.slane %v522, 2
        %v524 = vadd.f32 %v522, %v523
        %v525 = vrot.slane %v524, 1
        %v526 = vadd.f32 %v524, %v525
        %527 = vst [vmem:[%s320] sm:$0xff] %v513
        %528 = vst [vmem:[%s327] sm:$0xff] %v526
      $region36: #{_lambda_.9} parent=27 // pred_fallthru
        _
      %s529 = smul.u32 4, %s22
      %p530 = scmp.lt.s32.totalorder %s21, 3
      %s531 = scalar_select %p530, %s21, 3
      %p532 = scmp.lt.s32.totalorder %s529, 3
      %s533 = scalar_select %p532, %s529, 3
      %s534 = smul.addr %s531, 4
      %s535 = sadd.s32 %s533, %s534
      %s536 = smul.addr %s535, 4
      %s537 = scalar_lea.vmem %s2, %s536
      %p538 = scmp.lt.s32.totalorder %s21, 3
      %s539 = scalar_select %p538, %s21, 3
      %p540 = scmp.lt.s32.totalorder %s22, 0
      %s541 = scalar_select %p540, %s22, 0
      %s542 = sadd.s32 %s541, %s539
      %s543 = smul.addr %s542, 8
      %s544 = scalar_lea.vmem %s3, %s543
      %p545 = scmp.lt.s32.totalorder %s21, 3
      %s546 = scalar_select %p545, %s21, 3
      %p547 = scmp.lt.s32.totalorder %s22, 0
      %s548 = scalar_select %p547, %s22, 0
      %s549 = sadd.s32 %s548, %s546
      %s550 = smul.addr %s549, 8
      %s551 = scalar_lea.vmem %s4, %s550
      // Predicated region
      $region37: #{_lambda_.9} parent=27 // pred_check
        %p552 = pneg %p113
      $region38: #{_lambda_.9} parent=27 // pred_check_branch
        %554 = sbr.rel (%p552) target = $region40
      $region39: #{_lambda_.9} parent=27 // pred_region
        %s555 = smul.u32 4, %s22
      $region40: #{_lambda_.9} parent=27 // pred_fallthru
        _
      // Predicated region
      $region41: #{_lambda_.9} parent=27 // pred_check
        %p556 = pneg %p141
      $region42: #{_lambda_.9} parent=27 // pred_check_branch
        %558 = sbr.rel (%p556) target = $region44
      $region43: #{_lambda_.9} parent=27 // pred_region
        _
      $region44: #{_lambda_.9} parent=27 // pred_fallthru
        _
      // Predicated region
      $region45: #{_lambda_.9} parent=27 // pred_check
        %p559 = pneg %p169
      $region46: #{_lambda_.9} parent=27 // pred_check_branch
        %561 = sbr.rel (%p559) target = $region48
      $region47: #{_lambda_.9} parent=27 // pred_region
        _
      $region48: #{_lambda_.9} parent=27 // pred_fallthru
        _
    $region28: #{_lambda_.9} parent=5 // pred_fallthru
      _
    %p562 = scmp.le.s32.totalorder 2, %s11
    // Predicated region
    $region49: #{_lambda_.9} parent=5 // pred_check
      %p563 = pneg %p562
    $region50: #{_lambda_.9} parent=5 // pred_check_branch
      %565 = sbr.rel (%p563) target = $region52
    $region51: #{_lambda_.9} parent=5 // pred_region
      %s566 = ssub.s32 %s11, 2
      // Predicated region
      $region53: #{_lambda_.9} parent=51 // pred_check
        %p567 = pneg %p119
      $region54: #{_lambda_.9} parent=51 // pred_check_branch
        %569 = sbr.rel (%p567) target = $region56
      $region55: #{_lambda_.9} parent=51 // pred_region
        %s570 = smul.u32 4, %s25
        %p571 = scmp.lt.s32.totalorder %s24, 3
        %s572 = scalar_select %p571, %s24, 3
        %p573 = scmp.lt.s32.totalorder %s570, 3
        %s574 = scalar_select %p573, %s570, 3
        %s575 = smul.addr %s572, 4
        %s576 = sadd.s32 %s574, %s575
        %s577 = smul.addr %s576, 4
        %s578 = scalar_lea.vmem %s2, %s577
      $region56: #{_lambda_.9} parent=51 // pred_fallthru
        _
      // Predicated region
      $region57: #{_lambda_.9} parent=51 // pred_check
        %p579 = pneg %p147
      $region58: #{_lambda_.9} parent=51 // pred_check_branch
        %581 = sbr.rel (%p579) target = $region60
      $region59: #{_lambda_.9} parent=51 // pred_region
        %p582 = scmp.lt.s32.totalorder %s24, 3
        %s583 = scalar_select %p582, %s24, 3
        %p584 = scmp.lt.s32.totalorder %s25, 0
        %s585 = scalar_select %p584, %s25, 0
        %s586 = sadd.s32 %s585, %s583
        %s587 = smul.addr %s586, 8
        %s588 = scalar_lea.vmem %s3, %s587
      $region60: #{_lambda_.9} parent=51 // pred_fallthru
        _
      // Predicated region
      $region61: #{_lambda_.9} parent=51 // pred_check
        %p589 = pneg %p175
      $region62: #{_lambda_.9} parent=51 // pred_check_branch
        %591 = sbr.rel (%p589) target = $region64
      $region63: #{_lambda_.9} parent=51 // pred_region
        %p592 = scmp.lt.s32.totalorder %s24, 3
        %s593 = scalar_select %p592, %s24, 3
        %p594 = scmp.lt.s32.totalorder %s25, 0
        %s595 = scalar_select %p594, %s25, 0
        %s596 = sadd.s32 %s595, %s593
        %s597 = smul.addr %s596, 8
        %s598 = scalar_lea.vmem %s4, %s597
      $region64: #{_lambda_.9} parent=51 // pred_fallthru
        _
    $region52: #{_lambda_.9} parent=5 // pred_fallthru
      _
  $region6: #{_lambda_.9} parent=0 // loop_footer
    %s15 = sadd.s32 1, %s11
  $region7: #{_lambda_.9} parent=0 // loop_footer_branch
    %10 = sbr.rel target = $region3
  $region8: #{_lambda_.9} parent=0 // loop_exit
    _

// kernel: _lambda_.11
$region0: #{_lambda_.11}
  #allocation0 [shape = 'u32[]', space=smem, size = 0x4, offset = 0x4, fixed_abs, tag = 'smem constant byte address 0x4 - core index']
  #allocation1 [shape = 'u32[144,128]{1,0:T(1,128)}', space=vmem, size = 0x12000, scoped, tag = 'internal scratch']
  #allocation2 [shape = 'f32[128,128]{1,0:T(8,128)}', space=vmem, size = 0x10000, scoped, tag = 'scratch operand']
  %s0 = inlined_call_operand.vmem [shape: bf16[1,128,128], index: 0, kind: input, shape index: {}]
  %s1 = inlined_call_operand.vmem [shape: bf16[1,128,128], index: 1, kind: input, shape index: {}]
  %s2 = inlined_call_operand.vmem [shape: bf16[1,128,128], index: 2, kind: output, shape index: {0}]
  %s3 = inlined_call_operand.vmem [shape: f32[1,1,8,128], index: 3, kind: output, shape index: {1}]
  %s4 = inlined_call_operand.vmem [shape: f32[1,1,8,128], index: 4, kind: output, shape index: {2}]
  %5 = xla_tuple %s2, %s3, %s4
  %s6 = sld [smem:[#allocation0]]
  $region42: #{_lambda_.11} parent=0
    _
  %s8 = ssub.s32 1, %s6
  %s9 = scalar_select 0, %s8, %s6
  // Predicated region
  $region2: #{_lambda_.11} parent=0 // pred_check
    _
  $region3: #{_lambda_.11} parent=0 // pred_check_branch
    %11 = sbr.rel (0) target = $region5
  $region4: #{_lambda_.11} parent=0 // pred_region
    _
  $region5: #{_lambda_.11} parent=0 // pred_fallthru
    _
  // Predicated region
  $region6: #{_lambda_.11} parent=0 // pred_check
    _
  $region7: #{_lambda_.11} parent=0 // pred_check_branch
    %13 = sbr.rel (0) target = $region9
  $region8: #{_lambda_.11} parent=0 // pred_region
    _
  $region9: #{_lambda_.11} parent=0 // pred_fallthru
    _
  %p15 = scmp.eq.s32.totalorder 0, 0
  // Predicated region
  $region10: #{_lambda_.11} parent=0 // pred_check
    %p16 = pneg %p15
  $region11: #{_lambda_.11} parent=0 // pred_check_branch
    %18 = sbr.rel (%p16) target = $region13
  $region12: #{_lambda_.11} parent=0 // pred_region
    %19 = vst [vmem:[#allocation2] sm:$0xff] 0.0
    %20 = vst [vmem:[#allocation2 + $0x8] sm:$0xff] 0.0
    %21 = vst [vmem:[#allocation2 + $0x10] sm:$0xff] 0.0
    %22 = vst [vmem:[#allocation2 + $0x18] sm:$0xff] 0.0
    %23 = vst [vmem:[#allocation2 + $0x20] sm:$0xff] 0.0
    %24 = vst [vmem:[#allocation2 + $0x28] sm:$0xff] 0.0
    %25 = vst [vmem:[#allocation2 + $0x30] sm:$0xff] 0.0
    %26 = vst [vmem:[#allocation2 + $0x38] sm:$0xff] 0.0
    %27 = vst [vmem:[#allocation2 + $0x40] sm:$0xff] 0.0
    %28 = vst [vmem:[#allocation2 + $0x48] sm:$0xff] 0.0
    %29 = vst [vmem:[#allocation2 + $0x50] sm:$0xff] 0.0
    %30 = vst [vmem:[#allocation2 + $0x58] sm:$0xff] 0.0
    %31 = vst [vmem:[#allocation2 + $0x60] sm:$0xff] 0.0
    %32 = vst [vmem:[#allocation2 + $0x68] sm:$0xff] 0.0
    %33 = vst [vmem:[#allocation2 + $0x70] sm:$0xff] 0.0
    %34 = vst [vmem:[#allocation2 + $0x78] sm:$0xff] 0.0
  $region13: #{_lambda_.11} parent=0 // pred_fallthru
    _
  %v35 = vld [vmem:[#allocation2] sm:$0xff]
  %v36 = vld [vmem:[#allocation2 + $0x8] sm:$0xff]
  %v37 = vld [vmem:[#allocation2 + $0x10] sm:$0xff]
  %v38 = vld [vmem:[#allocation2 + $0x18] sm:$0xff]
  %v39 = vld [vmem:[#allocation2 + $0x20] sm:$0xff]
  %v40 = vld [vmem:[#allocation2 + $0x28] sm:$0xff]
  %v41 = vld [vmem:[#allocation2 + $0x30] sm:$0xff]
  %v42 = vld [vmem:[#allocation2 + $0x38] sm:$0xff]
  %v43 = vld [vmem:[#allocation2 + $0x40] sm:$0xff]
  %v44 = vld [vmem:[#allocation2 + $0x48] sm:$0xff]
  %v45 = vld [vmem:[#allocation2 + $0x50] sm:$0xff]
  %v46 = vld [vmem:[#allocation2 + $0x58] sm:$0xff]
  %v47 = vld [vmem:[#allocation2 + $0x60] sm:$0xff]
  %v48 = vld [vmem:[#allocation2 + $0x68] sm:$0xff]
  %v49 = vld [vmem:[#allocation2 + $0x70] sm:$0xff]
  %v50 = vld [vmem:[#allocation2 + $0x78] sm:$0xff]
  %v51 = vld [vmem:[%s0] sm:$0xf]
  %v52 = vld [vmem:[%s0 + $0x4] sm:$0xf]
  %v53 = vld [vmem:[%s0 + $0x8] sm:$0xf]
  %v54 = vld [vmem:[%s0 + $0xc] sm:$0xf]
  %v55 = vld [vmem:[%s0 + $0x10] sm:$0xf]
  %v56 = vld [vmem:[%s0 + $0x14] sm:$0xf]
  %v57 = vld [vmem:[%s0 + $0x18] sm:$0xf]
  %v58 = vld [vmem:[%s0 + $0x1c] sm:$0xf]
  %v59 = vld [vmem:[%s0 + $0x20] sm:$0xf]
  %v60 = vld [vmem:[%s0 + $0x24] sm:$0xf]
  %v61 = vld [vmem:[%s0 + $0x28] sm:$0xf]
  %v62 = vld [vmem:[%s0 + $0x2c] sm:$0xf]
  %v63 = vld [vmem:[%s0 + $0x30] sm:$0xf]
  %v64 = vld [vmem:[%s0 + $0x34] sm:$0xf]
  %v65 = vld [vmem:[%s0 + $0x38] sm:$0xf]
  %v66 = vld [vmem:[%s0 + $0x3c] sm:$0xf]
  %v67 = vld [vmem:[%s1] sm:$0xf]
  %v68 = vld [vmem:[%s1 + $0x4] sm:$0xf]
  %v69 = vld [vmem:[%s1 + $0x8] sm:$0xf]
  %v70 = vld [vmem:[%s1 + $0xc] sm:$0xf]
  %v71 = vld [vmem:[%s1 + $0x10] sm:$0xf]
  %v72 = vld [vmem:[%s1 + $0x14] sm:$0xf]
  %v73 = vld [vmem:[%s1 + $0x18] sm:$0xf]
  %v74 = vld [vmem:[%s1 + $0x1c] sm:$0xf]
  %v75 = vld [vmem:[%s1 + $0x20] sm:$0xf]
  %v76 = vld [vmem:[%s1 + $0x24] sm:$0xf]
  %v77 = vld [vmem:[%s1 + $0x28] sm:$0xf]
  %v78 = vld [vmem:[%s1 + $0x2c] sm:$0xf]
  %v79 = vld [vmem:[%s1 + $0x30] sm:$0xf]
  %v80 = vld [vmem:[%s1 + $0x34] sm:$0xf]
  %v81 = vld [vmem:[%s1 + $0x38] sm:$0xf]
  %v82 = vld [vmem:[%s1 + $0x3c] sm:$0xf]
  %v99 = vunpack.c.l.b16 %v51
  %v100 = vunpack.c.l.b16 %v52
  %v101 = vunpack.c.l.b16 %v53
  %v102 = vunpack.c.l.b16 %v54
  %v103 = vunpack.c.l.b16 %v55
  %v104 = vunpack.c.l.b16 %v56
  %v105 = vunpack.c.l.b16 %v57
  %v106 = vunpack.c.l.b16 %v58
  %v107 = vunpack.c.l.b16 %v59
  %v108 = vunpack.c.l.b16 %v60
  %v109 = vunpack.c.l.b16 %v61
  %v110 = vunpack.c.l.b16 %v62
  %v111 = vunpack.c.l.b16 %v63
  %v112 = vunpack.c.l.b16 %v64
  %v113 = vunpack.c.l.b16 %v65
  %v114 = vunpack.c.l.b16 %v66
  %v115 = vpack.c.b16 %v100, %v99
  %v116 = vpack.c.b16 %v102, %v101
  %v117 = vpack.c.b16 %v104, %v103
  %v118 = vpack.c.b16 %v106, %v105
  %v119 = vpack.c.b16 %v108, %v107
  %v120 = vpack.c.b16 %v110, %v109
  %v121 = vpack.c.b16 %v112, %v111
  %v122 = vpack.c.b16 %v114, %v113
  %v147 = vunpack.c.l.b16 %v67
  %v148 = vunpack.c.l.b16 %v68
  %v149 = vunpack.c.l.b16 %v69
  %v150 = vunpack.c.l.b16 %v70
  %v151 = vunpack.c.l.b16 %v71
  %v152 = vunpack.c.l.b16 %v72
  %v153 = vunpack.c.l.b16 %v73
  %v154 = vunpack.c.l.b16 %v74
  %v155 = vunpack.c.l.b16 %v75
  %v156 = vunpack.c.l.b16 %v76
  %v157 = vunpack.c.l.b16 %v77
  %v158 = vunpack.c.l.b16 %v78
  %v159 = vunpack.c.l.b16 %v79
  %v160 = vunpack.c.l.b16 %v80
  %v161 = vunpack.c.l.b16 %v81
  %v162 = vunpack.c.l.b16 %v82
  %v163 = vpack.c.b16 %v148, %v147
  %v164 = vpack.c.b16 %v150, %v149
  %v165 = vpack.c.b16 %v152, %v151
  %v166 = vpack.c.b16 %v154, %v153
  %v167 = vpack.c.b16 %v156, %v155
  %v168 = vpack.c.b16 %v158, %v157
  %v169 = vpack.c.b16 %v160, %v159
  %v170 = vpack.c.b16 %v162, %v161
  %179 = vmatprep.subr.bf16.mxu0 0
  %180 = vmatpush1.bf16.msra.mxu0 %v163
  %181 = vmatprep.subr.bf16.mxu0 0
  %182 = vmatpush1.bf16.msra.mxu0 %v164
  %183 = vmatprep.subr.bf16.mxu0 0
  %184 = vmatpush1.bf16.msra.mxu0 %v165
  %185 = vmatprep.subr.bf16.mxu0 0
  %186 = vmatpush1.bf16.msra.mxu0 %v166
  %187 = vmatprep.subr.bf16.mxu0 0
  %188 = vmatpush1.bf16.msra.mxu0 %v167
  %189 = vmatprep.subr.bf16.mxu0 0
  %190 = vmatpush1.bf16.msra.mxu0 %v168
  %191 = vmatprep.subr.bf16.mxu0 0
  %192 = vmatpush1.bf16.msra.mxu0 %v169
  %193 = vmatprep.subr.bf16.mxu0 0
  %194 = vmatpush1.bf16.msra.mxu0 %v170
  %195 = vmatprep.subr.bf16.mxu0 0
  %196 = vmatpush1.bf16.msra.mxu0 0
  %197 = vmatprep.subr.bf16.mxu0 0
  %198 = vmatpush1.bf16.msra.mxu0 0
  %199 = vmatprep.subr.bf16.mxu0 0
  %200 = vmatpush1.bf16.msra.mxu0 0
  %201 = vmatprep.subr.bf16.mxu0 0
  %202 = vmatpush1.bf16.msra.mxu0 0
  %203 = vmatprep.subr.bf16.mxu0 0
  %204 = vmatpush1.bf16.msra.mxu0 0
  %205 = vmatprep.subr.bf16.mxu0 0
  %206 = vmatpush1.bf16.msra.mxu0 0
  %207 = vmatprep.subr.bf16.mxu0 0
  %208 = vmatpush1.bf16.msra.mxu0 0
  %209 = vmatprep.subr.bf16.mxu0 0
  %210 = vmatpush1.bf16.msra.mxu0 0
  %211 = vmatprep.mubr.bf16.mxu0 0
  %212 = vmatmul.mubr.bf16.gmra.mrb[0].mxu0 %v115
  %v213 = vpop.f32.mrb[0].mxu0
  %v214 = vadd.f32 0.0, %v213
  %v215 = vpop.f32.mrb[0].mxu0
  %v216 = vpop.f32.mrb[0].mxu0
  %v217 = vadd.f32 0.0, %v216
  %v218 = vpop.f32.mrb[0].mxu0
  %219 = vmatprep.mubr.bf16.mxu0 0
  %220 = vmatmul.mubr.bf16.gmra.mrb[0].mxu0 %v116
  %v221 = vpop.f32.mrb[0].mxu0
  %v222 = vadd.f32 0.0, %v221
  %v223 = vpop.f32.mrb[0].mxu0
  %v224 = vpop.f32.mrb[0].mxu0
  %v225 = vadd.f32 0.0, %v224
  %v226 = vpop.f32.mrb[0].mxu0
  %227 = vmatprep.mubr.bf16.mxu0 0
  %228 = vmatmul.mubr.bf16.gmra.mrb[0].mxu0 %v117
  %v229 = vpop.f32.mrb[0].mxu0
  %v230 = vadd.f32 0.0, %v229
  %v231 = vpop.f32.mrb[0].mxu0
  %v232 = vpop.f32.mrb[0].mxu0
  %v233 = vadd.f32 0.0, %v232
  %v234 = vpop.f32.mrb[0].mxu0
  %235 = vmatprep.mubr.bf16.mxu0 0
  %236 = vmatmul.mubr.bf16.gmra.mrb[0].mxu0 %v118
  %v237 = vpop.f32.mrb[0].mxu0
  %v238 = vadd.f32 0.0, %v237
  %v239 = vpop.f32.mrb[0].mxu0
  %v240 = vpop.f32.mrb[0].mxu0
  %v241 = vadd.f32 0.0, %v240
  %v242 = vpop.f32.mrb[0].mxu0
  %243 = vmatprep.mubr.bf16.mxu0 0
  %244 = vmatmul.mubr.bf16.gmra.mrb[0].mxu0 %v119
  %v245 = vpop.f32.mrb[0].mxu0
  %v246 = vadd.f32 0.0, %v245
  %v247 = vpop.f32.mrb[0].mxu0
  %v248 = vpop.f32.mrb[0].mxu0
  %v249 = vadd.f32 0.0, %v248
  %v250 = vpop.f32.mrb[0].mxu0
  %251 = vmatprep.mubr.bf16.mxu0 0
  %252 = vmatmul.mubr.bf16.gmra.mrb[0].mxu0 %v120
  %v253 = vpop.f32.mrb[0].mxu0
  %v254 = vadd.f32 0.0, %v253
  %v255 = vpop.f32.mrb[0].mxu0
  %v256 = vpop.f32.mrb[0].mxu0
  %v257 = vadd.f32 0.0, %v256
  %v258 = vpop.f32.mrb[0].mxu0
  %259 = vmatprep.mubr.bf16.mxu0 0
  %260 = vmatmul.mubr.bf16.gmra.mrb[0].mxu0 %v121
  %v261 = vpop.f32.mrb[0].mxu0
  %v262 = vadd.f32 0.0, %v261
  %v263 = vpop.f32.mrb[0].mxu0
  %v264 = vpop.f32.mrb[0].mxu0
  %v265 = vadd.f32 0.0, %v264
  %v266 = vpop.f32.mrb[0].mxu0
  %267 = vmatprep.mubr.bf16.mxu0 0
  %268 = vmatmul.mubr.bf16.gmra.mrb[0].mxu0 %v122
  %v269 = vpop.f32.mrb[0].mxu0
  %v270 = vadd.f32 0.0, %v269
  %v271 = vpop.f32.mrb[0].mxu0
  %v272 = vpop.f32.mrb[0].mxu0
  %v273 = vadd.f32 0.0, %v272
  %v274 = vpop.f32.mrb[0].mxu0
  %275 = vdwg.mxu0
  %v276 = vadd.f32 %v35, %v214
  %v277 = vadd.f32 %v36, %v217
  %v278 = vadd.f32 %v37, %v222
  %v279 = vadd.f32 %v38, %v225
  %v280 = vadd.f32 %v39, %v230
  %v281 = vadd.f32 %v40, %v233
  %v282 = vadd.f32 %v41, %v238
  %v283 = vadd.f32 %v42, %v241
  %v284 = vadd.f32 %v43, %v246
  %v285 = vadd.f32 %v44, %v249
  %v286 = vadd.f32 %v45, %v254
  %v287 = vadd.f32 %v46, %v257
  %v288 = vadd.f32 %v47, %v262
  %v289 = vadd.f32 %v48, %v265
  %v290 = vadd.f32 %v49, %v270
  %v291 = vadd.f32 %v50, %v273
  %292 = vst [vmem:[#allocation2] sm:$0xff] %v276
  %293 = vst [vmem:[#allocation2 + $0x8] sm:$0xff] %v277
  %294 = vst [vmem:[#allocation2 + $0x10] sm:$0xff] %v278
  %295 = vst [vmem:[#allocation2 + $0x18] sm:$0xff] %v279
  %296 = vst [vmem:[#allocation2 + $0x20] sm:$0xff] %v280
  %297 = vst [vmem:[#allocation2 + $0x28] sm:$0xff] %v281
  %298 = vst [vmem:[#allocation2 + $0x30] sm:$0xff] %v282
  %299 = vst [vmem:[#allocation2 + $0x38] sm:$0xff] %v283
  %300 = vst [vmem:[#allocation2 + $0x40] sm:$0xff] %v284
  %301 = vst [vmem:[#allocation2 + $0x48] sm:$0xff] %v285
  %302 = vst [vmem:[#allocation2 + $0x50] sm:$0xff] %v286
  %303 = vst [vmem:[#allocation2 + $0x58] sm:$0xff] %v287
  %304 = vst [vmem:[#allocation2 + $0x60] sm:$0xff] %v288
  %305 = vst [vmem:[#allocation2 + $0x68] sm:$0xff] %v289
  %306 = vst [vmem:[#allocation2 + $0x70] sm:$0xff] %v290
  %307 = vst [vmem:[#allocation2 + $0x78] sm:$0xff] %v291
  // Predicated region
  $region14: #{_lambda_.11} parent=0 // pred_check
    %p308 = pneg %p15
  $region15: #{_lambda_.11} parent=0 // pred_check_branch
    %310 = sbr.rel (%p308) target = $region17
  $region16: #{_lambda_.11} parent=0 // pred_region
    %v311 = vld [vmem:[#allocation2] sm:$0xff]
    %v312 = vld [vmem:[#allocation2 + $0x8] sm:$0xff]
    %v313 = vld [vmem:[#allocation2 + $0x10] sm:$0xff]
    %v314 = vld [vmem:[#allocation2 + $0x18] sm:$0xff]
    %v315 = vld [vmem:[#allocation2 + $0x20] sm:$0xff]
    %v316 = vld [vmem:[#allocation2 + $0x28] sm:$0xff]
    %v317 = vld [vmem:[#allocation2 + $0x30] sm:$0xff]
    %v318 = vld [vmem:[#allocation2 + $0x38] sm:$0xff]
    %v319 = vld [vmem:[#allocation2 + $0x40] sm:$0xff]
    %v320 = vld [vmem:[#allocation2 + $0x48] sm:$0xff]
    %v321 = vld [vmem:[#allocation2 + $0x50] sm:$0xff]
    %v322 = vld [vmem:[#allocation2 + $0x58] sm:$0xff]
    %v323 = vld [vmem:[#allocation2 + $0x60] sm:$0xff]
    %v324 = vld [vmem:[#allocation2 + $0x68] sm:$0xff]
    %v325 = vld [vmem:[#allocation2 + $0x70] sm:$0xff]
    %v326 = vld [vmem:[#allocation2 + $0x78] sm:$0xff]
    %v327 = vpack.c.bf16 %v312, %v311
    %v328 = vpack.c.bf16 %v314, %v313
    %v329 = vpack.c.bf16 %v316, %v315
    %v330 = vpack.c.bf16 %v318, %v317
    %v331 = vpack.c.bf16 %v320, %v319
    %v332 = vpack.c.bf16 %v322, %v321
    %v333 = vpack.c.bf16 %v324, %v323
    %v334 = vpack.c.bf16 %v326, %v325
    %v343 = vunpack.c.l.b16 %v327
    %v344 = vunpack.c.h.b16 %v327
    %v345 = vunpack.c.l.b16 %v328
    %v346 = vunpack.c.h.b16 %v328
    %v347 = vunpack.c.l.b16 %v329
    %v348 = vunpack.c.h.b16 %v329
    %v349 = vunpack.c.l.b16 %v330
    %v350 = vunpack.c.h.b16 %v330
    %v351 = vunpack.c.l.b16 %v331
    %v352 = vunpack.c.h.b16 %v331
    %v353 = vunpack.c.l.b16 %v332
    %v354 = vunpack.c.h.b16 %v332
    %v355 = vunpack.c.l.b16 %v333
    %v356 = vunpack.c.h.b16 %v333
    %v357 = vunpack.c.l.b16 %v334
    %v358 = vunpack.c.h.b16 %v334
    %v359 = vpack.c.b16 %v343, %v343
    %v360 = vpack.c.b16 %v344, %v344
    %v361 = vpack.c.b16 %v345, %v345
    %v362 = vpack.c.b16 %v346, %v346
    %v363 = vpack.c.b16 %v347, %v347
    %v364 = vpack.c.b16 %v348, %v348
    %v365 = vpack.c.b16 %v349, %v349
    %v366 = vpack.c.b16 %v350, %v350
    %v367 = vpack.c.b16 %v351, %v351
    %v368 = vpack.c.b16 %v352, %v352
    %v369 = vpack.c.b16 %v353, %v353
    %v370 = vpack.c.b16 %v354, %v354
    %v371 = vpack.c.b16 %v355, %v355
    %v372 = vpack.c.b16 %v356, %v356
    %v373 = vpack.c.b16 %v357, %v357
    %v374 = vpack.c.b16 %v358, %v358
    %391 = vst [vmem:[%s2] sm:$0xf] %v359
    %392 = vst [vmem:[%s2 + $0x4] sm:$0xf] %v360
    %393 = vst [vmem:[%s2 + $0x8] sm:$0xf] %v361
    %394 = vst [vmem:[%s2 + $0xc] sm:$0xf] %v362
    %395 = vst [vmem:[%s2 + $0x10] sm:$0xf] %v363
    %396 = vst [vmem:[%s2 + $0x14] sm:$0xf] %v364
    %397 = vst [vmem:[%s2 + $0x18] sm:$0xf] %v365
    %398 = vst [vmem:[%s2 + $0x1c] sm:$0xf] %v366
    %399 = vst [vmem:[%s2 + $0x20] sm:$0xf] %v367
    %400 = vst [vmem:[%s2 + $0x24] sm:$0xf] %v368
    %401 = vst [vmem:[%s2 + $0x28] sm:$0xf] %v369
    %402 = vst [vmem:[%s2 + $0x2c] sm:$0xf] %v370
    %403 = vst [vmem:[%s2 + $0x30] sm:$0xf] %v371
    %404 = vst [vmem:[%s2 + $0x34] sm:$0xf] %v372
    %405 = vst [vmem:[%s2 + $0x38] sm:$0xf] %v373
    %406 = vst [vmem:[%s2 + $0x3c] sm:$0xf] %v374
    %v407 = vadd.f32 %v311, %v312
    %v408 = vadd.f32 %v407, %v313
    %v409 = vadd.f32 %v408, %v314
    %v410 = vadd.f32 %v409, %v315
    %v411 = vadd.f32 %v410, %v316
    %v412 = vadd.f32 %v411, %v317
    %v413 = vadd.f32 %v412, %v318
    %v414 = vadd.f32 %v413, %v319
    %v415 = vadd.f32 %v414, %v320
    %v416 = vadd.f32 %v415, %v321
    %v417 = vadd.f32 %v416, %v322
    %v418 = vadd.f32 %v417, %v323
    %v419 = vadd.f32 %v418, %v324
    %v420 = vadd.f32 %v419, %v325
    %v421 = vadd.f32 %v420, %v326
    %v422 = vrot.slane %v421, 4
    %v423 = vadd.f32 %v421, %v422
    %v424 = vrot.slane %v423, 2
    %v425 = vadd.f32 %v423, %v424
    %v426 = vrot.slane %v425, 1
    %v427 = vadd.f32 %v425, %v426
    %v428 = vmul.f32 %v311, %v311
    %v429 = vmul.f32 %v312, %v312
    %v430 = vmul.f32 %v313, %v313
    %v431 = vmul.f32 %v314, %v314
    %v432 = vmul.f32 %v315, %v315
    %v433 = vmul.f32 %v316, %v316
    %v434 = vmul.f32 %v317, %v317
    %v435 = vmul.f32 %v318, %v318
    %v436 = vmul.f32 %v319, %v319
    %v437 = vmul.f32 %v320, %v320
    %v438 = vmul.f32 %v321, %v321
    %v439 = vmul.f32 %v322, %v322
    %v440 = vmul.f32 %v323, %v323
    %v441 = vmul.f32 %v324, %v324
    %v442 = vmul.f32 %v325, %v325
    %v443 = vmul.f32 %v326, %v326
    %v444 = vadd.f32 %v428, %v429
    %v445 = vadd.f32 %v444, %v430
    %v446 = vadd.f32 %v445, %v431
    %v447 = vadd.f32 %v446, %v432
    %v448 = vadd.f32 %v447, %v433
    %v449 = vadd.f32 %v448, %v434
    %v450 = vadd.f32 %v449, %v435
    %v451 = vadd.f32 %v450, %v436
    %v452 = vadd.f32 %v451, %v437
    %v453 = vadd.f32 %v452, %v438
    %v454 = vadd.f32 %v453, %v439
    %v455 = vadd.f32 %v454, %v440
    %v456 = vadd.f32 %v455, %v441
    %v457 = vadd.f32 %v456, %v442
    %v458 = vadd.f32 %v457, %v443
    %v459 = vrot.slane %v458, 4
    %v460 = vadd.f32 %v458, %v459
    %v461 = vrot.slane %v460, 2
    %v462 = vadd.f32 %v460, %v461
    %v463 = vrot.slane %v462, 1
    %v464 = vadd.f32 %v462, %v463
    %465 = vst [vmem:[%s3] sm:$0xff] %v427
    %466 = vst [vmem:[%s4] sm:$0xff] %v464
  $region17: #{_lambda_.11} parent=0 // pred_fallthru
    _
  // Predicated region
  $region18: #{_lambda_.11} parent=0 // pred_check
    _
  $region19: #{_lambda_.11} parent=0 // pred_check_branch
    %468 = sbr.rel (0) target = $region21
  $region20: #{_lambda_.11} parent=0 // pred_region
    _
  $region21: #{_lambda_.11} parent=0 // pred_fallthru
    _
  // Predicated region
  $region22: #{_lambda_.11} parent=0 // pred_check
    _
  $region23: #{_lambda_.11} parent=0 // pred_check_branch
    %470 = sbr.rel (0) target = $region25
  $region24: #{_lambda_.11} parent=0 // pred_region
    _
  $region25: #{_lambda_.11} parent=0 // pred_fallthru
    _
  // Predicated region
  $region26: #{_lambda_.11} parent=0 // pred_check
    _
  $region27: #{_lambda_.11} parent=0 // pred_check_branch
    %472 = sbr.rel (0) target = $region29
  $region28: #{_lambda_.11} parent=0 // pred_region
    _
  $region29: #{_lambda_.11} parent=0 // pred_fallthru
    _
  // Predicated region
  $region30: #{_lambda_.11} parent=0 // pred_check
    _
  $region31: #{_lambda_.11} parent=0 // pred_check_branch
    %474 = sbr.rel (0) target = $region33
  $region32: #{_lambda_.11} parent=0 // pred_region
    _
  $region33: #{_lambda_.11} parent=0 // pred_fallthru
    _
  // Predicated region
  $region34: #{_lambda_.11} parent=0 // pred_check
    _
  $region35: #{_lambda_.11} parent=0 // pred_check_branch
    %476 = sbr.rel (0) target = $region37
  $region36: #{_lambda_.11} parent=0 // pred_region
    _
  $region37: #{_lambda_.11} parent=0 // pred_fallthru
    _
  // Predicated region
  $region38: #{_lambda_.11} parent=0 // pred_check
    _
  $region39: #{_lambda_.11} parent=0 // pred_check_branch
    %478 = sbr.rel (0) target = $region41
  $region40: #{_lambda_.11} parent=0 // pred_region
    _
  $region41: #{_lambda_.11} parent=0 // pred_fallthru
    _

// kernel: _lambda_.12
$region0: #{_lambda_.12}
  #allocation0 [shape = 'u32[]', space=smem, size = 0x4, offset = 0x4, fixed_abs, tag = 'smem constant byte address 0x4 - core index']
  #allocation1 [shape = 'u32[144,128]{1,0:T(1,128)}', space=vmem, size = 0x12000, scoped, tag = 'internal scratch']
  %s0 = inlined_call_operand.vmem [shape: bf16[1,128,128], index: 0, kind: input, shape index: {}]
  %s1 = inlined_call_operand.vmem [shape: f32[1,128], index: 1, kind: input, shape index: {}]
  %s2 = inlined_call_operand.vmem [shape: f32[1,128], index: 2, kind: input, shape index: {}]
  %s3 = inlined_call_operand.vmem [shape: bf16[1,128,128], index: 3, kind: output, shape index: {}]
  %s4 = sld [smem:[#allocation0]]
  $region22: #{_lambda_.12} parent=0
    _
  %s6 = ssub.s32 1, %s4
  %s7 = scalar_select 0, %s6, %s4
  // Predicated region
  $region2: #{_lambda_.12} parent=0 // pred_check
    _
  $region3: #{_lambda_.12} parent=0 // pred_check_branch
    %9 = sbr.rel (0) target = $region5
  $region4: #{_lambda_.12} parent=0 // pred_region
    _
  $region5: #{_lambda_.12} parent=0 // pred_fallthru
    _
  // Predicated region
  $region6: #{_lambda_.12} parent=0 // pred_check
    _
  $region7: #{_lambda_.12} parent=0 // pred_check_branch
    %11 = sbr.rel (0) target = $region9
  $region8: #{_lambda_.12} parent=0 // pred_region
    _
  $region9: #{_lambda_.12} parent=0 // pred_fallthru
    _
  // Predicated region
  $region10: #{_lambda_.12} parent=0 // pred_check
    _
  $region11: #{_lambda_.12} parent=0 // pred_check_branch
    %13 = sbr.rel (0) target = $region13
  $region12: #{_lambda_.12} parent=0 // pred_region
    _
  $region13: #{_lambda_.12} parent=0 // pred_fallthru
    _
  %v14 = vld [vmem:[%s0] sm:$0xf]
  %v15 = vld [vmem:[%s0 + $0x4] sm:$0xf]
  %v16 = vld [vmem:[%s0 + $0x8] sm:$0xf]
  %v17 = vld [vmem:[%s0 + $0xc] sm:$0xf]
  %v18 = vld [vmem:[%s0 + $0x10] sm:$0xf]
  %v19 = vld [vmem:[%s0 + $0x14] sm:$0xf]
  %v20 = vld [vmem:[%s0 + $0x18] sm:$0xf]
  %v21 = vld [vmem:[%s0 + $0x1c] sm:$0xf]
  %v22 = vld [vmem:[%s0 + $0x20] sm:$0xf]
  %v23 = vld [vmem:[%s0 + $0x24] sm:$0xf]
  %v24 = vld [vmem:[%s0 + $0x28] sm:$0xf]
  %v25 = vld [vmem:[%s0 + $0x2c] sm:$0xf]
  %v26 = vld [vmem:[%s0 + $0x30] sm:$0xf]
  %v27 = vld [vmem:[%s0 + $0x34] sm:$0xf]
  %v28 = vld [vmem:[%s0 + $0x38] sm:$0xf]
  %v29 = vld [vmem:[%s0 + $0x3c] sm:$0xf]
  %v30 = vunpack.c.l.bf16 %v14
  %v31 = vunpack.c.l.bf16 %v15
  %v32 = vunpack.c.l.bf16 %v16
  %v33 = vunpack.c.l.bf16 %v17
  %v34 = vunpack.c.l.bf16 %v18
  %v35 = vunpack.c.l.bf16 %v19
  %v36 = vunpack.c.l.bf16 %v20
  %v37 = vunpack.c.l.bf16 %v21
  %v38 = vunpack.c.l.bf16 %v22
  %v39 = vunpack.c.l.bf16 %v23
  %v40 = vunpack.c.l.bf16 %v24
  %v41 = vunpack.c.l.bf16 %v25
  %v42 = vunpack.c.l.bf16 %v26
  %v43 = vunpack.c.l.bf16 %v27
  %v44 = vunpack.c.l.bf16 %v28
  %v45 = vunpack.c.l.bf16 %v29
  %v46 = vld [vmem:[%s1] sm:$0x1]
  %v48 = vlaneseq
  %v49 = vshrl.u32 %v48, 7
  %v50 = vsub.s32 0, %v49
  %v51 = vrot.slane %v46, %v50
  %v53 = vmul.f32 %v30, %v51
  %v54 = vmul.f32 %v31, %v51
  %v55 = vmul.f32 %v32, %v51
  %v56 = vmul.f32 %v33, %v51
  %v57 = vmul.f32 %v34, %v51
  %v58 = vmul.f32 %v35, %v51
  %v59 = vmul.f32 %v36, %v51
  %v60 = vmul.f32 %v37, %v51
  %v61 = vmul.f32 %v38, %v51
  %v62 = vmul.f32 %v39, %v51
  %v63 = vmul.f32 %v40, %v51
  %v64 = vmul.f32 %v41, %v51
  %v65 = vmul.f32 %v42, %v51
  %v66 = vmul.f32 %v43, %v51
  %v67 = vmul.f32 %v44, %v51
  %v68 = vmul.f32 %v45, %v51
  %v69 = vld [vmem:[%s2] sm:$0x1]
  %v71 = vlaneseq
  %v72 = vshrl.u32 %v71, 7
  %v73 = vsub.s32 0, %v72
  %v74 = vrot.slane %v69, %v73
  %v76 = vadd.f32 %v53, %v74
  %v77 = vadd.f32 %v54, %v74
  %v78 = vadd.f32 %v55, %v74
  %v79 = vadd.f32 %v56, %v74
  %v80 = vadd.f32 %v57, %v74
  %v81 = vadd.f32 %v58, %v74
  %v82 = vadd.f32 %v59, %v74
  %v83 = vadd.f32 %v60, %v74
  %v84 = vadd.f32 %v61, %v74
  %v85 = vadd.f32 %v62, %v74
  %v86 = vadd.f32 %v63, %v74
  %v87 = vadd.f32 %v64, %v74
  %v88 = vadd.f32 %v65, %v74
  %v89 = vadd.f32 %v66, %v74
  %v90 = vadd.f32 %v67, %v74
  %v91 = vadd.f32 %v68, %v74
  %v92 = vmax.f32 %v76, 0.0
  %v93 = vmax.f32 %v77, 0.0
  %v94 = vmax.f32 %v78, 0.0
  %v95 = vmax.f32 %v79, 0.0
  %v96 = vmax.f32 %v80, 0.0
  %v97 = vmax.f32 %v81, 0.0
  %v98 = vmax.f32 %v82, 0.0
  %v99 = vmax.f32 %v83, 0.0
  %v100 = vmax.f32 %v84, 0.0
  %v101 = vmax.f32 %v85, 0.0
  %v102 = vmax.f32 %v86, 0.0
  %v103 = vmax.f32 %v87, 0.0
  %v104 = vmax.f32 %v88, 0.0
  %v105 = vmax.f32 %v89, 0.0
  %v106 = vmax.f32 %v90, 0.0
  %v107 = vmax.f32 %v91, 0.0
  %v108 = vpack.c.bf16 %v93, %v92
  %v109 = vpack.c.bf16 %v95, %v94
  %v110 = vpack.c.bf16 %v97, %v96
  %v111 = vpack.c.bf16 %v99, %v98
  %v112 = vpack.c.bf16 %v101, %v100
  %v113 = vpack.c.bf16 %v103, %v102
  %v114 = vpack.c.bf16 %v105, %v104
  %v115 = vpack.c.bf16 %v107, %v106
  %v124 = vunpack.c.l.b16 %v108
  %v125 = vunpack.c.h.b16 %v108
  %v126 = vunpack.c.l.b16 %v109
  %v127 = vunpack.c.h.b16 %v109
  %v128 = vunpack.c.l.b16 %v110
  %v129 = vunpack.c.h.b16 %v110
  %v130 = vunpack.c.l.b16 %v111
  %v131 = vunpack.c.h.b16 %v111
  %v132 = vunpack.c.l.b16 %v112
  %v133 = vunpack.c.h.b16 %v112
  %v134 = vunpack.c.l.b16 %v113
  %v135 = vunpack.c.h.b16 %v113
  %v136 = vunpack.c.l.b16 %v114
  %v137 = vunpack.c.h.b16 %v114
  %v138 = vunpack.c.l.b16 %v115
  %v139 = vunpack.c.h.b16 %v115
  %v140 = vpack.c.b16 %v124, %v124
  %v141 = vpack.c.b16 %v125, %v125
  %v142 = vpack.c.b16 %v126, %v126
  %v143 = vpack.c.b16 %v127, %v127
  %v144 = vpack.c.b16 %v128, %v128
  %v145 = vpack.c.b16 %v129, %v129
  %v146 = vpack.c.b16 %v130, %v130
  %v147 = vpack.c.b16 %v131, %v131
  %v148 = vpack.c.b16 %v132, %v132
  %v149 = vpack.c.b16 %v133, %v133
  %v150 = vpack.c.b16 %v134, %v134
  %v151 = vpack.c.b16 %v135, %v135
  %v152 = vpack.c.b16 %v136, %v136
  %v153 = vpack.c.b16 %v137, %v137
  %v154 = vpack.c.b16 %v138, %v138
  %v155 = vpack.c.b16 %v139, %v139
  %172 = vst [vmem:[%s3] sm:$0xf] %v140
  %173 = vst [vmem:[%s3 + $0x4] sm:$0xf] %v141
  %174 = vst [vmem:[%s3 + $0x8] sm:$0xf] %v142
  %175 = vst [vmem:[%s3 + $0xc] sm:$0xf] %v143
  %176 = vst [vmem:[%s3 + $0x10] sm:$0xf] %v144
  %177 = vst [vmem:[%s3 + $0x14] sm:$0xf] %v145
  %178 = vst [vmem:[%s3 + $0x18] sm:$0xf] %v146
  %179 = vst [vmem:[%s3 + $0x1c] sm:$0xf] %v147
  %180 = vst [vmem:[%s3 + $0x20] sm:$0xf] %v148
  %181 = vst [vmem:[%s3 + $0x24] sm:$0xf] %v149
  %182 = vst [vmem:[%s3 + $0x28] sm:$0xf] %v150
  %183 = vst [vmem:[%s3 + $0x2c] sm:$0xf] %v151
  %184 = vst [vmem:[%s3 + $0x30] sm:$0xf] %v152
  %185 = vst [vmem:[%s3 + $0x34] sm:$0xf] %v153
  %186 = vst [vmem:[%s3 + $0x38] sm:$0xf] %v154
  %187 = vst [vmem:[%s3 + $0x3c] sm:$0xf] %v155
  // Predicated region
  $region14: #{_lambda_.12} parent=0 // pred_check
    _
  $region15: #{_lambda_.12} parent=0 // pred_check_branch
    %189 = sbr.rel (0) target = $region17
  $region16: #{_lambda_.12} parent=0 // pred_region
    _
  $region17: #{_lambda_.12} parent=0 // pred_fallthru
    _
  // Predicated region
  $region18: #{_lambda_.12} parent=0 // pred_check
    _
  $region19: #{_lambda_.12} parent=0 // pred_check_branch
    %191 = sbr.rel (0) target = $region21
  $region20: #{_lambda_.12} parent=0 // pred_region
    _
  $region21: #{_lambda_.12} parent=0 // pred_fallthru
    _

// kernel: _lambda_.13
$region0: #{_lambda_.13}
  #allocation0 [shape = 'u32[]', space=smem, size = 0x4, offset = 0x4, fixed_abs, tag = 'smem constant byte address 0x4 - core index']
  #allocation1 [shape = 'u32[144,128]{1,0:T(1,128)}', space=vmem, size = 0x12000, scoped, tag = 'internal scratch']
  #allocation2 [shape = 'f32[128,128]{1,0:T(8,128)}', space=vmem, size = 0x10000, scoped, tag = 'scratch operand']
  %s0 = inlined_call_operand.vmem [shape: bf16[4,128,128], index: 0, kind: input, shape index: {}]
  %s1 = inlined_call_operand.vmem [shape: bf16[4,128,128], index: 1, kind: input, shape index: {}]
  %s2 = inlined_call_operand.vmem [shape: f32[4,128,128], index: 2, kind: output, shape index: {}]
  %s3 = sld [smem:[#allocation0]]
  $region49: #{_lambda_.13} parent=0
    _
  %s5 = ssub.s32 1, %s3
  %s6 = scalar_select 0, %s5, %s3
  loop: start=0, step=1, limit=6
  $region2: #{_lambda_.13} parent=0 // loop_pre_header
    _
  $region3: #{_lambda_.13} parent=0 // loop_header
    %s8 = sphi 0, %s12
    %p9 = scmp.ge.s32.totalorder %s8, 6
    %s15 = sphi 0, %s34
    %s16 = sphi 0, %s30
    %s17 = sphi 0, %s26
    %s18 = sphi 0, %s15
    %s19 = sphi 0, %s16
    %s20 = sphi 0, %s17
    %s21 = sphi 0, %s18
    %s22 = sphi 0, %s19
    %s23 = sphi 0, %s20
    %s41 = sphi 0, %s43
    %s44 = sphi 0, %s41
    %s45 = sphi 0, %s44
    %s61 = sphi 0, %s45
    %s69 = sphi 0, %s71
    %s72 = sphi 0, %s69
    %s73 = sphi 0, %s72
    %s89 = sphi 0, %s73
    %s97 = sphi 0, %s99
    %s100 = sphi 0, %s97
    %s101 = sphi 0, %s100
    %s117 = sphi 0, %s101
  $region4: #{_lambda_.13} parent=0 // loop_header_branch
    %11 = sbr.rel (%p9) target = $region8
  $region5: #{_lambda_.13} parent=0 // loop_body
    %s13 = ssub.s32 %s8, 1
    %s14 = ssub.s32 %s8, 2
    %s24 = sadd.s32 1, %s17
    %p25 = scmp.ge.s32.totalorder %s24, 1
    %s26 = scalar_select %p25, 0, %s24
    %s27 = sadd.s32 1, %s16
    %s28 = scalar_select %p25, %s27, %s16
    %p29 = scmp.ge.s32.totalorder %s28, 1
    %s30 = scalar_select %p29, 0, %s28
    %s31 = sadd.s32 1, %s15
    %s32 = scalar_select %p29, %s31, %s15
    %p33 = scmp.ge.s32.totalorder %s32, 4
    %s34 = scalar_select %p33, 0, %s32
    %s35 = ssub.s32 %s15, %s34
    %s36 = ssub.s32 %s16, %s30
    %s37 = sor.u32 %s35, %s36
    %s38 = ssub.s32 %s17, %s26
    %s39 = sor.u32 %s37, %s38
    %p40 = scmp.eq.s32.totalorder %s39, 0
    %s42 = sadd.s32 %s41, 1
    %s43 = scalar_select %p40, %s41, %s42
    %p46 = pneg %p40
    %p47 = scmp.eq.s32.totalorder %s8, 3
    %p48 = por %p46, %p47
    %p49 = scmp.ne.s32.totalorder %s41, %s44
    %p50 = scmp.eq.s32.totalorder %s8, 0
    %p51 = por %p49, %p50
    %p52 = scmp.ne.s32.totalorder %s41, %s44
    %p53 = scmp.eq.s32.totalorder %s13, 3
    %p54 = por %p52, %p53
    %p55 = scmp.ne.s32.totalorder %s44, %s45
    %p56 = scmp.eq.s32.totalorder %s13, 0
    %p57 = por %p55, %p56
    %p58 = scmp.ne.s32.totalorder %s44, %s45
    %p59 = scmp.eq.s32.totalorder %s14, 3
    %p60 = por %p58, %p59
    %p62 = scmp.ne.s32.totalorder %s45, %s61
    %p63 = scmp.eq.s32.totalorder %s14, 0
    %p64 = por %p62, %p63
    %s65 = ssub.s32 %s15, %s34
    %s66 = ssub.s32 %s17, %s26
    %s67 = sor.u32 %s65, %s66
    %p68 = scmp.eq.s32.totalorder %s67, 0
    %s70 = sadd.s32 %s69, 1
    %s71 = scalar_select %p68, %s69, %s70
    %p74 = pneg %p68
    %p75 = scmp.eq.s32.totalorder %s8, 3
    %p76 = por %p74, %p75
    %p77 = scmp.ne.s32.totalorder %s69, %s72
    %p78 = scmp.eq.s32.totalorder %s8, 0
    %p79 = por %p77, %p78
    %p80 = scmp.ne.s32.totalorder %s69, %s72
    %p81 = scmp.eq.s32.totalorder %s13, 3
    %p82 = por %p80, %p81
    %p83 = scmp.ne.s32.totalorder %s72, %s73
    %p84 = scmp.eq.s32.totalorder %s13, 0
    %p85 = por %p83, %p84
    %p86 = scmp.ne.s32.totalorder %s72, %s73
    %p87 = scmp.eq.s32.totalorder %s14, 3
    %p88 = por %p86, %p87
    %p90 = scmp.ne.s32.totalorder %s73, %s89
    %p91 = scmp.eq.s32.totalorder %s14, 0
    %p92 = por %p90, %p91
    %s93 = ssub.s32 %s15, %s34
    %s94 = ssub.s32 %s16, %s30
    %s95 = sor.u32 %s93, %s94
    %p96 = scmp.eq.s32.totalorder %s95, 0
    %s98 = sadd.s32 %s97, 1
    %s99 = scalar_select %p96, %s97, %s98
    %p102 = pneg %p96
    %p103 = scmp.eq.s32.totalorder %s8, 3
    %p104 = por %p102, %p103
    %p105 = scmp.ne.s32.totalorder %s97, %s100
    %p106 = scmp.eq.s32.totalorder %s8, 0
    %p107 = por %p105, %p106
    %p108 = scmp.ne.s32.totalorder %s97, %s100
    %p109 = scmp.eq.s32.totalorder %s13, 3
    %p110 = por %p108, %p109
    %p111 = scmp.ne.s32.totalorder %s100, %s101
    %p112 = scmp.eq.s32.totalorder %s13, 0
    %p113 = por %p111, %p112
    %p114 = scmp.ne.s32.totalorder %s100, %s101
    %p115 = scmp.eq.s32.totalorder %s14, 3
    %p116 = por %p114, %p115
    %p118 = scmp.ne.s32.totalorder %s101, %s117
    %p119 = scmp.eq.s32.totalorder %s14, 0
    %p120 = por %p118, %p119
    %p121 = scmp.le.s32.totalorder 1, %s8
    %p122 = scmp.lt.s32.totalorder %s8, 5
    %p123 = pnand %p121, %p122
    %p124 = pneg %p123
    // Predicated region
    $region9: #{_lambda_.13} parent=5 // pred_check
      _
    $region10: #{_lambda_.13} parent=5 // pred_check_branch
      %126 = sbr.rel (%p123) target = $region12
    $region11: #{_lambda_.13} parent=5 // pred_region
      %s127 = ssub.s32 %s8, 1
    $region12: #{_lambda_.13} parent=5 // pred_fallthru
      _
    %p128 = scmp.lt.s32.totalorder %s8, 4
    // Predicated region
    $region13: #{_lambda_.13} parent=5 // pred_check
      %p129 = pneg %p128
    $region14: #{_lambda_.13} parent=5 // pred_check_branch
      %131 = sbr.rel (%p129) target = $region16
    $region15: #{_lambda_.13} parent=5 // pred_region
      // Predicated region
      $region17: #{_lambda_.13} parent=15 // pred_check
        %p132 = pneg %p51
      $region18: #{_lambda_.13} parent=15 // pred_check_branch
        %134 = sbr.rel (%p132) target = $region20
      $region19: #{_lambda_.13} parent=15 // pred_region
        %s135 = smul.u32 16, %s16
        %p136 = scmp.lt.s32.totalorder %s15, 3
        %s137 = scalar_select %p136, %s15, 3
        %p138 = scmp.lt.s32.totalorder %s135, 15
        %s139 = scalar_select %p138, %s135, 15
        %p140 = scmp.lt.s32.totalorder %s17, 0
        %s141 = scalar_select %p140, %s17, 0
        %s142 = sadd.s32 %s141, %s139
        %s143 = smul.addr %s137, 16
        %s144 = sadd.s32 %s142, %s143
        %s145 = smul.addr %s144, 4
        %s146 = scalar_lea.vmem %s0, %s145
        %s147 = smul.u32 16, %s16
      $region20: #{_lambda_.13} parent=15 // pred_fallthru
        _
      // Predicated region
      $region21: #{_lambda_.13} parent=15 // pred_check
        %p148 = pneg %p79
      $region22: #{_lambda_.13} parent=15 // pred_check_branch
        %150 = sbr.rel (%p148) target = $region24
      $region23: #{_lambda_.13} parent=15 // pred_region
        %s151 = smul.u32 16, %s17
        %p152 = scmp.lt.s32.totalorder %s15, 3
        %s153 = scalar_select %p152, %s15, 3
        %p154 = scmp.lt.s32.totalorder %s151, 15
        %s155 = scalar_select %p154, %s151, 15
        %s156 = smul.addr %s153, 16
        %s157 = sadd.s32 %s155, %s156
        %s158 = smul.addr %s157, 4
        %s159 = scalar_lea.vmem %s1, %s158
        %s160 = smul.u32 16, %s17
      $region24: #{_lambda_.13} parent=15 // pred_fallthru
        _
    $region16: #{_lambda_.13} parent=5 // pred_fallthru
      _
    %p161 = scmp.le.s32.totalorder 1, %s8
    %p162 = scmp.lt.s32.totalorder %s8, 5
    %p163 = pnand %p161, %p162
    %p164 = pneg %p163
    // Predicated region
    $region25: #{_lambda_.13} parent=5 // pred_check
      _
    $region26: #{_lambda_.13} parent=5 // pred_check_branch
      %166 = sbr.rel (%p163) target = $region28
    $region27: #{_lambda_.13} parent=5 // pred_region
      %s167 = ssub.s32 %s8, 1
      %s168 = smul.u32 16, %s19
      %p169 = scmp.lt.s32.totalorder %s18, 3
      %s170 = scalar_select %p169, %s18, 3
      %p171 = scmp.lt.s32.totalorder %s168, 15
      %s172 = scalar_select %p171, %s168, 15
      %p173 = scmp.lt.s32.totalorder %s20, 0
      %s174 = scalar_select %p173, %s20, 0
      %s175 = sadd.s32 %s174, %s172
      %s176 = smul.addr %s170, 16
      %s177 = sadd.s32 %s175, %s176
      %s178 = smul.addr %s177, 4
      %s179 = scalar_lea.vmem %s0, %s178
      %p180 = pneg %p57
      %p181 = pneg %p54
      %s182 = smul.u32 16, %s20
      %p183 = scmp.lt.s32.totalorder %s18, 3
      %s184 = scalar_select %p183, %s18, 3
      %p185 = scmp.lt.s32.totalorder %s182, 15
      %s186 = scalar_select %p185, %s182, 15
      %s187 = smul.addr %s184, 16
      %s188 = sadd.s32 %s186, %s187
      %s189 = smul.addr %s188, 4
      %s190 = scalar_lea.vmem %s1, %s189
      %p191 = pneg %p85
      %p192 = pneg %p82
      %p193 = pneg %p113
      %p194 = pneg %p110
      %s195 = smul.u32 16, %s19
      %p196 = scmp.lt.s32.totalorder %s18, 3
      %s197 = scalar_select %p196, %s18, 3
      %p198 = scmp.lt.s32.totalorder %s195, 15
      %s199 = scalar_select %p198, %s195, 15
      %s200 = smul.addr %s197, 16
      %s201 = sadd.s32 %s199, %s200
      %s202 = smul.addr %s201, 8
      %s203 = scalar_lea.vmem %s2, %s202
      %s204 = smul.u32 16, %s19
      %p205 = scmp.lt.s32.totalorder %s18, 3
      %s206 = scalar_select %p205, %s18, 3
      %p207 = scmp.lt.s32.totalorder %s204, 15
      %s208 = scalar_select %p207, %s204, 15
      %p209 = scmp.lt.s32.totalorder %s20, 0
      %s210 = scalar_select %p209, %s20, 0
      %s211 = sadd.s32 %s210, %s208
      %s212 = smul.addr %s206, 16
      %s213 = sadd.s32 %s211, %s212
      %s214 = smul.addr %s213, 4
      %s215 = scalar_lea.vmem %s0, %s214
      %s216 = smul.u32 16, %s19
      %s217 = smul.u32 16, %s20
      %p218 = scmp.lt.s32.totalorder %s18, 3
      %s219 = scalar_select %p218, %s18, 3
      %p220 = scmp.lt.s32.totalorder %s217, 15
      %s221 = scalar_select %p220, %s217, 15
      %s222 = smul.addr %s219, 16
      %s223 = sadd.s32 %s221, %s222
      %s224 = smul.addr %s223, 4
      %s225 = scalar_lea.vmem %s1, %s224
      %s226 = smul.u32 16, %s20
      %s227 = smul.u32 16, %s19
      %p228 = scmp.lt.s32.totalorder %s18, 3
      %s229 = scalar_select %p228, %s18, 3
      %p230 = scmp.lt.s32.totalorder %s227, 15
      %s231 = scalar_select %p230, %s227, 15
      %s232 = smul.addr %s229, 16
      %s233 = sadd.s32 %s231, %s232
      %s234 = smul.addr %s233, 8
      %s235 = scalar_lea.vmem %s2, %s234
      %s236 = smul.u32 16, %s19
      %p238 = scmp.eq.s32.totalorder %s20, 0
      // Predicated region
      $region29: #{_lambda_.13} parent=27 // pred_check
        %p239 = pneg %p238
      $region30: #{_lambda_.13} parent=27 // pred_check_branch
        %241 = sbr.rel (%p239) target = $region32
      $region31: #{_lambda_.13} parent=27 // pred_region
        %242 = vst [vmem:[#allocation2] sm:$0xff] 0.0
        %243 = vst [vmem:[#allocation2 + $0x8] sm:$0xff] 0.0
        %244 = vst [vmem:[#allocation2 + $0x10] sm:$0xff] 0.0
        %245 = vst [vmem:[#allocation2 + $0x18] sm:$0xff] 0.0
        %246 = vst [vmem:[#allocation2 + $0x20] sm:$0xff] 0.0
        %247 = vst [vmem:[#allocation2 + $0x28] sm:$0xff] 0.0
        %248 = vst [vmem:[#allocation2 + $0x30] sm:$0xff] 0.0
        %249 = vst [vmem:[#allocation2 + $0x38] sm:$0xff] 0.0
        %250 = vst [vmem:[#allocation2 + $0x40] sm:$0xff] 0.0
        %251 = vst [vmem:[#allocation2 + $0x48] sm:$0xff] 0.0
        %252 = vst [vmem:[#allocation2 + $0x50] sm:$0xff] 0.0
        %253 = vst [vmem:[#allocation2 + $0x58] sm:$0xff] 0.0
        %254 = vst [vmem:[#allocation2 + $0x60] sm:$0xff] 0.0
        %255 = vst [vmem:[#allocation2 + $0x68] sm:$0xff] 0.0
        %256 = vst [vmem:[#allocation2 + $0x70] sm:$0xff] 0.0
        %257 = vst [vmem:[#allocation2 + $0x78] sm:$0xff] 0.0
      $region32: #{_lambda_.13} parent=27 // pred_fallthru
        _
      %v258 = vld [vmem:[#allocation2] sm:$0xff]
      %v259 = vld [vmem:[#allocation2 + $0x8] sm:$0xff]
      %v260 = vld [vmem:[#allocation2 + $0x10] sm:$0xff]
      %v261 = vld [vmem:[#allocation2 + $0x18] sm:$0xff]
      %v262 = vld [vmem:[#allocation2 + $0x20] sm:$0xff]
      %v263 = vld [vmem:[#allocation2 + $0x28] sm:$0xff]
      %v264 = vld [vmem:[#allocation2 + $0x30] sm:$0xff]
      %v265 = vld [vmem:[#allocation2 + $0x38] sm:$0xff]
      %v266 = vld [vmem:[#allocation2 + $0x40] sm:$0xff]
      %v267 = vld [vmem:[#allocation2 + $0x48] sm:$0xff]
      %v268 = vld [vmem:[#allocation2 + $0x50] sm:$0xff]
      %v269 = vld [vmem:[#allocation2 + $0x58] sm:$0xff]
      %v270 = vld [vmem:[#allocation2 + $0x60] sm:$0xff]
      %v271 = vld [vmem:[#allocation2 + $0x68] sm:$0xff]
      %v272 = vld [vmem:[#allocation2 + $0x70] sm:$0xff]
      %v273 = vld [vmem:[#allocation2 + $0x78] sm:$0xff]
      %v274 = vld [vmem:[%s215] sm:$0xf]
      %v275 = vld [vmem:[%s215 + $0x4] sm:$0xf]
      %v276 = vld [vmem:[%s215 + $0x8] sm:$0xf]
      %v277 = vld [vmem:[%s215 + $0xc] sm:$0xf]
      %v278 = vld [vmem:[%s215 + $0x10] sm:$0xf]
      %v279 = vld [vmem:[%s215 + $0x14] sm:$0xf]
      %v280 = vld [vmem:[%s215 + $0x18] sm:$0xf]
      %v281 = vld [vmem:[%s215 + $0x1c] sm:$0xf]
      %v282 = vld [vmem:[%s215 + $0x20] sm:$0xf]
      %v283 = vld [vmem:[%s215 + $0x24] sm:$0xf]
      %v284 = vld [vmem:[%s215 + $0x28] sm:$0xf]
      %v285 = vld [vmem:[%s215 + $0x2c] sm:$0xf]
      %v286 = vld [vmem:[%s215 + $0x30] sm:$0xf]
      %v287 = vld [vmem:[%s215 + $0x34] sm:$0xf]
      %v288 = vld [vmem:[%s215 + $0x38] sm:$0xf]
      %v289 = vld [vmem:[%s215 + $0x3c] sm:$0xf]
      %v290 = vld [vmem:[%s225] sm:$0xf]
      %v291 = vld [vmem:[%s225 + $0x4] sm:$0xf]
      %v292 = vld [vmem:[%s225 + $0x8] sm:$0xf]
      %v293 = vld [vmem:[%s225 + $0xc] sm:$0xf]
      %v294 = vld [vmem:[%s225 + $0x10] sm:$0xf]
      %v295 = vld [vmem:[%s225 + $0x14] sm:$0xf]
      %v296 = vld [vmem:[%s225 + $0x18] sm:$0xf]
      %v297 = vld [vmem:[%s225 + $0x1c] sm:$0xf]
      %v298 = vld [vmem:[%s225 + $0x20] sm:$0xf]
      %v299 = vld [vmem:[%s225 + $0x24] sm:$0xf]
      %v300 = vld [vmem:[%s225 + $0x28] sm:$0xf]
      %v301 = vld [vmem:[%s225 + $0x2c] sm:$0xf]
      %v302 = vld [vmem:[%s225 + $0x30] sm:$0xf]
      %v303 = vld [vmem:[%s225 + $0x34] sm:$0xf]
      %v304 = vld [vmem:[%s225 + $0x38] sm:$0xf]
      %v305 = vld [vmem:[%s225 + $0x3c] sm:$0xf]
      %v322 = vunpack.c.l.b16 %v274
      %v323 = vunpack.c.l.b16 %v275
      %v324 = vunpack.c.l.b16 %v276
      %v325 = vunpack.c.l.b16 %v277
      %v326 = vunpack.c.l.b16 %v278
      %v327 = vunpack.c.l.b16 %v279
      %v328 = vunpack.c.l.b16 %v280
      %v329 = vunpack.c.l.b16 %v281
      %v330 = vunpack.c.l.b16 %v282
      %v331 = vunpack.c.l.b16 %v283
      %v332 = vunpack.c.l.b16 %v284
      %v333 = vunpack.c.l.b16 %v285
      %v334 = vunpack.c.l.b16 %v286
      %v335 = vunpack.c.l.b16 %v287
      %v336 = vunpack.c.l.b16 %v288
      %v337 = vunpack.c.l.b16 %v289
      %v338 = vpack.c.b16 %v323, %v322
      %v339 = vpack.c.b16 %v325, %v324
      %v340 = vpack.c.b16 %v327, %v326
      %v341 = vpack.c.b16 %v329, %v328
      %v342 = vpack.c.b16 %v331, %v330
      %v343 = vpack.c.b16 %v333, %v332
      %v344 = vpack.c.b16 %v335, %v334
      %v345 = vpack.c.b16 %v337, %v336
      %v370 = vunpack.c.l.b16 %v290
      %v371 = vunpack.c.l.b16 %v291
      %v372 = vunpack.c.l.b16 %v292
      %v373 = vunpack.c.l.b16 %v293
      %v374 = vunpack.c.l.b16 %v294
      %v375 = vunpack.c.l.b16 %v295
      %v376 = vunpack.c.l.b16 %v296
      %v377 = vunpack.c.l.b16 %v297
      %v378 = vunpack.c.l.b16 %v298
      %v379 = vunpack.c.l.b16 %v299
      %v380 = vunpack.c.l.b16 %v300
      %v381 = vunpack.c.l.b16 %v301
      %v382 = vunpack.c.l.b16 %v302
      %v383 = vunpack.c.l.b16 %v303
      %v384 = vunpack.c.l.b16 %v304
      %v385 = vunpack.c.l.b16 %v305
      %v386 = vpack.c.b16 %v371, %v370
      %v387 = vpack.c.b16 %v373, %v372
      %v388 = vpack.c.b16 %v375, %v374
      %v389 = vpack.c.b16 %v377, %v376
      %v390 = vpack.c.b16 %v379, %v378
      %v391 = vpack.c.b16 %v381, %v380
      %v392 = vpack.c.b16 %v383, %v382
      %v393 = vpack.c.b16 %v385, %v384
      %402 = vmatprep.subr.bf16.mxu0 0
      %403 = vmatpush1.bf16.msra.mxu0 %v386
      %404 = vmatprep.subr.bf16.mxu0 0
      %405 = vmatpush1.bf16.msra.mxu0 %v387
      %406 = vmatprep.subr.bf16.mxu0 0
      %407 = vmatpush1.bf16.msra.mxu0 %v388
      %408 = vmatprep.subr.bf16.mxu0 0
      %409 = vmatpush1.bf16.msra.mxu0 %v389
      %410 = vmatprep.subr.bf16.mxu0 0
      %411 = vmatpush1.bf16.msra.mxu0 %v390
      %412 = vmatprep.subr.bf16.mxu0 0
      %413 = vmatpush1.bf16.msra.mxu0 %v391
      %414 = vmatprep.subr.bf16.mxu0 0
      %415 = vmatpush1.bf16.msra.mxu0 %v392
      %416 = vmatprep.subr.bf16.mxu0 0
      %417 = vmatpush1.bf16.msra.mxu0 %v393
      %418 = vmatprep.subr.bf16.mxu0 0
      %419 = vmatpush1.bf16.msra.mxu0 0
      %420 = vmatprep.subr.bf16.mxu0 0
      %421 = vmatpush1.bf16.msra.mxu0 0
      %422 = vmatprep.subr.bf16.mxu0 0
      %423 = vmatpush1.bf16.msra.mxu0 0
      %424 = vmatprep.subr.bf16.mxu0 0
      %425 = vmatpush1.bf16.msra.mxu0 0
      %426 = vmatprep.subr.bf16.mxu0 0
      %427 = vmatpush1.bf16.msra.mxu0 0
      %428 = vmatprep.subr.bf16.mxu0 0
      %429 = vmatpush1.bf16.msra.mxu0 0
      %430 = vmatprep.subr.bf16.mxu0 0
      %431 = vmatpush1.bf16.msra.mxu0 0
      %432 = vmatprep.subr.bf16.mxu0 0
      %433 = vmatpush1.bf16.msra.mxu0 0
      %434 = vmatprep.mubr.bf16.mxu0 0
      %435 = vmatmul.mubr.bf16.gmra.mrb[0].mxu0 %v338
      %v436 = vpop.f32.mrb[0].mxu0
      %v437 = vadd.f32 0.0, %v436
      %v438 = vpop.f32.mrb[0].mxu0
      %v439 = vpop.f32.mrb[0].mxu0
      %v440 = vadd.f32 0.0, %v439
      %v441 = vpop.f32.mrb[0].mxu0
      %442 = vmatprep.mubr.bf16.mxu0 0
      %443 = vmatmul.mubr.bf16.gmra.mrb[0].mxu0 %v339
      %v444 = vpop.f32.mrb[0].mxu0
      %v445 = vadd.f32 0.0, %v444
      %v446 = vpop.f32.mrb[0].mxu0
      %v447 = vpop.f32.mrb[0].mxu0
      %v448 = vadd.f32 0.0, %v447
      %v449 = vpop.f32.mrb[0].mxu0
      %450 = vmatprep.mubr.bf16.mxu0 0
      %451 = vmatmul.mubr.bf16.gmra.mrb[0].mxu0 %v340
      %v452 = vpop.f32.mrb[0].mxu0
      %v453 = vadd.f32 0.0, %v452
      %v454 = vpop.f32.mrb[0].mxu0
      %v455 = vpop.f32.mrb[0].mxu0
      %v456 = vadd.f32 0.0, %v455
      %v457 = vpop.f32.mrb[0].mxu0
      %458 = vmatprep.mubr.bf16.mxu0 0
      %459 = vmatmul.mubr.bf16.gmra.mrb[0].mxu0 %v341
      %v460 = vpop.f32.mrb[0].mxu0
      %v461 = vadd.f32 0.0, %v460
      %v462 = vpop.f32.mrb[0].mxu0
      %v463 = vpop.f32.mrb[0].mxu0
      %v464 = vadd.f32 0.0, %v463
      %v465 = vpop.f32.mrb[0].mxu0
      %466 = vmatprep.mubr.bf16.mxu0 0
      %467 = vmatmul.mubr.bf16.gmra.mrb[0].mxu0 %v342
      %v468 = vpop.f32.mrb[0].mxu0
      %v469 = vadd.f32 0.0, %v468
      %v470 = vpop.f32.mrb[0].mxu0
      %v471 = vpop.f32.mrb[0].mxu0
      %v472 = vadd.f32 0.0, %v471
      %v473 = vpop.f32.mrb[0].mxu0
      %474 = vmatprep.mubr.bf16.mxu0 0
      %475 = vmatmul.mubr.bf16.gmra.mrb[0].mxu0 %v343
      %v476 = vpop.f32.mrb[0].mxu0
      %v477 = vadd.f32 0.0, %v476
      %v478 = vpop.f32.mrb[0].mxu0
      %v479 = vpop.f32.mrb[0].mxu0
      %v480 = vadd.f32 0.0, %v479
      %v481 = vpop.f32.mrb[0].mxu0
      %482 = vmatprep.mubr.bf16.mxu0 0
      %483 = vmatmul.mubr.bf16.gmra.mrb[0].mxu0 %v344
      %v484 = vpop.f32.mrb[0].mxu0
      %v485 = vadd.f32 0.0, %v484
      %v486 = vpop.f32.mrb[0].mxu0
      %v487 = vpop.f32.mrb[0].mxu0
      %v488 = vadd.f32 0.0, %v487
      %v489 = vpop.f32.mrb[0].mxu0
      %490 = vmatprep.mubr.bf16.mxu0 0
      %491 = vmatmul.mubr.bf16.gmra.mrb[0].mxu0 %v345
      %v492 = vpop.f32.mrb[0].mxu0
      %v493 = vadd.f32 0.0, %v492
      %v494 = vpop.f32.mrb[0].mxu0
      %v495 = vpop.f32.mrb[0].mxu0
      %v496 = vadd.f32 0.0, %v495
      %v497 = vpop.f32.mrb[0].mxu0
      %498 = vdwg.mxu0
      %v499 = vadd.f32 %v258, %v437
      %v500 = vadd.f32 %v259, %v440
      %v501 = vadd.f32 %v260, %v445
      %v502 = vadd.f32 %v261, %v448
      %v503 = vadd.f32 %v262, %v453
      %v504 = vadd.f32 %v263, %v456
      %v505 = vadd.f32 %v264, %v461
      %v506 = vadd.f32 %v265, %v464
      %v507 = vadd.f32 %v266, %v469
      %v508 = vadd.f32 %v267, %v472
      %v509 = vadd.f32 %v268, %v477
      %v510 = vadd.f32 %v269, %v480
      %v511 = vadd.f32 %v270, %v485
      %v512 = vadd.f32 %v271, %v488
      %v513 = vadd.f32 %v272, %v493
      %v514 = vadd.f32 %v273, %v496
      %515 = vst [vmem:[#allocation2] sm:$0xff] %v499
      %516 = vst [vmem:[#allocation2 + $0x8] sm:$0xff] %v500
      %517 = vst [vmem:[#allocation2 + $0x10] sm:$0xff] %v501
      %518 = vst [vmem:[#allocation2 + $0x18] sm:$0xff] %v502
      %519 = vst [vmem:[#allocation2 + $0x20] sm:$0xff] %v503
      %520 = vst [vmem:[#allocation2 + $0x28] sm:$0xff] %v504
      %521 = vst [vmem:[#allocation2 + $0x30] sm:$0xff] %v505
      %522 = vst [vmem:[#allocation2 + $0x38] sm:$0xff] %v506
      %523 = vst [vmem:[#allocation2 + $0x40] sm:$0xff] %v507
      %524 = vst [vmem:[#allocation2 + $0x48] sm:$0xff] %v508
      %525 = vst [vmem:[#allocation2 + $0x50] sm:$0xff] %v509
      %526 = vst [vmem:[#allocation2 + $0x58] sm:$0xff] %v510
      %527 = vst [vmem:[#allocation2 + $0x60] sm:$0xff] %v511
      %528 = vst [vmem:[#allocation2 + $0x68] sm:$0xff] %v512
      %529 = vst [vmem:[#allocation2 + $0x70] sm:$0xff] %v513
      %530 = vst [vmem:[#allocation2 + $0x78] sm:$0xff] %v514
      // Predicated region
      $region33: #{_lambda_.13} parent=27 // pred_check
        %p531 = pneg %p238
      $region34: #{_lambda_.13} parent=27 // pred_check_branch
        %533 = sbr.rel (%p531) target = $region36
      $region35: #{_lambda_.13} parent=27 // pred_region
        %v534 = vld [vmem:[#allocation2] sm:$0xff]
        %v535 = vld [vmem:[#allocation2 + $0x8] sm:$0xff]
        %v536 = vld [vmem:[#allocation2 + $0x10] sm:$0xff]
        %v537 = vld [vmem:[#allocation2 + $0x18] sm:$0xff]
        %v538 = vld [vmem:[#allocation2 + $0x20] sm:$0xff]
        %v539 = vld [vmem:[#allocation2 + $0x28] sm:$0xff]
        %v540 = vld [vmem:[#allocation2 + $0x30] sm:$0xff]
        %v541 = vld [vmem:[#allocation2 + $0x38] sm:$0xff]
        %v542 = vld [vmem:[#allocation2 + $0x40] sm:$0xff]
        %v543 = vld [vmem:[#allocation2 + $0x48] sm:$0xff]
        %v544 = vld [vmem:[#allocation2 + $0x50] sm:$0xff]
        %v545 = vld [vmem:[#allocation2 + $0x58] sm:$0xff]
        %v546 = vld [vmem:[#allocation2 + $0x60] sm:$0xff]
        %v547 = vld [vmem:[#allocation2 + $0x68] sm:$0xff]
        %v548 = vld [vmem:[#allocation2 + $0x70] sm:$0xff]
        %v549 = vld [vmem:[#allocation2 + $0x78] sm:$0xff]
        %v550 = vtanh.pop %v534
        %v551 = vtanh.pop %v535
        %v552 = vtanh.pop %v536
        %v553 = vtanh.pop %v537
        %v554 = vtanh.pop %v538
        %v555 = vtanh.pop %v539
        %v556 = vtanh.pop %v540
        %v557 = vtanh.pop %v541
        %v558 = vtanh.pop %v542
        %v559 = vtanh.pop %v543
        %v560 = vtanh.pop %v544
        %v561 = vtanh.pop %v545
        %v562 = vtanh.pop %v546
        %v563 = vtanh.pop %v547
        %v564 = vtanh.pop %v548
        %v565 = vtanh.pop %v549
        %566 = vst [vmem:[%s235] sm:$0xff] %v550
        %567 = vst [vmem:[%s235 + $0x8] sm:$0xff] %v551
        %568 = vst [vmem:[%s235 + $0x10] sm:$0xff] %v552
        %569 = vst [vmem:[%s235 + $0x18] sm:$0xff] %v553
        %570 = vst [vmem:[%s235 + $0x20] sm:$0xff] %v554
        %571 = vst [vmem:[%s235 + $0x28] sm:$0xff] %v555
        %572 = vst [vmem:[%s235 + $0x30] sm:$0xff] %v556
        %573 = vst [vmem:[%s235 + $0x38] sm:$0xff] %v557
        %574 = vst [vmem:[%s235 + $0x40] sm:$0xff] %v558
        %575 = vst [vmem:[%s235 + $0x48] sm:$0xff] %v559
        %576 = vst [vmem:[%s235 + $0x50] sm:$0xff] %v560
        %577 = vst [vmem:[%s235 + $0x58] sm:$0xff] %v561
        %578 = vst [vmem:[%s235 + $0x60] sm:$0xff] %v562
        %579 = vst [vmem:[%s235 + $0x68] sm:$0xff] %v563
        %580 = vst [vmem:[%s235 + $0x70] sm:$0xff] %v564
        %581 = vst [vmem:[%s235 + $0x78] sm:$0xff] %v565
      $region36: #{_lambda_.13} parent=27 // pred_fallthru
        _
      %s582 = smul.u32 16, %s19
      %p583 = scmp.lt.s32.totalorder %s18, 3
      %s584 = scalar_select %p583, %s18, 3
      %p585 = scmp.lt.s32.totalorder %s582, 15
      %s586 = scalar_select %p585, %s582, 15
      %s587 = smul.addr %s584, 16
      %s588 = sadd.s32 %s586, %s587
      %s589 = smul.addr %s588, 8
      %s590 = scalar_lea.vmem %s2, %s589
      // Predicated region
      $region37: #{_lambda_.13} parent=27 // pred_check
        %p591 = pneg %p110
      $region38: #{_lambda_.13} parent=27 // pred_check_branch
        %593 = sbr.rel (%p591) target = $region40
      $region39: #{_lambda_.13} parent=27 // pred_region
        %s594 = smul.u32 16, %s19
      $region40: #{_lambda_.13} parent=27 // pred_fallthru
        _
    $region28: #{_lambda_.13} parent=5 // pred_fallthru
      _
    %p595 = scmp.le.s32.totalorder 2, %s8
    // Predicated region
    $region41: #{_lambda_.13} parent=5 // pred_check
      %p596 = pneg %p595
    $region42: #{_lambda_.13} parent=5 // pred_check_branch
      %598 = sbr.rel (%p596) target = $region44
    $region43: #{_lambda_.13} parent=5 // pred_region
      %s599 = ssub.s32 %s8, 2
      // Predicated region
      $region45: #{_lambda_.13} parent=43 // pred_check
        %p600 = pneg %p116
      $region46: #{_lambda_.13} parent=43 // pred_check_branch
        %602 = sbr.rel (%p600) target = $region48
      $region47: #{_lambda_.13} parent=43 // pred_region
        %s603 = smul.u32 16, %s22
        %p604 = scmp.lt.s32.totalorder %s21, 3
        %s605 = scalar_select %p604, %s21, 3
        %p606 = scmp.lt.s32.totalorder %s603, 15
        %s607 = scalar_select %p606, %s603, 15
        %s608 = smul.addr %s605, 16
        %s609 = sadd.s32 %s607, %s608
        %s610 = smul.addr %s609, 8
        %s611 = scalar_lea.vmem %s2, %s610
      $region48: #{_lambda_.13} parent=43 // pred_fallthru
        _
    $region44: #{_lambda_.13} parent=5 // pred_fallthru
      _
  $region6: #{_lambda_.13} parent=0 // loop_footer
    %s12 = sadd.s32 1, %s8
  $region7: #{_lambda_.13} parent=0 // loop_footer_branch
    %7 = sbr.rel target = $region3
  $region8: #{_lambda_.13} parent=0 // loop_exit
    _

</llo_original>
